<compile_context>
chip_gen: v7x
topology: tpu7x:2x2x1
jax: 0.10.0
libtpu: 0.0.40
codegen_flags: <defaults>
</compile_context>

<pallas_src>
import functools

import jax
import jax.numpy as jnp
from jax.experimental import pallas as pl
from jax.experimental.pallas import tpu as pltpu


def _round_up(v, m):
    return -(-v // m) * m


# ----------------------------------------------------------------------------
# Fused kernel: num_layers x LSTM (zero initial state) + fc(out[:, -1, :]).
# Gate packing is [i, f, o, g]; each gate occupies Hp (multiple of 128) lanes.
# ----------------------------------------------------------------------------
def _rnnnet_kernel(x_ref, *refs, num_layers, seq_len, hidden_p, time_chunk,
                   batch_block):
    n_w = 3 * num_layers + 2
    w_refs = refs[:n_w]
    out_ref = refs[n_w]
    xp_scr = refs[n_w + 1]   # (TC, TB, 4Hp) f32 : per-chunk gate pre-activations
    y_scr = refs[n_w + 2]    # (S,  TB, Hp)  bf16: current layer's output sequence

    Hp = hidden_p
    TB = batch_block
    S = seq_len
    TC = time_chunk

    # Static chunk schedule over the time axis.
    chunks = []
    t = 0
    while t < S:
        ln = min(TC, S - t)
        chunks.append((t, ln))
        t += ln

    h = jnp.zeros((TB, Hp), jnp.float32)
    c = jnp.zeros((TB, Hp), jnp.float32)

    for layer in range(num_layers):
        wih_ref = w_refs[3 * layer]        # (Dp or Hp, 4Hp) bf16
        whh_ref = w_refs[3 * layer + 1]    # (Hp, 4Hp)       bf16
        b = w_refs[3 * layer + 2][...]     # (1, 4Hp) f32 (b_ih + b_hh folded)
        is_last = layer == num_layers - 1

        h = jnp.zeros((TB, Hp), jnp.float32)
        c = jnp.zeros((TB, Hp), jnp.float32)

        for (t0, ln) in chunks:
            # Time-parallel input projection for this chunk: one MXU matmul
            # with M = ln*TB.  For layer > 0 the chunk of y_scr is fully read
            # here (into a value) BEFORE the step loop overwrites those rows
            # with this layer's outputs, so there is no RAW hazard.
            if layer == 0:
                chunk_in = x_ref[t0:t0 + ln]       # (ln, TB, Dp) bf16
            else:
                chunk_in = y_scr[t0:t0 + ln]       # (ln, TB, Hp) bf16
            proj = jnp.dot(chunk_in.reshape(ln * TB, chunk_in.shape[-1]),
                           wih_ref[...],
                           preferred_element_type=jnp.float32) + b
            xp_scr[0:ln] = proj.reshape(ln, TB, 4 * Hp)

            def step(tt, carry, _t0=t0, _whh=whh_ref, _last=is_last):
                h_prev, c_prev = carry
                # Recurrent matmul: bf16 operands, f32 accumulate.  W_hh is
                # read from its ref per step (bounded vreg live ranges).
                # TODO(synk): for tiny batch, hold W_hh in MXU weight regs via
                # pltpu.matmul_push_rhs / matmul_acc_lhs instead of re-streaming.
                gates = xp_scr[tt] + jnp.dot(
                    h_prev.astype(jnp.bfloat16), _whh[...],
                    preferred_element_type=jnp.float32)
                # Packed [i, f, o | g]; every slice is 128-lane aligned.
                sig = jax.nn.sigmoid(gates[:, :3 * Hp])
                g_g = jnp.tanh(gates[:, 3 * Hp:])
                i_g = sig[:, 0 * Hp:1 * Hp]
                f_g = sig[:, 1 * Hp:2 * Hp]
                o_g = sig[:, 2 * Hp:3 * Hp]
                c_new = f_g * c_prev + i_g * g_g
                h_new = o_g * jnp.tanh(c_new)
                if not _last:                      # top layer never re-read
                    y_scr[_t0 + tt] = h_new.astype(y_scr.dtype)
                return h_new, c_new

            h, c = jax.lax.fori_loop(0, ln, step, (h, c),
                                     unroll=min(ln, 8))

    # Final Linear on the last timestep of the top layer (== out[:, -1, :]).
    w_fc = w_refs[3 * num_layers][...]      # (Hp, Cp) bf16
    b_fc = w_refs[3 * num_layers + 1][...]  # (1, Cp)  f32
    out_ref[...] = (jnp.dot(h.astype(jnp.bfloat16), w_fc,
                            preferred_element_type=jnp.float32)
                    + b_fc).astype(out_ref.dtype)


# ----------------------------------------------------------------------------
# Wrapper
# ----------------------------------------------------------------------------
def rnnnet_forward(x, flat_w, meta, *, batch_block=None, time_chunk=None):
    """x: (B, S, D) batch_first, like the PyTorch module.  Returns (B, C)."""
    B, S, D = x.shape
    Hp, Dp, Cp, C = meta["Hp"], meta["Dp"], meta["Cp"], meta["C"]
    num_layers = meta["num_layers"]

    Bp = max(8, _round_up(B, 8))                    # sublane-aligned batch
    if batch_block is None:
        # Split the batch across the 2 v7x TensorCores when it is big enough.
        batch_block = Bp // 2 if (Bp >= 16 and Bp % 16 == 0) else Bp
    TB = batch_block
    assert Bp % TB == 0 and TB % 8 == 0
    TC = time_chunk if time_chunk is not None else min(S, 16)

    # Glue: batch_first -> time-major, pad batch/input lanes, cast bf16.
    x_tm = jnp.transpose(x, (1, 0, 2)).astype(jnp.bfloat16)     # (S, B, D)
    x_tm = jnp.pad(x_tm, ((0, 0), (0, Bp - B), (0, Dp - D)))    # (S, Bp, Dp)

    y_len = S if num_layers > 1 else 1

    def const_spec(a):
        nd = a.ndim
        return pl.BlockSpec(a.shape, lambda b, _n=nd: (0,) * _n)

    in_specs = ([pl.BlockSpec((S, TB, Dp), lambda b: (0, b, 0))]
                + [const_spec(w) for w in flat_w])
    out_spec = pl.BlockSpec((TB, Cp), lambda b: (b, 0))

    # Size the scoped VMEM limit from the actual resident buffers (+margin).
    wbytes = sum(int(w.size) * jnp.dtype(w.dtype).itemsize for w in flat_w)
    need = (2 * S * TB * Dp * 2          # x block (double buffered, bf16)
            + 2 * wbytes                 # weights (+ buffering slack)
            + TC * TB * 4 * Hp * 4       # xp scratch (f32)
            + y_len * TB * Hp * 2        # y scratch (bf16)
            + 2 * TB * Cp * 4)           # output block
    vmem_limit = int(min(max(need + (4 << 20), 32 << 20), 96 << 20))
    # TODO(synk): for very long sequences the bf16 (S,TB,Hp) y scratch still
    # scales with S; a layer-interleaved time-blocking scheme would be needed.

    kernel = functools.partial(
        _rnnnet_kernel, num_layers=num_layers, seq_len=S, hidden_p=Hp,
        time_chunk=TC, batch_block=TB)

    out = pl.pallas_call(
        kernel,
        out_shape=jax.ShapeDtypeStruct((Bp, Cp), jnp.float32),
        grid=(Bp // TB,),
        in_specs=in_specs,
        out_specs=out_spec,
        scratch_shapes=[
            pltpu.VMEM((TC, TB, 4 * Hp), jnp.float32),
            pltpu.VMEM((y_len, TB, Hp), jnp.bfloat16),
        ],
        compiler_params=pltpu.CompilerParams(
            dimension_semantics=("parallel",),
            vmem_limit_bytes=vmem_limit),
    )(x_tm, *flat_w)
    return out[:B, :C]


# ----------------------------------------------------------------------------
# Parameters (PyTorch-style uniform init), logical packing:
#   * gate rows reordered from PyTorch [i, f, g, o] to [i, f, o, g]
#   * weights pre-transposed, biases b_ih + b_hh folded.
# ----------------------------------------------------------------------------
def _reorder_gates(w, H):
    return jnp.concatenate([w[:2 * H], w[3 * H:4 * H], w[2 * H:3 * H]], axis=0)


def init_params(key, input_size, hidden_size, num_layers, num_classes):
    H = hidden_size
    scale = 1.0 / jnp.sqrt(jnp.float32(H))
    lstm_params = []
    for layer in range(num_layers):
        d_in = input_size if layer == 0 else H
        key, k1, k2, k3, k4 = jax.random.split(key, 5)
        w_ih = jax.random.uniform(k1, (4 * H, d_in), jnp.float32, -scale, scale)
        w_hh = jax.random.uniform(k2, (4 * H, H), jnp.float32, -scale, scale)
        b_ih = jax.random.uniform(k3, (4 * H,), jnp.float32, -scale, scale)
        b_hh = jax.random.uniform(k4, (4 * H,), jnp.float32, -scale, scale)
        wih_t = _reorder_gates(w_ih, H).T            # (d_in, 4H)
        whh_t = _reorder_gates(w_hh, H).T            # (H, 4H)
        b = _reorder_gates(b_ih + b_hh, H)[None, :]  # (1, 4H)
        lstm_params.append((wih_t, whh_t, b))
    key, k5, k6 = jax.random.split(key, 3)
    fc_w = jax.random.uniform(k5, (num_classes, H), jnp.float32, -scale, scale)
    fc_b = jax.random.uniform(k6, (num_classes,), jnp.float32, -scale, scale)
    return {"lstm": lstm_params, "fc_w_t": fc_w.T, "fc_b": fc_b[None, :]}


# ----------------------------------------------------------------------------
# Kernel-side packing: lane-pad each gate H->Hp (mult of 128), pad the input /
# class dims, cast matmul weights to bf16 (biases stay f32).  Zero padding is
# exact: padded h/c lanes stay identically zero through the recurrence.
# ----------------------------------------------------------------------------
def pack_params(params, input_size, hidden_size):
    H = hidden_size
    Hp = _round_up(H, 128)
    Dp = _round_up(input_size, 128)
    C = params["fc_w_t"].shape[1]
    Cp = _round_up(C, 128)

    def pad_gate_cols(w):
        lead = w.shape[:-1]
        w4 = w.reshape(lead + (4, H))
        w4 = jnp.pad(w4, [(0, 0)] * len(lead) + [(0, 0), (0, Hp - H)])
        return w4.reshape(lead + (4 * Hp,))

    flat = []
    for li, (wih_t, whh_t, b) in enumerate(params["lstm"]):
        d_in = input_size if li == 0 else H
        d_in_p = Dp if li == 0 else Hp
        wih_p = jnp.pad(pad_gate_cols(wih_t), ((0, d_in_p - d_in), (0, 0)))
        whh_p = jnp.pad(pad_gate_cols(whh_t), ((0, Hp - H), (0, 0)))
        b_p = pad_gate_cols(b)
        flat += [wih_p.astype(jnp.bfloat16), whh_p.astype(jnp.bfloat16),
                 b_p.astype(jnp.float32)]
    fc_w = jnp.pad(params["fc_w_t"], ((0, Hp - H), (0, Cp - C)))
    fc_b = jnp.pad(params["fc_b"], ((0, 0), (0, Cp - C)))
    flat += [fc_w.astype(jnp.bfloat16), fc_b.astype(jnp.float32)]
    meta = dict(num_layers=len(params["lstm"]), H=H, Hp=Hp,
                D=input_size, Dp=Dp, C=C, Cp=Cp)
    return flat, meta


# ----------------------------------------------------------------------------
# Pure-JAX references (same logical packed params).
#   mimic_bf16=True reproduces the kernel's bf16-operand / f32-accumulate
#   matmuls so it can be compared tightly; mimic_bf16=False is full f32.
# ----------------------------------------------------------------------------
def rnnnet_reference(x, params, hidden_size, *, mimic_bf16=True):
    H = hidden_size
    if mimic_bf16:
        def mm(a, b):
            return jnp.dot(a.astype(jnp.bfloat16), b.astype(jnp.bfloat16),
                           preferred_element_type=jnp.float32)
    else:
        def mm(a, b):
            return jnp.dot(a.astype(jnp.float32), b.astype(jnp.float32),
                           precision=jax.lax.Precision.HIGHEST)

    B, S, _ = x.shape
    y = x.astype(jnp.float32)
    for (wih_t, whh_t, b) in params["lstm"]:
        h = jnp.zeros((B, H), jnp.float32)
        c = jnp.zeros((B, H), jnp.float32)
        ys = []
        for t in range(S):
            gates = mm(y[:, t, :], wih_t) + mm(h, whh_t) + b
            i_g = jax.nn.sigmoid(gates[:, 0 * H:1 * H])
            f_g = jax.nn.sigmoid(gates[:, 1 * H:2 * H])
            o_g = jax.nn.sigmoid(gates[:, 2 * H:3 * H])
            g_g = jnp.tanh(gates[:, 3 * H:4 * H])
            c = f_g * c + i_g * g_g
            h = o_g * jnp.tanh(c)
            ys.append(h)
        y = jnp.stack(ys, axis=1)
    return mm(y[:, -1, :], params["fc_w_t"]) + params["fc_b"]


if __name__ == "__main__":
    # Small shapes consistent with RNNNet(input_size, hidden_size, num_layers, ...)
    batch, seq, input_size, hidden_size, num_layers, num_classes = 4, 8, 16, 32, 2, 8

    key = jax.random.PRNGKey(0)
    key, kx = jax.random.split(key)
    x = jax.random.normal(kx, (batch, seq, input_size), jnp.float32)
    params = init_params(key, input_size, hidden_size, num_layers, num_classes)
    flat_w, meta = pack_params(params, input_size, hidden_size)

    out = rnnnet_forward(x, flat_w, meta)
    jax.block_until_ready(out)
    assert out.shape == (batch, num_classes), out.shape

    ref_bf16 = rnnnet_reference(x, params, hidden_size, mimic_bf16=True)
    ref_f32 = rnnnet_reference(x, params, hidden_size, mimic_bf16=False)
    err_bf16 = float(jnp.max(jnp.abs(out - ref_bf16)))
    err_f32 = float(jnp.max(jnp.abs(out - ref_f32)))
    assert err_bf16 < 5e-3, f"max abs err vs bf16-matched reference: {err_bf16}"
    assert err_f32 < 1e-1, f"max abs err vs f32 reference: {err_f32}"
    print("KERNEL_OK")
</pallas_src>

<mosaic_0001>
module attributes {stable_mosaic.version = 11 : i64} {
  func.func @_rnnnet_kernel(%arg0: i32, %arg1: memref<8x8x128xbf16, #tpu.memory_space<vmem>>, %arg2: memref<128x512xbf16, #tpu.memory_space<vmem>>, %arg3: memref<128x512xbf16, #tpu.memory_space<vmem>>, %arg4: memref<1x512xf32, #tpu.memory_space<vmem>>, %arg5: memref<128x512xbf16, #tpu.memory_space<vmem>>, %arg6: memref<128x512xbf16, #tpu.memory_space<vmem>>, %arg7: memref<1x512xf32, #tpu.memory_space<vmem>>, %arg8: memref<128x128xbf16, #tpu.memory_space<vmem>>, %arg9: memref<1x128xf32, #tpu.memory_space<vmem>>, %arg10: memref<8x128xf32, #tpu.memory_space<vmem>>, %arg11: memref<8x8x512xf32, #tpu.memory_space<vmem>>, %arg12: memref<8x8x128xbf16, #tpu.memory_space<vmem>>) attributes {dimension_semantics = [#tpu.dimension_semantics<parallel>], iteration_bounds = array<i64: 1>, scalar_prefetch = 0 : i64, scratch_operands = 2 : i64, tpu.core_type = #tpu.core_type<tc>, window_params = [{transform_indices = @transform_0, window_bounds = array<i64: 8, 8, 128>}, {pipeline_mode = #tpu.pipeline_mode<synchronous>, transform_indices = @transform_1, window_bounds = array<i64: 128, 512>}, {pipeline_mode = #tpu.pipeline_mode<synchronous>, transform_indices = @transform_2, window_bounds = array<i64: 128, 512>}, {pipeline_mode = #tpu.pipeline_mode<synchronous>, transform_indices = @transform_3, window_bounds = array<i64: 1, 512>}, {pipeline_mode = #tpu.pipeline_mode<synchronous>, transform_indices = @transform_4, window_bounds = array<i64: 128, 512>}, {pipeline_mode = #tpu.pipeline_mode<synchronous>, transform_indices = @transform_5, window_bounds = array<i64: 128, 512>}, {pipeline_mode = #tpu.pipeline_mode<synchronous>, transform_indices = @transform_6, window_bounds = array<i64: 1, 512>}, {pipeline_mode = #tpu.pipeline_mode<synchronous>, transform_indices = @transform_7, window_bounds = array<i64: 128, 128>}, {pipeline_mode = #tpu.pipeline_mode<synchronous>, transform_indices = @transform_8, window_bounds = array<i64: 1, 128>}, {transform_indices = @transform_9, window_bounds = array<i64: 8, 128>}]} {
    %c0 = arith.constant 0 : index
    %c0_0 = arith.constant 0 : index
    %0 = vector.load %arg4[%c0, %c0_0] : memref<1x512xf32, #tpu.memory_space<vmem>>, vector<1x512xf32>
    %cst = arith.constant 0.000000e+00 : f32
    %1 = vector.broadcast %cst : f32 to vector<8x128xf32>
    %cst_1 = arith.constant 0.000000e+00 : f32
    %2 = vector.broadcast %cst_1 : f32 to vector<8x128xf32>
    %c0_2 = arith.constant 0 : index
    %c0_3 = arith.constant 0 : index
    %c0_4 = arith.constant 0 : index
    %3 = vector.load %arg1[%c0_2, %c0_3, %c0_4] : memref<8x8x128xbf16, #tpu.memory_space<vmem>>, vector<8x8x128xbf16>
    %4 = vector.shape_cast %3 : vector<8x8x128xbf16> to vector<64x128xbf16>
    %c0_5 = arith.constant 0 : index
    %c0_6 = arith.constant 0 : index
    %5 = vector.load %arg2[%c0_5, %c0_6] : memref<128x512xbf16, #tpu.memory_space<vmem>>, vector<128x512xbf16>
    %cst_7 = arith.constant dense<0.000000e+00> : vector<64x512xf32>
    %6 = tpu.matmul %4, %5, %cst_7 {dimension_numbers = #tpu.dot_dimension_numbers<[1], [0], [0], [1], [0, 0, 1, 1], [], []>} : vector<64x128xbf16>, vector<128x512xbf16>, vector<64x512xf32> -> vector<64x512xf32>
    %7 = vector.broadcast %0 : vector<1x512xf32> to vector<64x512xf32>
    %8 = arith.addf %6, %7 : vector<64x512xf32>
    %9 = vector.shape_cast %8 : vector<64x512xf32> to vector<8x8x512xf32>
    %c0_8 = arith.constant 0 : index
    %c0_9 = arith.constant 0 : index
    %c0_10 = arith.constant 0 : index
    %10 = vector.load %arg11[%c0_8, %c0_9, %c0_10] : memref<8x8x512xf32, #tpu.memory_space<vmem>>, vector<8x8x512xf32>
    tpu.vector_store %arg11[%c0_8, %c0_9, %c0_10], %9 {strides = array<i32>} : memref<8x8x512xf32, #tpu.memory_space<vmem>>, vector<8x8x512xf32>,
    %c0_i32 = arith.constant 0 : i32
    %11 = arith.index_cast %c0_i32 : i32 to index
    %c0_11 = arith.constant 0 : index
    %c0_12 = arith.constant 0 : index
    %12 = vector.load %arg11[%11, %c0_11, %c0_12] : memref<8x8x512xf32, #tpu.memory_space<vmem>>, vector<1x8x512xf32>
    %13 = vector.shape_cast %12 : vector<1x8x512xf32> to vector<8x512xf32>
    %14 = arith.truncf %1 : vector<8x128xf32> to vector<8x128xbf16>
    %c0_13 = arith.constant 0 : index
    %c0_14 = arith.constant 0 : index
    %15 = vector.load %arg3[%c0_13, %c0_14] : memref<128x512xbf16, #tpu.memory_space<vmem>>, vector<128x512xbf16>
    %cst_15 = arith.constant dense<0.000000e+00> : vector<8x512xf32>
    %16 = tpu.matmul %14, %15, %cst_15 {dimension_numbers = #tpu.dot_dimension_numbers<[1], [0], [0], [1], [0, 0, 1, 1], [], []>} : vector<8x128xbf16>, vector<128x512xbf16>, vector<8x512xf32> -> vector<8x512xf32>
    %17 = arith.addf %13, %16 : vector<8x512xf32>
    %18 = vector.extract_strided_slice %17 {offsets = [0, 0], sizes = [8, 384], strides = [1, 1]} : vector<8x512xf32> to vector<8x384xf32>
    %19 = arith.negf %18 : vector<8x384xf32>
    %20 = math.exp %19 : vector<8x384xf32>
    %cst_16 = arith.constant 1.000000e+00 : f32
    %21 = vector.broadcast %cst_16 : f32 to vector<8x384xf32>
    %22 = arith.addf %21, %20 : vector<8x384xf32>
    %23 = arith.divf %21, %22 : vector<8x384xf32>
    %24 = vector.extract_strided_slice %17 {offsets = [0, 384], sizes = [8, 128], strides = [1, 1]} : vector<8x512xf32> to vector<8x128xf32>
    %25 = math.tanh %24 : vector<8x128xf32>
    %26 = vector.extract_strided_slice %23 {offsets = [0, 0], sizes = [8, 128], strides = [1, 1]} : vector<8x384xf32> to vector<8x128xf32>
    %27 = vector.extract_strided_slice %23 {offsets = [0, 128], sizes = [8, 128], strides = [1, 1]} : vector<8x384xf32> to vector<8x128xf32>
    %28 = vector.extract_strided_slice %23 {offsets = [0, 256], sizes = [8, 128], strides = [1, 1]} : vector<8x384xf32> to vector<8x128xf32>
    %29 = arith.mulf %27, %2 : vector<8x128xf32>
    %30 = arith.mulf %26, %25 : vector<8x128xf32>
    %31 = arith.addf %29, %30 : vector<8x128xf32>
    %32 = math.tanh %31 : vector<8x128xf32>
    %33 = arith.mulf %28, %32 : vector<8x128xf32>
    %34 = arith.truncf %33 : vector<8x128xf32> to vector<8x128xbf16>
    %c0_i32_17 = arith.constant 0 : i32
    %35 = arith.addi %c0_i32_17, %c0_i32 : i32
    %36 = arith.index_cast %35 : i32 to index
    %c0_18 = arith.constant 0 : index
    %c0_19 = arith.constant 0 : index
    %37 = vector.load %arg12[%36, %c0_18, %c0_19] : memref<8x8x128xbf16, #tpu.memory_space<vmem>>, vector<1x8x128xbf16>
    %38 = vector.shape_cast %37 : vector<1x8x128xbf16> to vector<8x128xbf16>
    %39 = vector.shape_cast %34 : vector<8x128xbf16> to vector<1x8x128xbf16>
    tpu.vector_store %arg12[%36, %c0_18, %c0_19], %39 {strides = array<i32>} : memref<8x8x128xbf16, #tpu.memory_space<vmem>>, vector<1x8x128xbf16>,
    %c1_i32 = arith.constant 1 : i32
    %40 = arith.index_cast %c1_i32 : i32 to index
    %c0_20 = arith.constant 0 : index
    %c0_21 = arith.constant 0 : index
    %41 = vector.load %arg11[%40, %c0_20, %c0_21] : memref<8x8x512xf32, #tpu.memory_space<vmem>>, vector<1x8x512xf32>
    %42 = vector.shape_cast %41 : vector<1x8x512xf32> to vector<8x512xf32>
    %43 = arith.truncf %33 : vector<8x128xf32> to vector<8x128xbf16>
    %c0_22 = arith.constant 0 : index
    %c0_23 = arith.constant 0 : index
    %44 = vector.load %arg3[%c0_22, %c0_23] : memref<128x512xbf16, #tpu.memory_space<vmem>>, vector<128x512xbf16>
    %cst_24 = arith.constant dense<0.000000e+00> : vector<8x512xf32>
    %45 = tpu.matmul %43, %44, %cst_24 {dimension_numbers = #tpu.dot_dimension_numbers<[1], [0], [0], [1], [0, 0, 1, 1], [], []>} : vector<8x128xbf16>, vector<128x512xbf16>, vector<8x512xf32> -> vector<8x512xf32>
    %46 = arith.addf %42, %45 : vector<8x512xf32>
    %47 = vector.extract_strided_slice %46 {offsets = [0, 0], sizes = [8, 384], strides = [1, 1]} : vector<8x512xf32> to vector<8x384xf32>
    %48 = arith.negf %47 : vector<8x384xf32>
    %49 = math.exp %48 : vector<8x384xf32>
    %cst_25 = arith.constant 1.000000e+00 : f32
    %50 = vector.broadcast %cst_25 : f32 to vector<8x384xf32>
    %51 = arith.addf %50, %49 : vector<8x384xf32>
    %52 = arith.divf %50, %51 : vector<8x384xf32>
    %53 = vector.extract_strided_slice %46 {offsets = [0, 384], sizes = [8, 128], strides = [1, 1]} : vector<8x512xf32> to vector<8x128xf32>
    %54 = math.tanh %53 : vector<8x128xf32>
    %55 = vector.extract_strided_slice %52 {offsets = [0, 0], sizes = [8, 128], strides = [1, 1]} : vector<8x384xf32> to vector<8x128xf32>
    %56 = vector.extract_strided_slice %52 {offsets = [0, 128], sizes = [8, 128], strides = [1, 1]} : vector<8x384xf32> to vector<8x128xf32>
    %57 = vector.extract_strided_slice %52 {offsets = [0, 256], sizes = [8, 128], strides = [1, 1]} : vector<8x384xf32> to vector<8x128xf32>
    %58 = arith.mulf %56, %31 : vector<8x128xf32>
    %59 = arith.mulf %55, %54 : vector<8x128xf32>
    %60 = arith.addf %58, %59 : vector<8x128xf32>
    %61 = math.tanh %60 : vector<8x128xf32>
    %62 = arith.mulf %57, %61 : vector<8x128xf32>
    %63 = arith.truncf %62 : vector<8x128xf32> to vector<8x128xbf16>
    %c0_i32_26 = arith.constant 0 : i32
    %64 = arith.addi %c0_i32_26, %c1_i32 : i32
    %65 = arith.index_cast %64 : i32 to index
    %c0_27 = arith.constant 0 : index
    %c0_28 = arith.constant 0 : index
    %66 = vector.load %arg12[%65, %c0_27, %c0_28] : memref<8x8x128xbf16, #tpu.memory_space<vmem>>, vector<1x8x128xbf16>
    %67 = vector.shape_cast %66 : vector<1x8x128xbf16> to vector<8x128xbf16>
    %68 = vector.shape_cast %63 : vector<8x128xbf16> to vector<1x8x128xbf16>
    tpu.vector_store %arg12[%65, %c0_27, %c0_28], %68 {strides = array<i32>} : memref<8x8x128xbf16, #tpu.memory_space<vmem>>, vector<1x8x128xbf16>,
    %c2_i32 = arith.constant 2 : i32
    %69 = arith.index_cast %c2_i32 : i32 to index
    %c0_29 = arith.constant 0 : index
    %c0_30 = arith.constant 0 : index
    %70 = vector.load %arg11[%69, %c0_29, %c0_30] : memref<8x8x512xf32, #tpu.memory_space<vmem>>, vector<1x8x512xf32>
    %71 = vector.shape_cast %70 : vector<1x8x512xf32> to vector<8x512xf32>
    %72 = arith.truncf %62 : vector<8x128xf32> to vector<8x128xbf16>
    %c0_31 = arith.constant 0 : index
    %c0_32 = arith.constant 0 : index
    %73 = vector.load %arg3[%c0_31, %c0_32] : memref<128x512xbf16, #tpu.memory_space<vmem>>, vector<128x512xbf16>
    %cst_33 = arith.constant dense<0.000000e+00> : vector<8x512xf32>
    %74 = tpu.matmul %72, %73, %cst_33 {dimension_numbers = #tpu.dot_dimension_numbers<[1], [0], [0], [1], [0, 0, 1, 1], [], []>} : vector<8x128xbf16>, vector<128x512xbf16>, vector<8x512xf32> -> vector<8x512xf32>
    %75 = arith.addf %71, %74 : vector<8x512xf32>
    %76 = vector.extract_strided_slice %75 {offsets = [0, 0], sizes = [8, 384], strides = [1, 1]} : vector<8x512xf32> to vector<8x384xf32>
    %77 = arith.negf %76 : vector<8x384xf32>
    %78 = math.exp %77 : vector<8x384xf32>
    %cst_34 = arith.constant 1.000000e+00 : f32
    %79 = vector.broadcast %cst_34 : f32 to vector<8x384xf32>
    %80 = arith.addf %79, %78 : vector<8x384xf32>
    %81 = arith.divf %79, %80 : vector<8x384xf32>
    %82 = vector.extract_strided_slice %75 {offsets = [0, 384], sizes = [8, 128], strides = [1, 1]} : vector<8x512xf32> to vector<8x128xf32>
    %83 = math.tanh %82 : vector<8x128xf32>
    %84 = vector.extract_strided_slice %81 {offsets = [0, 0], sizes = [8, 128], strides = [1, 1]} : vector<8x384xf32> to vector<8x128xf32>
    %85 = vector.extract_strided_slice %81 {offsets = [0, 128], sizes = [8, 128], strides = [1, 1]} : vector<8x384xf32> to vector<8x128xf32>
    %86 = vector.extract_strided_slice %81 {offsets = [0, 256], sizes = [8, 128], strides = [1, 1]} : vector<8x384xf32> to vector<8x128xf32>
    %87 = arith.mulf %85, %60 : vector<8x128xf32>
    %88 = arith.mulf %84, %83 : vector<8x128xf32>
    %89 = arith.addf %87, %88 : vector<8x128xf32>
    %90 = math.tanh %89 : vector<8x128xf32>
    %91 = arith.mulf %86, %90 : vector<8x128xf32>
    %92 = arith.truncf %91 : vector<8x128xf32> to vector<8x128xbf16>
    %c0_i32_35 = arith.constant 0 : i32
    %93 = arith.addi %c0_i32_35, %c2_i32 : i32
    %94 = arith.index_cast %93 : i32 to index
    %c0_36 = arith.constant 0 : index
    %c0_37 = arith.constant 0 : index
    %95 = vector.load %arg12[%94, %c0_36, %c0_37] : memref<8x8x128xbf16, #tpu.memory_space<vmem>>, vector<1x8x128xbf16>
    %96 = vector.shape_cast %95 : vector<1x8x128xbf16> to vector<8x128xbf16>
    %97 = vector.shape_cast %92 : vector<8x128xbf16> to vector<1x8x128xbf16>
    tpu.vector_store %arg12[%94, %c0_36, %c0_37], %97 {strides = array<i32>} : memref<8x8x128xbf16, #tpu.memory_space<vmem>>, vector<1x8x128xbf16>,
    %c3_i32 = arith.constant 3 : i32
    %98 = arith.index_cast %c3_i32 : i32 to index
    %c0_38 = arith.constant 0 : index
    %c0_39 = arith.constant 0 : index
    %99 = vector.load %arg11[%98, %c0_38, %c0_39] : memref<8x8x512xf32, #tpu.memory_space<vmem>>, vector<1x8x512xf32>
    %100 = vector.shape_cast %99 : vector<1x8x512xf32> to vector<8x512xf32>
    %101 = arith.truncf %91 : vector<8x128xf32> to vector<8x128xbf16>
    %c0_40 = arith.constant 0 : index
    %c0_41 = arith.constant 0 : index
    %102 = vector.load %arg3[%c0_40, %c0_41] : memref<128x512xbf16, #tpu.memory_space<vmem>>, vector<128x512xbf16>
    %cst_42 = arith.constant dense<0.000000e+00> : vector<8x512xf32>
    %103 = tpu.matmul %101, %102, %cst_42 {dimension_numbers = #tpu.dot_dimension_numbers<[1], [0], [0], [1], [0, 0, 1, 1], [], []>} : vector<8x128xbf16>, vector<128x512xbf16>, vector<8x512xf32> -> vector<8x512xf32>
    %104 = arith.addf %100, %103 : vector<8x512xf32>
    %105 = vector.extract_strided_slice %104 {offsets = [0, 0], sizes = [8, 384], strides = [1, 1]} : vector<8x512xf32> to vector<8x384xf32>
    %106 = arith.negf %105 : vector<8x384xf32>
    %107 = math.exp %106 : vector<8x384xf32>
    %cst_43 = arith.constant 1.000000e+00 : f32
    %108 = vector.broadcast %cst_43 : f32 to vector<8x384xf32>
    %109 = arith.addf %108, %107 : vector<8x384xf32>
    %110 = arith.divf %108, %109 : vector<8x384xf32>
    %111 = vector.extract_strided_slice %104 {offsets = [0, 384], sizes = [8, 128], strides = [1, 1]} : vector<8x512xf32> to vector<8x128xf32>
    %112 = math.tanh %111 : vector<8x128xf32>
    %113 = vector.extract_strided_slice %110 {offsets = [0, 0], sizes = [8, 128], strides = [1, 1]} : vector<8x384xf32> to vector<8x128xf32>
    %114 = vector.extract_strided_slice %110 {offsets = [0, 128], sizes = [8, 128], strides = [1, 1]} : vector<8x384xf32> to vector<8x128xf32>
    %115 = vector.extract_strided_slice %110 {offsets = [0, 256], sizes = [8, 128], strides = [1, 1]} : vector<8x384xf32> to vector<8x128xf32>
    %116 = arith.mulf %114, %89 : vector<8x128xf32>
    %117 = arith.mulf %113, %112 : vector<8x128xf32>
    %118 = arith.addf %116, %117 : vector<8x128xf32>
    %119 = math.tanh %118 : vector<8x128xf32>
    %120 = arith.mulf %115, %119 : vector<8x128xf32>
    %121 = arith.truncf %120 : vector<8x128xf32> to vector<8x128xbf16>
    %c0_i32_44 = arith.constant 0 : i32
    %122 = arith.addi %c0_i32_44, %c3_i32 : i32
    %123 = arith.index_cast %122 : i32 to index
    %c0_45 = arith.constant 0 : index
    %c0_46 = arith.constant 0 : index
    %124 = vector.load %arg12[%123, %c0_45, %c0_46] : memref<8x8x128xbf16, #tpu.memory_space<vmem>>, vector<1x8x128xbf16>
    %125 = vector.shape_cast %124 : vector<1x8x128xbf16> to vector<8x128xbf16>
    %126 = vector.shape_cast %121 : vector<8x128xbf16> to vector<1x8x128xbf16>
    tpu.vector_store %arg12[%123, %c0_45, %c0_46], %126 {strides = array<i32>} : memref<8x8x128xbf16, #tpu.memory_space<vmem>>, vector<1x8x128xbf16>,
    %c4_i32 = arith.constant 4 : i32
    %127 = arith.index_cast %c4_i32 : i32 to index
    %c0_47 = arith.constant 0 : index
    %c0_48 = arith.constant 0 : index
    %128 = vector.load %arg11[%127, %c0_47, %c0_48] : memref<8x8x512xf32, #tpu.memory_space<vmem>>, vector<1x8x512xf32>
    %129 = vector.shape_cast %128 : vector<1x8x512xf32> to vector<8x512xf32>
    %130 = arith.truncf %120 : vector<8x128xf32> to vector<8x128xbf16>
    %c0_49 = arith.constant 0 : index
    %c0_50 = arith.constant 0 : index
    %131 = vector.load %arg3[%c0_49, %c0_50] : memref<128x512xbf16, #tpu.memory_space<vmem>>, vector<128x512xbf16>
    %cst_51 = arith.constant dense<0.000000e+00> : vector<8x512xf32>
    %132 = tpu.matmul %130, %131, %cst_51 {dimension_numbers = #tpu.dot_dimension_numbers<[1], [0], [0], [1], [0, 0, 1, 1], [], []>} : vector<8x128xbf16>, vector<128x512xbf16>, vector<8x512xf32> -> vector<8x512xf32>
    %133 = arith.addf %129, %132 : vector<8x512xf32>
    %134 = vector.extract_strided_slice %133 {offsets = [0, 0], sizes = [8, 384], strides = [1, 1]} : vector<8x512xf32> to vector<8x384xf32>
    %135 = arith.negf %134 : vector<8x384xf32>
    %136 = math.exp %135 : vector<8x384xf32>
    %cst_52 = arith.constant 1.000000e+00 : f32
    %137 = vector.broadcast %cst_52 : f32 to vector<8x384xf32>
    %138 = arith.addf %137, %136 : vector<8x384xf32>
    %139 = arith.divf %137, %138 : vector<8x384xf32>
    %140 = vector.extract_strided_slice %133 {offsets = [0, 384], sizes = [8, 128], strides = [1, 1]} : vector<8x512xf32> to vector<8x128xf32>
    %141 = math.tanh %140 : vector<8x128xf32>
    %142 = vector.extract_strided_slice %139 {offsets = [0, 0], sizes = [8, 128], strides = [1, 1]} : vector<8x384xf32> to vector<8x128xf32>
    %143 = vector.extract_strided_slice %139 {offsets = [0, 128], sizes = [8, 128], strides = [1, 1]} : vector<8x384xf32> to vector<8x128xf32>
    %144 = vector.extract_strided_slice %139 {offsets = [0, 256], sizes = [8, 128], strides = [1, 1]} : vector<8x384xf32> to vector<8x128xf32>
    %145 = arith.mulf %143, %118 : vector<8x128xf32>
    %146 = arith.mulf %142, %141 : vector<8x128xf32>
    %147 = arith.addf %145, %146 : vector<8x128xf32>
    %148 = math.tanh %147 : vector<8x128xf32>
    %149 = arith.mulf %144, %148 : vector<8x128xf32>
    %150 = arith.truncf %149 : vector<8x128xf32> to vector<8x128xbf16>
    %c0_i32_53 = arith.constant 0 : i32
    %151 = arith.addi %c0_i32_53, %c4_i32 : i32
    %152 = arith.index_cast %151 : i32 to index
    %c0_54 = arith.constant 0 : index
    %c0_55 = arith.constant 0 : index
    %153 = vector.load %arg12[%152, %c0_54, %c0_55] : memref<8x8x128xbf16, #tpu.memory_space<vmem>>, vector<1x8x128xbf16>
    %154 = vector.shape_cast %153 : vector<1x8x128xbf16> to vector<8x128xbf16>
    %155 = vector.shape_cast %150 : vector<8x128xbf16> to vector<1x8x128xbf16>
    tpu.vector_store %arg12[%152, %c0_54, %c0_55], %155 {strides = array<i32>} : memref<8x8x128xbf16, #tpu.memory_space<vmem>>, vector<1x8x128xbf16>,
    %c5_i32 = arith.constant 5 : i32
    %156 = arith.index_cast %c5_i32 : i32 to index
    %c0_56 = arith.constant 0 : index
    %c0_57 = arith.constant 0 : index
    %157 = vector.load %arg11[%156, %c0_56, %c0_57] : memref<8x8x512xf32, #tpu.memory_space<vmem>>, vector<1x8x512xf32>
    %158 = vector.shape_cast %157 : vector<1x8x512xf32> to vector<8x512xf32>
    %159 = arith.truncf %149 : vector<8x128xf32> to vector<8x128xbf16>
    %c0_58 = arith.constant 0 : index
    %c0_59 = arith.constant 0 : index
    %160 = vector.load %arg3[%c0_58, %c0_59] : memref<128x512xbf16, #tpu.memory_space<vmem>>, vector<128x512xbf16>
    %cst_60 = arith.constant dense<0.000000e+00> : vector<8x512xf32>
    %161 = tpu.matmul %159, %160, %cst_60 {dimension_numbers = #tpu.dot_dimension_numbers<[1], [0], [0], [1], [0, 0, 1, 1], [], []>} : vector<8x128xbf16>, vector<128x512xbf16>, vector<8x512xf32> -> vector<8x512xf32>
    %162 = arith.addf %158, %161 : vector<8x512xf32>
    %163 = vector.extract_strided_slice %162 {offsets = [0, 0], sizes = [8, 384], strides = [1, 1]} : vector<8x512xf32> to vector<8x384xf32>
    %164 = arith.negf %163 : vector<8x384xf32>
    %165 = math.exp %164 : vector<8x384xf32>
    %cst_61 = arith.constant 1.000000e+00 : f32
    %166 = vector.broadcast %cst_61 : f32 to vector<8x384xf32>
    %167 = arith.addf %166, %165 : vector<8x384xf32>
    %168 = arith.divf %166, %167 : vector<8x384xf32>
    %169 = vector.extract_strided_slice %162 {offsets = [0, 384], sizes = [8, 128], strides = [1, 1]} : vector<8x512xf32> to vector<8x128xf32>
    %170 = math.tanh %169 : vector<8x128xf32>
    %171 = vector.extract_strided_slice %168 {offsets = [0, 0], sizes = [8, 128], strides = [1, 1]} : vector<8x384xf32> to vector<8x128xf32>
    %172 = vector.extract_strided_slice %168 {offsets = [0, 128], sizes = [8, 128], strides = [1, 1]} : vector<8x384xf32> to vector<8x128xf32>
    %173 = vector.extract_strided_slice %168 {offsets = [0, 256], sizes = [8, 128], strides = [1, 1]} : vector<8x384xf32> to vector<8x128xf32>
    %174 = arith.mulf %172, %147 : vector<8x128xf32>
    %175 = arith.mulf %171, %170 : vector<8x128xf32>
    %176 = arith.addf %174, %175 : vector<8x128xf32>
    %177 = math.tanh %176 : vector<8x128xf32>
    %178 = arith.mulf %173, %177 : vector<8x128xf32>
    %179 = arith.truncf %178 : vector<8x128xf32> to vector<8x128xbf16>
    %c0_i32_62 = arith.constant 0 : i32
    %180 = arith.addi %c0_i32_62, %c5_i32 : i32
    %181 = arith.index_cast %180 : i32 to index
    %c0_63 = arith.constant 0 : index
    %c0_64 = arith.constant 0 : index
    %182 = vector.load %arg12[%181, %c0_63, %c0_64] : memref<8x8x128xbf16, #tpu.memory_space<vmem>>, vector<1x8x128xbf16>
    %183 = vector.shape_cast %182 : vector<1x8x128xbf16> to vector<8x128xbf16>
    %184 = vector.shape_cast %179 : vector<8x128xbf16> to vector<1x8x128xbf16>
    tpu.vector_store %arg12[%181, %c0_63, %c0_64], %184 {strides = array<i32>} : memref<8x8x128xbf16, #tpu.memory_space<vmem>>, vector<1x8x128xbf16>,
    %c6_i32 = arith.constant 6 : i32
    %185 = arith.index_cast %c6_i32 : i32 to index
    %c0_65 = arith.constant 0 : index
    %c0_66 = arith.constant 0 : index
    %186 = vector.load %arg11[%185, %c0_65, %c0_66] : memref<8x8x512xf32, #tpu.memory_space<vmem>>, vector<1x8x512xf32>
    %187 = vector.shape_cast %186 : vector<1x8x512xf32> to vector<8x512xf32>
    %188 = arith.truncf %178 : vector<8x128xf32> to vector<8x128xbf16>
    %c0_67 = arith.constant 0 : index
    %c0_68 = arith.constant 0 : index
    %189 = vector.load %arg3[%c0_67, %c0_68] : memref<128x512xbf16, #tpu.memory_space<vmem>>, vector<128x512xbf16>
    %cst_69 = arith.constant dense<0.000000e+00> : vector<8x512xf32>
    %190 = tpu.matmul %188, %189, %cst_69 {dimension_numbers = #tpu.dot_dimension_numbers<[1], [0], [0], [1], [0, 0, 1, 1], [], []>} : vector<8x128xbf16>, vector<128x512xbf16>, vector<8x512xf32> -> vector<8x512xf32>
    %191 = arith.addf %187, %190 : vector<8x512xf32>
    %192 = vector.extract_strided_slice %191 {offsets = [0, 0], sizes = [8, 384], strides = [1, 1]} : vector<8x512xf32> to vector<8x384xf32>
    %193 = arith.negf %192 : vector<8x384xf32>
    %194 = math.exp %193 : vector<8x384xf32>
    %cst_70 = arith.constant 1.000000e+00 : f32
    %195 = vector.broadcast %cst_70 : f32 to vector<8x384xf32>
    %196 = arith.addf %195, %194 : vector<8x384xf32>
    %197 = arith.divf %195, %196 : vector<8x384xf32>
    %198 = vector.extract_strided_slice %191 {offsets = [0, 384], sizes = [8, 128], strides = [1, 1]} : vector<8x512xf32> to vector<8x128xf32>
    %199 = math.tanh %198 : vector<8x128xf32>
    %200 = vector.extract_strided_slice %197 {offsets = [0, 0], sizes = [8, 128], strides = [1, 1]} : vector<8x384xf32> to vector<8x128xf32>
    %201 = vector.extract_strided_slice %197 {offsets = [0, 128], sizes = [8, 128], strides = [1, 1]} : vector<8x384xf32> to vector<8x128xf32>
    %202 = vector.extract_strided_slice %197 {offsets = [0, 256], sizes = [8, 128], strides = [1, 1]} : vector<8x384xf32> to vector<8x128xf32>
    %203 = arith.mulf %201, %176 : vector<8x128xf32>
    %204 = arith.mulf %200, %199 : vector<8x128xf32>
    %205 = arith.addf %203, %204 : vector<8x128xf32>
    %206 = math.tanh %205 : vector<8x128xf32>
    %207 = arith.mulf %202, %206 : vector<8x128xf32>
    %208 = arith.truncf %207 : vector<8x128xf32> to vector<8x128xbf16>
    %c0_i32_71 = arith.constant 0 : i32
    %209 = arith.addi %c0_i32_71, %c6_i32 : i32
    %210 = arith.index_cast %209 : i32 to index
    %c0_72 = arith.constant 0 : index
    %c0_73 = arith.constant 0 : index
    %211 = vector.load %arg12[%210, %c0_72, %c0_73] : memref<8x8x128xbf16, #tpu.memory_space<vmem>>, vector<1x8x128xbf16>
    %212 = vector.shape_cast %211 : vector<1x8x128xbf16> to vector<8x128xbf16>
    %213 = vector.shape_cast %208 : vector<8x128xbf16> to vector<1x8x128xbf16>
    tpu.vector_store %arg12[%210, %c0_72, %c0_73], %213 {strides = array<i32>} : memref<8x8x128xbf16, #tpu.memory_space<vmem>>, vector<1x8x128xbf16>,
    %c7_i32 = arith.constant 7 : i32
    %214 = arith.index_cast %c7_i32 : i32 to index
    %c0_74 = arith.constant 0 : index
    %c0_75 = arith.constant 0 : index
    %215 = vector.load %arg11[%214, %c0_74, %c0_75] : memref<8x8x512xf32, #tpu.memory_space<vmem>>, vector<1x8x512xf32>
    %216 = vector.shape_cast %215 : vector<1x8x512xf32> to vector<8x512xf32>
    %217 = arith.truncf %207 : vector<8x128xf32> to vector<8x128xbf16>
    %c0_76 = arith.constant 0 : index
    %c0_77 = arith.constant 0 : index
    %218 = vector.load %arg3[%c0_76, %c0_77] : memref<128x512xbf16, #tpu.memory_space<vmem>>, vector<128x512xbf16>
    %cst_78 = arith.constant dense<0.000000e+00> : vector<8x512xf32>
    %219 = tpu.matmul %217, %218, %cst_78 {dimension_numbers = #tpu.dot_dimension_numbers<[1], [0], [0], [1], [0, 0, 1, 1], [], []>} : vector<8x128xbf16>, vector<128x512xbf16>, vector<8x512xf32> -> vector<8x512xf32>
    %220 = arith.addf %216, %219 : vector<8x512xf32>
    %221 = vector.extract_strided_slice %220 {offsets = [0, 0], sizes = [8, 384], strides = [1, 1]} : vector<8x512xf32> to vector<8x384xf32>
    %222 = arith.negf %221 : vector<8x384xf32>
    %223 = math.exp %222 : vector<8x384xf32>
    %cst_79 = arith.constant 1.000000e+00 : f32
    %224 = vector.broadcast %cst_79 : f32 to vector<8x384xf32>
    %225 = arith.addf %224, %223 : vector<8x384xf32>
    %226 = arith.divf %224, %225 : vector<8x384xf32>
    %227 = vector.extract_strided_slice %220 {offsets = [0, 384], sizes = [8, 128], strides = [1, 1]} : vector<8x512xf32> to vector<8x128xf32>
    %228 = math.tanh %227 : vector<8x128xf32>
    %229 = vector.extract_strided_slice %226 {offsets = [0, 0], sizes = [8, 128], strides = [1, 1]} : vector<8x384xf32> to vector<8x128xf32>
    %230 = vector.extract_strided_slice %226 {offsets = [0, 128], sizes = [8, 128], strides = [1, 1]} : vector<8x384xf32> to vector<8x128xf32>
    %231 = vector.extract_strided_slice %226 {offsets = [0, 256], sizes = [8, 128], strides = [1, 1]} : vector<8x384xf32> to vector<8x128xf32>
    %232 = arith.mulf %230, %205 : vector<8x128xf32>
    %233 = arith.mulf %229, %228 : vector<8x128xf32>
    %234 = arith.addf %232, %233 : vector<8x128xf32>
    %235 = math.tanh %234 : vector<8x128xf32>
    %236 = arith.mulf %231, %235 : vector<8x128xf32>
    %237 = arith.truncf %236 : vector<8x128xf32> to vector<8x128xbf16>
    %c0_i32_80 = arith.constant 0 : i32
    %238 = arith.addi %c0_i32_80, %c7_i32 : i32
    %239 = arith.index_cast %238 : i32 to index
    %c0_81 = arith.constant 0 : index
    %c0_82 = arith.constant 0 : index
    %240 = vector.load %arg12[%239, %c0_81, %c0_82] : memref<8x8x128xbf16, #tpu.memory_space<vmem>>, vector<1x8x128xbf16>
    %241 = vector.shape_cast %240 : vector<1x8x128xbf16> to vector<8x128xbf16>
    %242 = vector.shape_cast %237 : vector<8x128xbf16> to vector<1x8x128xbf16>
    tpu.vector_store %arg12[%239, %c0_81, %c0_82], %242 {strides = array<i32>} : memref<8x8x128xbf16, #tpu.memory_space<vmem>>, vector<1x8x128xbf16>,
    %c8_i32 = arith.constant 8 : i32
    %c0_83 = arith.constant 0 : index
    %c0_84 = arith.constant 0 : index
    %243 = vector.load %arg7[%c0_83, %c0_84] : memref<1x512xf32, #tpu.memory_space<vmem>>, vector<1x512xf32>
    %cst_85 = arith.constant 0.000000e+00 : f32
    %244 = vector.broadcast %cst_85 : f32 to vector<8x128xf32>
    %cst_86 = arith.constant 0.000000e+00 : f32
    %245 = vector.broadcast %cst_86 : f32 to vector<8x128xf32>
    %c0_87 = arith.constant 0 : index
    %c0_88 = arith.constant 0 : index
    %c0_89 = arith.constant 0 : index
    %246 = vector.load %arg12[%c0_87, %c0_88, %c0_89] : memref<8x8x128xbf16, #tpu.memory_space<vmem>>, vector<8x8x128xbf16>
    %247 = vector.shape_cast %246 : vector<8x8x128xbf16> to vector<64x128xbf16>
    %c0_90 = arith.constant 0 : index
    %c0_91 = arith.constant 0 : index
    %248 = vector.load %arg5[%c0_90, %c0_91] : memref<128x512xbf16, #tpu.memory_space<vmem>>, vector<128x512xbf16>
    %cst_92 = arith.constant dense<0.000000e+00> : vector<64x512xf32>
    %249 = tpu.matmul %247, %248, %cst_92 {dimension_numbers = #tpu.dot_dimension_numbers<[1], [0], [0], [1], [0, 0, 1, 1], [], []>} : vector<64x128xbf16>, vector<128x512xbf16>, vector<64x512xf32> -> vector<64x512xf32>
    %250 = vector.broadcast %243 : vector<1x512xf32> to vector<64x512xf32>
    %251 = arith.addf %249, %250 : vector<64x512xf32>
    %252 = vector.shape_cast %251 : vector<64x512xf32> to vector<8x8x512xf32>
    %c0_93 = arith.constant 0 : index
    %c0_94 = arith.constant 0 : index
    %c0_95 = arith.constant 0 : index
    %253 = vector.load %arg11[%c0_93, %c0_94, %c0_95] : memref<8x8x512xf32, #tpu.memory_space<vmem>>, vector<8x8x512xf32>
    tpu.vector_store %arg11[%c0_93, %c0_94, %c0_95], %252 {strides = array<i32>} : memref<8x8x512xf32, #tpu.memory_space<vmem>>, vector<8x8x512xf32>,
    %c0_i32_96 = arith.constant 0 : i32
    %254 = arith.index_cast %c0_i32_96 : i32 to index
    %c0_97 = arith.constant 0 : index
    %c0_98 = arith.constant 0 : index
    %255 = vector.load %arg11[%254, %c0_97, %c0_98] : memref<8x8x512xf32, #tpu.memory_space<vmem>>, vector<1x8x512xf32>
    %256 = vector.shape_cast %255 : vector<1x8x512xf32> to vector<8x512xf32>
    %257 = arith.truncf %244 : vector<8x128xf32> to vector<8x128xbf16>
    %c0_99 = arith.constant 0 : index
    %c0_100 = arith.constant 0 : index
    %258 = vector.load %arg6[%c0_99, %c0_100] : memref<128x512xbf16, #tpu.memory_space<vmem>>, vector<128x512xbf16>
    %cst_101 = arith.constant dense<0.000000e+00> : vector<8x512xf32>
    %259 = tpu.matmul %257, %258, %cst_101 {dimension_numbers = #tpu.dot_dimension_numbers<[1], [0], [0], [1], [0, 0, 1, 1], [], []>} : vector<8x128xbf16>, vector<128x512xbf16>, vector<8x512xf32> -> vector<8x512xf32>
    %260 = arith.addf %256, %259 : vector<8x512xf32>
    %261 = vector.extract_strided_slice %260 {offsets = [0, 0], sizes = [8, 384], strides = [1, 1]} : vector<8x512xf32> to vector<8x384xf32>
    %262 = arith.negf %261 : vector<8x384xf32>
    %263 = math.exp %262 : vector<8x384xf32>
    %cst_102 = arith.constant 1.000000e+00 : f32
    %264 = vector.broadcast %cst_102 : f32 to vector<8x384xf32>
    %265 = arith.addf %264, %263 : vector<8x384xf32>
    %266 = arith.divf %264, %265 : vector<8x384xf32>
    %267 = vector.extract_strided_slice %260 {offsets = [0, 384], sizes = [8, 128], strides = [1, 1]} : vector<8x512xf32> to vector<8x128xf32>
    %268 = math.tanh %267 : vector<8x128xf32>
    %269 = vector.extract_strided_slice %266 {offsets = [0, 0], sizes = [8, 128], strides = [1, 1]} : vector<8x384xf32> to vector<8x128xf32>
    %270 = vector.extract_strided_slice %266 {offsets = [0, 128], sizes = [8, 128], strides = [1, 1]} : vector<8x384xf32> to vector<8x128xf32>
    %271 = vector.extract_strided_slice %266 {offsets = [0, 256], sizes = [8, 128], strides = [1, 1]} : vector<8x384xf32> to vector<8x128xf32>
    %272 = arith.mulf %270, %245 : vector<8x128xf32>
    %273 = arith.mulf %269, %268 : vector<8x128xf32>
    %274 = arith.addf %272, %273 : vector<8x128xf32>
    %275 = math.tanh %274 : vector<8x128xf32>
    %276 = arith.mulf %271, %275 : vector<8x128xf32>
    %c1_i32_103 = arith.constant 1 : i32
    %277 = arith.index_cast %c1_i32_103 : i32 to index
    %c0_104 = arith.constant 0 : index
    %c0_105 = arith.constant 0 : index
    %278 = vector.load %arg11[%277, %c0_104, %c0_105] : memref<8x8x512xf32, #tpu.memory_space<vmem>>, vector<1x8x512xf32>
    %279 = vector.shape_cast %278 : vector<1x8x512xf32> to vector<8x512xf32>
    %280 = arith.truncf %276 : vector<8x128xf32> to vector<8x128xbf16>
    %c0_106 = arith.constant 0 : index
    %c0_107 = arith.constant 0 : index
    %281 = vector.load %arg6[%c0_106, %c0_107] : memref<128x512xbf16, #tpu.memory_space<vmem>>, vector<128x512xbf16>
    %cst_108 = arith.constant dense<0.000000e+00> : vector<8x512xf32>
    %282 = tpu.matmul %280, %281, %cst_108 {dimension_numbers = #tpu.dot_dimension_numbers<[1], [0], [0], [1], [0, 0, 1, 1], [], []>} : vector<8x128xbf16>, vector<128x512xbf16>, vector<8x512xf32> -> vector<8x512xf32>
    %283 = arith.addf %279, %282 : vector<8x512xf32>
    %284 = vector.extract_strided_slice %283 {offsets = [0, 0], sizes = [8, 384], strides = [1, 1]} : vector<8x512xf32> to vector<8x384xf32>
    %285 = arith.negf %284 : vector<8x384xf32>
    %286 = math.exp %285 : vector<8x384xf32>
    %cst_109 = arith.constant 1.000000e+00 : f32
    %287 = vector.broadcast %cst_109 : f32 to vector<8x384xf32>
    %288 = arith.addf %287, %286 : vector<8x384xf32>
    %289 = arith.divf %287, %288 : vector<8x384xf32>
    %290 = vector.extract_strided_slice %283 {offsets = [0, 384], sizes = [8, 128], strides = [1, 1]} : vector<8x512xf32> to vector<8x128xf32>
    %291 = math.tanh %290 : vector<8x128xf32>
    %292 = vector.extract_strided_slice %289 {offsets = [0, 0], sizes = [8, 128], strides = [1, 1]} : vector<8x384xf32> to vector<8x128xf32>
    %293 = vector.extract_strided_slice %289 {offsets = [0, 128], sizes = [8, 128], strides = [1, 1]} : vector<8x384xf32> to vector<8x128xf32>
    %294 = vector.extract_strided_slice %289 {offsets = [0, 256], sizes = [8, 128], strides = [1, 1]} : vector<8x384xf32> to vector<8x128xf32>
    %295 = arith.mulf %293, %274 : vector<8x128xf32>
    %296 = arith.mulf %292, %291 : vector<8x128xf32>
    %297 = arith.addf %295, %296 : vector<8x128xf32>
    %298 = math.tanh %297 : vector<8x128xf32>
    %299 = arith.mulf %294, %298 : vector<8x128xf32>
    %c2_i32_110 = arith.constant 2 : i32
    %300 = arith.index_cast %c2_i32_110 : i32 to index
    %c0_111 = arith.constant 0 : index
    %c0_112 = arith.constant 0 : index
    %301 = vector.load %arg11[%300, %c0_111, %c0_112] : memref<8x8x512xf32, #tpu.memory_space<vmem>>, vector<1x8x512xf32>
    %302 = vector.shape_cast %301 : vector<1x8x512xf32> to vector<8x512xf32>
    %303 = arith.truncf %299 : vector<8x128xf32> to vector<8x128xbf16>
    %c0_113 = arith.constant 0 : index
    %c0_114 = arith.constant 0 : index
    %304 = vector.load %arg6[%c0_113, %c0_114] : memref<128x512xbf16, #tpu.memory_space<vmem>>, vector<128x512xbf16>
    %cst_115 = arith.constant dense<0.000000e+00> : vector<8x512xf32>
    %305 = tpu.matmul %303, %304, %cst_115 {dimension_numbers = #tpu.dot_dimension_numbers<[1], [0], [0], [1], [0, 0, 1, 1], [], []>} : vector<8x128xbf16>, vector<128x512xbf16>, vector<8x512xf32> -> vector<8x512xf32>
    %306 = arith.addf %302, %305 : vector<8x512xf32>
    %307 = vector.extract_strided_slice %306 {offsets = [0, 0], sizes = [8, 384], strides = [1, 1]} : vector<8x512xf32> to vector<8x384xf32>
    %308 = arith.negf %307 : vector<8x384xf32>
    %309 = math.exp %308 : vector<8x384xf32>
    %cst_116 = arith.constant 1.000000e+00 : f32
    %310 = vector.broadcast %cst_116 : f32 to vector<8x384xf32>
    %311 = arith.addf %310, %309 : vector<8x384xf32>
    %312 = arith.divf %310, %311 : vector<8x384xf32>
    %313 = vector.extract_strided_slice %306 {offsets = [0, 384], sizes = [8, 128], strides = [1, 1]} : vector<8x512xf32> to vector<8x128xf32>
    %314 = math.tanh %313 : vector<8x128xf32>
    %315 = vector.extract_strided_slice %312 {offsets = [0, 0], sizes = [8, 128], strides = [1, 1]} : vector<8x384xf32> to vector<8x128xf32>
    %316 = vector.extract_strided_slice %312 {offsets = [0, 128], sizes = [8, 128], strides = [1, 1]} : vector<8x384xf32> to vector<8x128xf32>
    %317 = vector.extract_strided_slice %312 {offsets = [0, 256], sizes = [8, 128], strides = [1, 1]} : vector<8x384xf32> to vector<8x128xf32>
    %318 = arith.mulf %316, %297 : vector<8x128xf32>
    %319 = arith.mulf %315, %314 : vector<8x128xf32>
    %320 = arith.addf %318, %319 : vector<8x128xf32>
    %321 = math.tanh %320 : vector<8x128xf32>
    %322 = arith.mulf %317, %321 : vector<8x128xf32>
    %c3_i32_117 = arith.constant 3 : i32
    %323 = arith.index_cast %c3_i32_117 : i32 to index
    %c0_118 = arith.constant 0 : index
    %c0_119 = arith.constant 0 : index
    %324 = vector.load %arg11[%323, %c0_118, %c0_119] : memref<8x8x512xf32, #tpu.memory_space<vmem>>, vector<1x8x512xf32>
    %325 = vector.shape_cast %324 : vector<1x8x512xf32> to vector<8x512xf32>
    %326 = arith.truncf %322 : vector<8x128xf32> to vector<8x128xbf16>
    %c0_120 = arith.constant 0 : index
    %c0_121 = arith.constant 0 : index
    %327 = vector.load %arg6[%c0_120, %c0_121] : memref<128x512xbf16, #tpu.memory_space<vmem>>, vector<128x512xbf16>
    %cst_122 = arith.constant dense<0.000000e+00> : vector<8x512xf32>
    %328 = tpu.matmul %326, %327, %cst_122 {dimension_numbers = #tpu.dot_dimension_numbers<[1], [0], [0], [1], [0, 0, 1, 1], [], []>} : vector<8x128xbf16>, vector<128x512xbf16>, vector<8x512xf32> -> vector<8x512xf32>
    %329 = arith.addf %325, %328 : vector<8x512xf32>
    %330 = vector.extract_strided_slice %329 {offsets = [0, 0], sizes = [8, 384], strides = [1, 1]} : vector<8x512xf32> to vector<8x384xf32>
    %331 = arith.negf %330 : vector<8x384xf32>
    %332 = math.exp %331 : vector<8x384xf32>
    %cst_123 = arith.constant 1.000000e+00 : f32
    %333 = vector.broadcast %cst_123 : f32 to vector<8x384xf32>
    %334 = arith.addf %333, %332 : vector<8x384xf32>
    %335 = arith.divf %333, %334 : vector<8x384xf32>
    %336 = vector.extract_strided_slice %329 {offsets = [0, 384], sizes = [8, 128], strides = [1, 1]} : vector<8x512xf32> to vector<8x128xf32>
    %337 = math.tanh %336 : vector<8x128xf32>
    %338 = vector.extract_strided_slice %335 {offsets = [0, 0], sizes = [8, 128], strides = [1, 1]} : vector<8x384xf32> to vector<8x128xf32>
    %339 = vector.extract_strided_slice %335 {offsets = [0, 128], sizes = [8, 128], strides = [1, 1]} : vector<8x384xf32> to vector<8x128xf32>
    %340 = vector.extract_strided_slice %335 {offsets = [0, 256], sizes = [8, 128], strides = [1, 1]} : vector<8x384xf32> to vector<8x128xf32>
    %341 = arith.mulf %339, %320 : vector<8x128xf32>
    %342 = arith.mulf %338, %337 : vector<8x128xf32>
    %343 = arith.addf %341, %342 : vector<8x128xf32>
    %344 = math.tanh %343 : vector<8x128xf32>
    %345 = arith.mulf %340, %344 : vector<8x128xf32>
    %c4_i32_124 = arith.constant 4 : i32
    %346 = arith.index_cast %c4_i32_124 : i32 to index
    %c0_125 = arith.constant 0 : index
    %c0_126 = arith.constant 0 : index
    %347 = vector.load %arg11[%346, %c0_125, %c0_126] : memref<8x8x512xf32, #tpu.memory_space<vmem>>, vector<1x8x512xf32>
    %348 = vector.shape_cast %347 : vector<1x8x512xf32> to vector<8x512xf32>
    %349 = arith.truncf %345 : vector<8x128xf32> to vector<8x128xbf16>
    %c0_127 = arith.constant 0 : index
    %c0_128 = arith.constant 0 : index
    %350 = vector.load %arg6[%c0_127, %c0_128] : memref<128x512xbf16, #tpu.memory_space<vmem>>, vector<128x512xbf16>
    %cst_129 = arith.constant dense<0.000000e+00> : vector<8x512xf32>
    %351 = tpu.matmul %349, %350, %cst_129 {dimension_numbers = #tpu.dot_dimension_numbers<[1], [0], [0], [1], [0, 0, 1, 1], [], []>} : vector<8x128xbf16>, vector<128x512xbf16>, vector<8x512xf32> -> vector<8x512xf32>
    %352 = arith.addf %348, %351 : vector<8x512xf32>
    %353 = vector.extract_strided_slice %352 {offsets = [0, 0], sizes = [8, 384], strides = [1, 1]} : vector<8x512xf32> to vector<8x384xf32>
    %354 = arith.negf %353 : vector<8x384xf32>
    %355 = math.exp %354 : vector<8x384xf32>
    %cst_130 = arith.constant 1.000000e+00 : f32
    %356 = vector.broadcast %cst_130 : f32 to vector<8x384xf32>
    %357 = arith.addf %356, %355 : vector<8x384xf32>
    %358 = arith.divf %356, %357 : vector<8x384xf32>
    %359 = vector.extract_strided_slice %352 {offsets = [0, 384], sizes = [8, 128], strides = [1, 1]} : vector<8x512xf32> to vector<8x128xf32>
    %360 = math.tanh %359 : vector<8x128xf32>
    %361 = vector.extract_strided_slice %358 {offsets = [0, 0], sizes = [8, 128], strides = [1, 1]} : vector<8x384xf32> to vector<8x128xf32>
    %362 = vector.extract_strided_slice %358 {offsets = [0, 128], sizes = [8, 128], strides = [1, 1]} : vector<8x384xf32> to vector<8x128xf32>
    %363 = vector.extract_strided_slice %358 {offsets = [0, 256], sizes = [8, 128], strides = [1, 1]} : vector<8x384xf32> to vector<8x128xf32>
    %364 = arith.mulf %362, %343 : vector<8x128xf32>
    %365 = arith.mulf %361, %360 : vector<8x128xf32>
    %366 = arith.addf %364, %365 : vector<8x128xf32>
    %367 = math.tanh %366 : vector<8x128xf32>
    %368 = arith.mulf %363, %367 : vector<8x128xf32>
    %c5_i32_131 = arith.constant 5 : i32
    %369 = arith.index_cast %c5_i32_131 : i32 to index
    %c0_132 = arith.constant 0 : index
    %c0_133 = arith.constant 0 : index
    %370 = vector.load %arg11[%369, %c0_132, %c0_133] : memref<8x8x512xf32, #tpu.memory_space<vmem>>, vector<1x8x512xf32>
    %371 = vector.shape_cast %370 : vector<1x8x512xf32> to vector<8x512xf32>
    %372 = arith.truncf %368 : vector<8x128xf32> to vector<8x128xbf16>
    %c0_134 = arith.constant 0 : index
    %c0_135 = arith.constant 0 : index
    %373 = vector.load %arg6[%c0_134, %c0_135] : memref<128x512xbf16, #tpu.memory_space<vmem>>, vector<128x512xbf16>
    %cst_136 = arith.constant dense<0.000000e+00> : vector<8x512xf32>
    %374 = tpu.matmul %372, %373, %cst_136 {dimension_numbers = #tpu.dot_dimension_numbers<[1], [0], [0], [1], [0, 0, 1, 1], [], []>} : vector<8x128xbf16>, vector<128x512xbf16>, vector<8x512xf32> -> vector<8x512xf32>
    %375 = arith.addf %371, %374 : vector<8x512xf32>
    %376 = vector.extract_strided_slice %375 {offsets = [0, 0], sizes = [8, 384], strides = [1, 1]} : vector<8x512xf32> to vector<8x384xf32>
    %377 = arith.negf %376 : vector<8x384xf32>
    %378 = math.exp %377 : vector<8x384xf32>
    %cst_137 = arith.constant 1.000000e+00 : f32
    %379 = vector.broadcast %cst_137 : f32 to vector<8x384xf32>
    %380 = arith.addf %379, %378 : vector<8x384xf32>
    %381 = arith.divf %379, %380 : vector<8x384xf32>
    %382 = vector.extract_strided_slice %375 {offsets = [0, 384], sizes = [8, 128], strides = [1, 1]} : vector<8x512xf32> to vector<8x128xf32>
    %383 = math.tanh %382 : vector<8x128xf32>
    %384 = vector.extract_strided_slice %381 {offsets = [0, 0], sizes = [8, 128], strides = [1, 1]} : vector<8x384xf32> to vector<8x128xf32>
    %385 = vector.extract_strided_slice %381 {offsets = [0, 128], sizes = [8, 128], strides = [1, 1]} : vector<8x384xf32> to vector<8x128xf32>
    %386 = vector.extract_strided_slice %381 {offsets = [0, 256], sizes = [8, 128], strides = [1, 1]} : vector<8x384xf32> to vector<8x128xf32>
    %387 = arith.mulf %385, %366 : vector<8x128xf32>
    %388 = arith.mulf %384, %383 : vector<8x128xf32>
    %389 = arith.addf %387, %388 : vector<8x128xf32>
    %390 = math.tanh %389 : vector<8x128xf32>
    %391 = arith.mulf %386, %390 : vector<8x128xf32>
    %c6_i32_138 = arith.constant 6 : i32
    %392 = arith.index_cast %c6_i32_138 : i32 to index
    %c0_139 = arith.constant 0 : index
    %c0_140 = arith.constant 0 : index
    %393 = vector.load %arg11[%392, %c0_139, %c0_140] : memref<8x8x512xf32, #tpu.memory_space<vmem>>, vector<1x8x512xf32>
    %394 = vector.shape_cast %393 : vector<1x8x512xf32> to vector<8x512xf32>
    %395 = arith.truncf %391 : vector<8x128xf32> to vector<8x128xbf16>
    %c0_141 = arith.constant 0 : index
    %c0_142 = arith.constant 0 : index
    %396 = vector.load %arg6[%c0_141, %c0_142] : memref<128x512xbf16, #tpu.memory_space<vmem>>, vector<128x512xbf16>
    %cst_143 = arith.constant dense<0.000000e+00> : vector<8x512xf32>
    %397 = tpu.matmul %395, %396, %cst_143 {dimension_numbers = #tpu.dot_dimension_numbers<[1], [0], [0], [1], [0, 0, 1, 1], [], []>} : vector<8x128xbf16>, vector<128x512xbf16>, vector<8x512xf32> -> vector<8x512xf32>
    %398 = arith.addf %394, %397 : vector<8x512xf32>
    %399 = vector.extract_strided_slice %398 {offsets = [0, 0], sizes = [8, 384], strides = [1, 1]} : vector<8x512xf32> to vector<8x384xf32>
    %400 = arith.negf %399 : vector<8x384xf32>
    %401 = math.exp %400 : vector<8x384xf32>
    %cst_144 = arith.constant 1.000000e+00 : f32
    %402 = vector.broadcast %cst_144 : f32 to vector<8x384xf32>
    %403 = arith.addf %402, %401 : vector<8x384xf32>
    %404 = arith.divf %402, %403 : vector<8x384xf32>
    %405 = vector.extract_strided_slice %398 {offsets = [0, 384], sizes = [8, 128], strides = [1, 1]} : vector<8x512xf32> to vector<8x128xf32>
    %406 = math.tanh %405 : vector<8x128xf32>
    %407 = vector.extract_strided_slice %404 {offsets = [0, 0], sizes = [8, 128], strides = [1, 1]} : vector<8x384xf32> to vector<8x128xf32>
    %408 = vector.extract_strided_slice %404 {offsets = [0, 128], sizes = [8, 128], strides = [1, 1]} : vector<8x384xf32> to vector<8x128xf32>
    %409 = vector.extract_strided_slice %404 {offsets = [0, 256], sizes = [8, 128], strides = [1, 1]} : vector<8x384xf32> to vector<8x128xf32>
    %410 = arith.mulf %408, %389 : vector<8x128xf32>
    %411 = arith.mulf %407, %406 : vector<8x128xf32>
    %412 = arith.addf %410, %411 : vector<8x128xf32>
    %413 = math.tanh %412 : vector<8x128xf32>
    %414 = arith.mulf %409, %413 : vector<8x128xf32>
    %c7_i32_145 = arith.constant 7 : i32
    %415 = arith.index_cast %c7_i32_145 : i32 to index
    %c0_146 = arith.constant 0 : index
    %c0_147 = arith.constant 0 : index
    %416 = vector.load %arg11[%415, %c0_146, %c0_147] : memref<8x8x512xf32, #tpu.memory_space<vmem>>, vector<1x8x512xf32>
    %417 = vector.shape_cast %416 : vector<1x8x512xf32> to vector<8x512xf32>
    %418 = arith.truncf %414 : vector<8x128xf32> to vector<8x128xbf16>
    %c0_148 = arith.constant 0 : index
    %c0_149 = arith.constant 0 : index
    %419 = vector.load %arg6[%c0_148, %c0_149] : memref<128x512xbf16, #tpu.memory_space<vmem>>, vector<128x512xbf16>
    %cst_150 = arith.constant dense<0.000000e+00> : vector<8x512xf32>
    %420 = tpu.matmul %418, %419, %cst_150 {dimension_numbers = #tpu.dot_dimension_numbers<[1], [0], [0], [1], [0, 0, 1, 1], [], []>} : vector<8x128xbf16>, vector<128x512xbf16>, vector<8x512xf32> -> vector<8x512xf32>
    %421 = arith.addf %417, %420 : vector<8x512xf32>
    %422 = vector.extract_strided_slice %421 {offsets = [0, 0], sizes = [8, 384], strides = [1, 1]} : vector<8x512xf32> to vector<8x384xf32>
    %423 = arith.negf %422 : vector<8x384xf32>
    %424 = math.exp %423 : vector<8x384xf32>
    %cst_151 = arith.constant 1.000000e+00 : f32
    %425 = vector.broadcast %cst_151 : f32 to vector<8x384xf32>
    %426 = arith.addf %425, %424 : vector<8x384xf32>
    %427 = arith.divf %425, %426 : vector<8x384xf32>
    %428 = vector.extract_strided_slice %421 {offsets = [0, 384], sizes = [8, 128], strides = [1, 1]} : vector<8x512xf32> to vector<8x128xf32>
    %429 = math.tanh %428 : vector<8x128xf32>
    %430 = vector.extract_strided_slice %427 {offsets = [0, 0], sizes = [8, 128], strides = [1, 1]} : vector<8x384xf32> to vector<8x128xf32>
    %431 = vector.extract_strided_slice %427 {offsets = [0, 128], sizes = [8, 128], strides = [1, 1]} : vector<8x384xf32> to vector<8x128xf32>
    %432 = vector.extract_strided_slice %427 {offsets = [0, 256], sizes = [8, 128], strides = [1, 1]} : vector<8x384xf32> to vector<8x128xf32>
    %433 = arith.mulf %431, %412 : vector<8x128xf32>
    %434 = arith.mulf %430, %429 : vector<8x128xf32>
    %435 = arith.addf %433, %434 : vector<8x128xf32>
    %436 = math.tanh %435 : vector<8x128xf32>
    %437 = arith.mulf %432, %436 : vector<8x128xf32>
    %c8_i32_152 = arith.constant 8 : i32
    %c0_153 = arith.constant 0 : index
    %c0_154 = arith.constant 0 : index
    %438 = vector.load %arg8[%c0_153, %c0_154] : memref<128x128xbf16, #tpu.memory_space<vmem>>, vector<128x128xbf16>
    %c0_155 = arith.constant 0 : index
    %c0_156 = arith.constant 0 : index
    %439 = vector.load %arg9[%c0_155, %c0_156] : memref<1x128xf32, #tpu.memory_space<vmem>>, vector<1x128xf32>
    %440 = arith.truncf %437 : vector<8x128xf32> to vector<8x128xbf16>
    %cst_157 = arith.constant dense<0.000000e+00> : vector<8x128xf32>
    %441 = tpu.matmul %440, %438, %cst_157 {dimension_numbers = #tpu.dot_dimension_numbers<[1], [0], [0], [1], [0, 0, 1, 1], [], []>} : vector<8x128xbf16>, vector<128x128xbf16>, vector<8x128xf32> -> vector<8x128xf32>
    %442 = vector.broadcast %439 : vector<1x128xf32> to vector<8x128xf32>
    %443 = arith.addf %441, %442 : vector<8x128xf32>
    %c0_158 = arith.constant 0 : index
    %c0_159 = arith.constant 0 : index
    %444 = vector.load %arg10[%c0_158, %c0_159] : memref<8x128xf32, #tpu.memory_space<vmem>>, vector<8x128xf32>
    tpu.vector_store %arg10[%c0_158, %c0_159], %443 {strides = array<i32>} : memref<8x128xf32, #tpu.memory_space<vmem>>, vector<8x128xf32>,
    return
  }
  func.func @transform_0(%arg0: i32) -> (i32, i32, i32) {
    %c0_i32 = arith.constant 0 : i32
    %c0_i32_0 = arith.constant 0 : i32
    %c0_i32_1 = arith.constant 0 : i32
    return %c0_i32, %arg0, %c0_i32_0 : i32, i32, i32
  }
  func.func @transform_1(%arg0: i32) -> (i32, i32) {
    %c0_i32 = arith.constant 0 : i32
    %c0_i32_0 = arith.constant 0 : i32
    %c0_i32_1 = arith.constant 0 : i32
    return %c0_i32, %c0_i32_0 : i32, i32
  }
  func.func @transform_2(%arg0: i32) -> (i32, i32) {
    %c0_i32 = arith.constant 0 : i32
    %c0_i32_0 = arith.constant 0 : i32
    %c0_i32_1 = arith.constant 0 : i32
    return %c0_i32, %c0_i32_0 : i32, i32
  }
  func.func @transform_3(%arg0: i32) -> (i32, i32) {
    %c0_i32 = arith.constant 0 : i32
    %c0_i32_0 = arith.constant 0 : i32
    %c0_i32_1 = arith.constant 0 : i32
    return %c0_i32, %c0_i32_0 : i32, i32
  }
  func.func @transform_4(%arg0: i32) -> (i32, i32) {
    %c0_i32 = arith.constant 0 : i32
    %c0_i32_0 = arith.constant 0 : i32
    %c0_i32_1 = arith.constant 0 : i32
    return %c0_i32, %c0_i32_0 : i32, i32
  }
  func.func @transform_5(%arg0: i32) -> (i32, i32) {
    %c0_i32 = arith.constant 0 : i32
    %c0_i32_0 = arith.constant 0 : i32
    %c0_i32_1 = arith.constant 0 : i32
    return %c0_i32, %c0_i32_0 : i32, i32
  }
  func.func @transform_6(%arg0: i32) -> (i32, i32) {
    %c0_i32 = arith.constant 0 : i32
    %c0_i32_0 = arith.constant 0 : i32
    %c0_i32_1 = arith.constant 0 : i32
    return %c0_i32, %c0_i32_0 : i32, i32
  }
  func.func @transform_7(%arg0: i32) -> (i32, i32) {
    %c0_i32 = arith.constant 0 : i32
    %c0_i32_0 = arith.constant 0 : i32
    %c0_i32_1 = arith.constant 0 : i32
    return %c0_i32, %c0_i32_0 : i32, i32
  }
  func.func @transform_8(%arg0: i32) -> (i32, i32) {
    %c0_i32 = arith.constant 0 : i32
    %c0_i32_0 = arith.constant 0 : i32
    %c0_i32_1 = arith.constant 0 : i32
    return %c0_i32, %c0_i32_0 : i32, i32
  }
  func.func @transform_9(%arg0: i32) -> (i32, i32) {
    %c0_i32 = arith.constant 0 : i32
    %c0_i32_0 = arith.constant 0 : i32
    return %arg0, %c0_i32 : i32, i32
  }
}

</mosaic_0001>

<llo_original>
// kernel: tpu_custom_call.1
$region0: #{tpu_custom_call.1}
  #allocation0 [shape = 'u32[]', space=smem, size = 0x4, offset = 0x4, fixed_abs, tag = 'smem constant byte address 0x4 - core index']
  #allocation1 [shape = 'u32[144,128]{1,0:T(1,128)}', space=vmem, size = 0x12000, scoped, tag = 'internal scratch']
  #allocation2 [shape = 'f32[8,8,512]{2,1,0:T(8,128)}', space=vmem, size = 0x20000, scoped, tag = 'scratch operand']
  #allocation3 [shape = 'bf16[8,8,128]{2,1,0:T(8,128)(2,1)}', space=vmem, size = 0x4000, scoped, tag = 'scratch operand']
  %s0 = inlined_call_operand.hbm [shape: bf16[8,8,128], index: 0, kind: input, shape index: {}]
  %s1 = inlined_call_operand.hbm [shape: bf16[128,512], index: 1, kind: input, shape index: {}]
  %s2 = inlined_call_operand.hbm [shape: bf16[128,512], index: 2, kind: input, shape index: {}]
  %s3 = inlined_call_operand.vmem [shape: f32[1,512], index: 3, kind: input, shape index: {}]
  %s4 = inlined_call_operand.hbm [shape: bf16[128,512], index: 4, kind: input, shape index: {}]
  %s5 = inlined_call_operand.hbm [shape: bf16[128,512], index: 5, kind: input, shape index: {}]
  %s6 = inlined_call_operand.vmem [shape: f32[1,512], index: 6, kind: input, shape index: {}]
  %s7 = inlined_call_operand.hbm [shape: bf16[128,128], index: 7, kind: input, shape index: {}]
  %s8 = inlined_call_operand.vmem [shape: f32[1,128], index: 8, kind: input, shape index: {}]
  %s9 = inlined_call_operand.hbm [shape: f32[8,128], index: 9, kind: output, shape index: {}]
  %s10 = sld [smem:[#allocation0]]
  $region70: #{tpu_custom_call.1} parent=0
    _
  %s12 = ssub.s32 1, %s10
  %s13 = scalar_select 0, %s12, %s10
  $region1: #{tpu_custom_call.1} parent=0
    #allocation4 [shape = 'u8[16384]{0}', space=vmem, size = 0x4000, scoped, tag = 'input window, operand 0, single buffered']
    #allocation5 [shape = 's32[1]{0}', space=sflag, size = 0x4, scoped, tag = 'scoped memory for tpu_custom_call.1']
    #allocation6 [shape = 's32[1]{0}', space=sflag, size = 0x4, scoped, tag = 'scoped memory for tpu_custom_call.1']
    #allocation7 [shape = 'u8[131072]{0}', space=vmem, size = 0x20000, scoped, tag = 'input window, operand 1, single buffered']
    #allocation8 [shape = 's32[1]{0}', space=sflag, size = 0x4, scoped, tag = 'scoped memory for tpu_custom_call.1']
    #allocation9 [shape = 'u8[131072]{0}', space=vmem, size = 0x20000, scoped, tag = 'input window, operand 2, single buffered']
    #allocation10 [shape = 'u8[131072]{0}', space=vmem, size = 0x20000, scoped, tag = 'input window, operand 4, single buffered']
    #allocation11 [shape = 's32[1]{0}', space=sflag, size = 0x4, scoped, tag = 'scoped memory for tpu_custom_call.1']
    #allocation12 [shape = 'u8[131072]{0}', space=vmem, size = 0x20000, scoped, tag = 'input window, operand 5, single buffered']
    #allocation13 [shape = 'u8[32768]{0}', space=vmem, size = 0x8000, scoped, tag = 'input window, operand 7, single buffered']
    #allocation14 [shape = 's32[1]{0}', space=sflag, size = 0x4, scoped, tag = 'scoped memory for tpu_custom_call.1']
    #allocation15 [shape = 'u8[4096]{0}', space=vmem, size = 0x1000, scoped, tag = 'output window, operand 0, single buffered']
    %14 = vsyncpa [#allocation5], 0
    %15 = vsyncpa [#allocation8], 0
    %16 = vsyncpa [#allocation11], 0
    %17 = vsyncpa [#allocation14], 0
    %18 = vsyncpa [#allocation6], 0
    // Predicated region
    $region2: #{tpu_custom_call.1} parent=1 // pred_check
      _
    $region3: #{tpu_custom_call.1} parent=1 // pred_check_branch
      %20 = sbr.rel (0) target = $region5
    $region4: #{tpu_custom_call.1} parent=1 // pred_region
      %s22 = ssub.s32 512, 512
      %23 = vsyncadd [#allocation5], %s22
      %s24 = sshll.u32 [#allocation4], 4
      %s25 = int_to_ptr.vmem [resolvable:$true] %s24
      %30 = dma.hbm_to_vmem [thread:$0]  %s0, 512, %s25, [#allocation5], 64, 64, 4
    $region5: #{tpu_custom_call.1} parent=1 // pred_fallthru
      _
    // Predicated region
    $region6: #{tpu_custom_call.1} parent=1 // pred_check
      _
    $region7: #{tpu_custom_call.1} parent=1 // pred_check_branch
      %32 = sbr.rel (0) target = $region9
    $region8: #{tpu_custom_call.1} parent=1 // pred_region
      %s34 = ssub.s32 4096, 4096
      %35 = vsyncadd [#allocation8], %s34
      %s36 = sshll.u32 [#allocation7], 4
      %s37 = int_to_ptr.vmem [resolvable:$true] %s36
      %42 = dma.hbm_to_vmem [thread:$0]  %s1, 4096, %s37, [#allocation8], 256, 256, 16
    $region9: #{tpu_custom_call.1} parent=1 // pred_fallthru
      _
    // Predicated region
    $region10: #{tpu_custom_call.1} parent=1 // pred_check
      _
    $region11: #{tpu_custom_call.1} parent=1 // pred_check_branch
      %44 = sbr.rel (0) target = $region13
    $region12: #{tpu_custom_call.1} parent=1 // pred_region
      %s46 = ssub.s32 4096, 4096
      %47 = vsyncadd [#allocation8], %s46
      %s48 = sshll.u32 [#allocation9], 4
      %s49 = int_to_ptr.vmem [resolvable:$true] %s48
      %54 = dma.hbm_to_vmem [thread:$0]  %s2, 4096, %s49, [#allocation8], 256, 256, 16
    $region13: #{tpu_custom_call.1} parent=1 // pred_fallthru
      _
    // Predicated region
    $region14: #{tpu_custom_call.1} parent=1 // pred_check
      _
    $region15: #{tpu_custom_call.1} parent=1 // pred_check_branch
      %56 = sbr.rel (0) target = $region17
    $region16: #{tpu_custom_call.1} parent=1 // pred_region
      _
    $region17: #{tpu_custom_call.1} parent=1 // pred_fallthru
      _
    // Predicated region
    $region18: #{tpu_custom_call.1} parent=1 // pred_check
      _
    $region19: #{tpu_custom_call.1} parent=1 // pred_check_branch
      %58 = sbr.rel (0) target = $region21
    $region20: #{tpu_custom_call.1} parent=1 // pred_region
      %s60 = ssub.s32 4096, 4096
      %61 = vsyncadd [#allocation11], %s60
      %s62 = sshll.u32 [#allocation10], 4
      %s63 = int_to_ptr.vmem [resolvable:$true] %s62
      %68 = dma.hbm_to_vmem [thread:$0]  %s4, 4096, %s63, [#allocation11], 256, 256, 16
    $region21: #{tpu_custom_call.1} parent=1 // pred_fallthru
      _
    // Predicated region
    $region22: #{tpu_custom_call.1} parent=1 // pred_check
      _
    $region23: #{tpu_custom_call.1} parent=1 // pred_check_branch
      %70 = sbr.rel (0) target = $region25
    $region24: #{tpu_custom_call.1} parent=1 // pred_region
      %s72 = ssub.s32 4096, 4096
      %73 = vsyncadd [#allocation11], %s72
      %s74 = sshll.u32 [#allocation12], 4
      %s75 = int_to_ptr.vmem [resolvable:$true] %s74
      %80 = dma.hbm_to_vmem [thread:$0]  %s5, 4096, %s75, [#allocation11], 256, 256, 16
    $region25: #{tpu_custom_call.1} parent=1 // pred_fallthru
      _
    // Predicated region
    $region26: #{tpu_custom_call.1} parent=1 // pred_check
      _
    $region27: #{tpu_custom_call.1} parent=1 // pred_check_branch
      %82 = sbr.rel (0) target = $region29
    $region28: #{tpu_custom_call.1} parent=1 // pred_region
      _
    $region29: #{tpu_custom_call.1} parent=1 // pred_fallthru
      _
    // Predicated region
    $region30: #{tpu_custom_call.1} parent=1 // pred_check
      _
    $region31: #{tpu_custom_call.1} parent=1 // pred_check_branch
      %84 = sbr.rel (0) target = $region33
    $region32: #{tpu_custom_call.1} parent=1 // pred_region
      %s86 = ssub.s32 1024, 1024
      %87 = vsyncadd [#allocation14], %s86
      %s88 = sshll.u32 [#allocation13], 4
      %s89 = int_to_ptr.vmem [resolvable:$true] %s88
      %94 = dma.hbm_to_vmem [thread:$0]  %s7, 1024, %s89, [#allocation14], 64, 64, 4
    $region33: #{tpu_custom_call.1} parent=1 // pred_fallthru
      _
    // Predicated region
    $region34: #{tpu_custom_call.1} parent=1 // pred_check
      _
    $region35: #{tpu_custom_call.1} parent=1 // pred_check_branch
      %96 = sbr.rel (0) target = $region37
    $region36: #{tpu_custom_call.1} parent=1 // pred_region
      _
    $region37: #{tpu_custom_call.1} parent=1 // pred_fallthru
      _
    // Predicated region
    $region38: #{tpu_custom_call.1} parent=1 // pred_check
      _
    $region39: #{tpu_custom_call.1} parent=1 // pred_check_branch
      %98 = sbr.rel (0) target = $region41
    $region40: #{tpu_custom_call.1} parent=1 // pred_region
      %99 = dma.done [#allocation5], 512
    $region41: #{tpu_custom_call.1} parent=1 // pred_fallthru
      _
    // Predicated region
    $region42: #{tpu_custom_call.1} parent=1 // pred_check
      _
    $region43: #{tpu_custom_call.1} parent=1 // pred_check_branch
      %101 = sbr.rel (0) target = $region45
    $region44: #{tpu_custom_call.1} parent=1 // pred_region
      %102 = dma.done [#allocation8], 4096
    $region45: #{tpu_custom_call.1} parent=1 // pred_fallthru
      _
    // Predicated region
    $region46: #{tpu_custom_call.1} parent=1 // pred_check
      _
    $region47: #{tpu_custom_call.1} parent=1 // pred_check_branch
      %104 = sbr.rel (0) target = $region49
    $region48: #{tpu_custom_call.1} parent=1 // pred_region
      %105 = dma.done [#allocation8], 4096
    $region49: #{tpu_custom_call.1} parent=1 // pred_fallthru
      _
    // Predicated region
    $region50: #{tpu_custom_call.1} parent=1 // pred_check
      _
    $region51: #{tpu_custom_call.1} parent=1 // pred_check_branch
      %107 = sbr.rel (0) target = $region53
    $region52: #{tpu_custom_call.1} parent=1 // pred_region
      %108 = dma.done [#allocation11], 4096
    $region53: #{tpu_custom_call.1} parent=1 // pred_fallthru
      _
    // Predicated region
    $region54: #{tpu_custom_call.1} parent=1 // pred_check
      _
    $region55: #{tpu_custom_call.1} parent=1 // pred_check_branch
      %110 = sbr.rel (0) target = $region57
    $region56: #{tpu_custom_call.1} parent=1 // pred_region
      %111 = dma.done [#allocation11], 4096
    $region57: #{tpu_custom_call.1} parent=1 // pred_fallthru
      _
    // Predicated region
    $region58: #{tpu_custom_call.1} parent=1 // pred_check
      _
    $region59: #{tpu_custom_call.1} parent=1 // pred_check_branch
      %113 = sbr.rel (0) target = $region61
    $region60: #{tpu_custom_call.1} parent=1 // pred_region
      %114 = dma.done [#allocation14], 1024
    $region61: #{tpu_custom_call.1} parent=1 // pred_fallthru
      _
    %v116 = vld [vmem:[%s3] sm:$0xf]
    %v117 = vld [vmem:[#allocation4] sm:$0xf]
    %v118 = vld [vmem:[#allocation4 + $0x4] sm:$0xf]
    %v119 = vld [vmem:[#allocation4 + $0x8] sm:$0xf]
    %v120 = vld [vmem:[#allocation4 + $0xc] sm:$0xf]
    %v121 = vld [vmem:[#allocation4 + $0x10] sm:$0xf]
    %v122 = vld [vmem:[#allocation4 + $0x14] sm:$0xf]
    %v123 = vld [vmem:[#allocation4 + $0x18] sm:$0xf]
    %v124 = vld [vmem:[#allocation4 + $0x1c] sm:$0xf]
    %v125 = vld [vmem:[#allocation7] sm:$0xff]
    %v126 = vld [vmem:[#allocation7 + $0x8] sm:$0xff]
    %v127 = vld [vmem:[#allocation7 + $0x10] sm:$0xff]
    %v128 = vld [vmem:[#allocation7 + $0x18] sm:$0xff]
    %v129 = vld [vmem:[#allocation7 + $0x20] sm:$0xff]
    %v130 = vld [vmem:[#allocation7 + $0x28] sm:$0xff]
    %v131 = vld [vmem:[#allocation7 + $0x30] sm:$0xff]
    %v132 = vld [vmem:[#allocation7 + $0x38] sm:$0xff]
    %v133 = vld [vmem:[#allocation7 + $0x40] sm:$0xff]
    %v134 = vld [vmem:[#allocation7 + $0x48] sm:$0xff]
    %v135 = vld [vmem:[#allocation7 + $0x50] sm:$0xff]
    %v136 = vld [vmem:[#allocation7 + $0x58] sm:$0xff]
    %v137 = vld [vmem:[#allocation7 + $0x60] sm:$0xff]
    %v138 = vld [vmem:[#allocation7 + $0x68] sm:$0xff]
    %v139 = vld [vmem:[#allocation7 + $0x70] sm:$0xff]
    %v140 = vld [vmem:[#allocation7 + $0x78] sm:$0xff]
    %v141 = vld [vmem:[#allocation7 + $0x80] sm:$0xff]
    %v142 = vld [vmem:[#allocation7 + $0x88] sm:$0xff]
    %v143 = vld [vmem:[#allocation7 + $0x90] sm:$0xff]
    %v144 = vld [vmem:[#allocation7 + $0x98] sm:$0xff]
    %v145 = vld [vmem:[#allocation7 + $0xa0] sm:$0xff]
    %v146 = vld [vmem:[#allocation7 + $0xa8] sm:$0xff]
    %v147 = vld [vmem:[#allocation7 + $0xb0] sm:$0xff]
    %v148 = vld [vmem:[#allocation7 + $0xb8] sm:$0xff]
    %v149 = vld [vmem:[#allocation7 + $0xc0] sm:$0xff]
    %v150 = vld [vmem:[#allocation7 + $0xc8] sm:$0xff]
    %v151 = vld [vmem:[#allocation7 + $0xd0] sm:$0xff]
    %v152 = vld [vmem:[#allocation7 + $0xd8] sm:$0xff]
    %v153 = vld [vmem:[#allocation7 + $0xe0] sm:$0xff]
    %v154 = vld [vmem:[#allocation7 + $0xe8] sm:$0xff]
    %v155 = vld [vmem:[#allocation7 + $0xf0] sm:$0xff]
    %v156 = vld [vmem:[#allocation7 + $0xf8] sm:$0xff]
    %v158 = vlaneseq
    %v159 = vshrl.u32 %v158, 7
    %v160 = vsub.s32 0, %v159
    %v161 = vrot.slane %v116, %v160
    %v162 = vlaneseq
    %v163 = vshrl.u32 %v162, 7
    %v164 = vsub.s32 1, %v163
    %v165 = vrot.slane %v116, %v164
    %v166 = vlaneseq
    %v167 = vshrl.u32 %v166, 7
    %v168 = vsub.s32 2, %v167
    %v169 = vrot.slane %v116, %v168
    %v170 = vlaneseq
    %v171 = vshrl.u32 %v170, 7
    %v172 = vsub.s32 3, %v171
    %v173 = vrot.slane %v116, %v172
    %v186 = vunpack.c.l.b16 %v117
    %v187 = vunpack.c.l.b16 %v118
    %v188 = vunpack.c.l.b16 %v119
    %v189 = vunpack.c.l.b16 %v120
    %v190 = vunpack.c.l.b16 %v121
    %v191 = vunpack.c.l.b16 %v122
    %v192 = vunpack.c.l.b16 %v123
    %v193 = vunpack.c.l.b16 %v124
    %v194 = vpack.c.b16 %v187, %v186
    %v195 = vpack.c.b16 %v189, %v188
    %v196 = vpack.c.b16 %v191, %v190
    %v197 = vpack.c.b16 %v193, %v192
    %v234 = vunpack.c.l.b16 %v125
    %v235 = vunpack.c.h.b16 %v125
    %v236 = vunpack.c.l.b16 %v126
    %v237 = vunpack.c.h.b16 %v126
    %v238 = vunpack.c.l.b16 %v127
    %v239 = vunpack.c.h.b16 %v127
    %v240 = vunpack.c.l.b16 %v128
    %v241 = vunpack.c.h.b16 %v128
    %v242 = vunpack.c.l.b16 %v129
    %v243 = vunpack.c.h.b16 %v129
    %v244 = vunpack.c.l.b16 %v130
    %v245 = vunpack.c.h.b16 %v130
    %v246 = vunpack.c.l.b16 %v131
    %v247 = vunpack.c.h.b16 %v131
    %v248 = vunpack.c.l.b16 %v132
    %v249 = vunpack.c.h.b16 %v132
    %v250 = vunpack.c.l.b16 %v133
    %v251 = vunpack.c.h.b16 %v133
    %v252 = vunpack.c.l.b16 %v134
    %v253 = vunpack.c.h.b16 %v134
    %v254 = vunpack.c.l.b16 %v135
    %v255 = vunpack.c.h.b16 %v135
    %v256 = vunpack.c.l.b16 %v136
    %v257 = vunpack.c.h.b16 %v136
    %v258 = vunpack.c.l.b16 %v137
    %v259 = vunpack.c.h.b16 %v137
    %v260 = vunpack.c.l.b16 %v138
    %v261 = vunpack.c.h.b16 %v138
    %v262 = vunpack.c.l.b16 %v139
    %v263 = vunpack.c.h.b16 %v139
    %v264 = vunpack.c.l.b16 %v140
    %v265 = vunpack.c.h.b16 %v140
    %v266 = vunpack.c.l.b16 %v141
    %v267 = vunpack.c.h.b16 %v141
    %v268 = vunpack.c.l.b16 %v142
    %v269 = vunpack.c.h.b16 %v142
    %v270 = vunpack.c.l.b16 %v143
    %v271 = vunpack.c.h.b16 %v143
    %v272 = vunpack.c.l.b16 %v144
    %v273 = vunpack.c.h.b16 %v144
    %v274 = vunpack.c.l.b16 %v145
    %v275 = vunpack.c.h.b16 %v145
    %v276 = vunpack.c.l.b16 %v146
    %v277 = vunpack.c.h.b16 %v146
    %v278 = vunpack.c.l.b16 %v147
    %v279 = vunpack.c.h.b16 %v147
    %v280 = vunpack.c.l.b16 %v148
    %v281 = vunpack.c.h.b16 %v148
    %v282 = vunpack.c.l.b16 %v149
    %v283 = vunpack.c.h.b16 %v149
    %v284 = vunpack.c.l.b16 %v150
    %v285 = vunpack.c.h.b16 %v150
    %v286 = vunpack.c.l.b16 %v151
    %v287 = vunpack.c.h.b16 %v151
    %v288 = vunpack.c.l.b16 %v152
    %v289 = vunpack.c.h.b16 %v152
    %v290 = vunpack.c.l.b16 %v153
    %v291 = vunpack.c.h.b16 %v153
    %v292 = vunpack.c.l.b16 %v154
    %v293 = vunpack.c.h.b16 %v154
    %v294 = vunpack.c.l.b16 %v155
    %v295 = vunpack.c.h.b16 %v155
    %v296 = vunpack.c.l.b16 %v156
    %v297 = vunpack.c.h.b16 %v156
    %v298 = vpack.c.b16 %v238, %v234
    %v299 = vpack.c.b16 %v239, %v235
    %v300 = vpack.c.b16 %v240, %v236
    %v301 = vpack.c.b16 %v241, %v237
    %v302 = vpack.c.b16 %v246, %v242
    %v303 = vpack.c.b16 %v247, %v243
    %v304 = vpack.c.b16 %v248, %v244
    %v305 = vpack.c.b16 %v249, %v245
    %v306 = vpack.c.b16 %v254, %v250
    %v307 = vpack.c.b16 %v255, %v251
    %v308 = vpack.c.b16 %v256, %v252
    %v309 = vpack.c.b16 %v257, %v253
    %v310 = vpack.c.b16 %v262, %v258
    %v311 = vpack.c.b16 %v263, %v259
    %v312 = vpack.c.b16 %v264, %v260
    %v313 = vpack.c.b16 %v265, %v261
    %v314 = vpack.c.b16 %v270, %v266
    %v315 = vpack.c.b16 %v271, %v267
    %v316 = vpack.c.b16 %v272, %v268
    %v317 = vpack.c.b16 %v273, %v269
    %v318 = vpack.c.b16 %v278, %v274
    %v319 = vpack.c.b16 %v279, %v275
    %v320 = vpack.c.b16 %v280, %v276
    %v321 = vpack.c.b16 %v281, %v277
    %v322 = vpack.c.b16 %v286, %v282
    %v323 = vpack.c.b16 %v287, %v283
    %v324 = vpack.c.b16 %v288, %v284
    %v325 = vpack.c.b16 %v289, %v285
    %v326 = vpack.c.b16 %v294, %v290
    %v327 = vpack.c.b16 %v295, %v291
    %v328 = vpack.c.b16 %v296, %v292
    %v329 = vpack.c.b16 %v297, %v293
    %362 = vmatprep.subr.bf16.mxu0 %v299
    %363 = vmatpush1.bf16.msra.mxu0 %v298
    %364 = vmatprep.subr.bf16.mxu0 %v303
    %365 = vmatpush1.bf16.msra.mxu0 %v302
    %366 = vmatprep.subr.bf16.mxu0 %v307
    %367 = vmatpush1.bf16.msra.mxu0 %v306
    %368 = vmatprep.subr.bf16.mxu0 %v311
    %369 = vmatpush1.bf16.msra.mxu0 %v310
    %370 = vmatprep.subr.bf16.mxu0 %v315
    %371 = vmatpush1.bf16.msra.mxu0 %v314
    %372 = vmatprep.subr.bf16.mxu0 %v319
    %373 = vmatpush1.bf16.msra.mxu0 %v318
    %374 = vmatprep.subr.bf16.mxu0 %v323
    %375 = vmatpush1.bf16.msra.mxu0 %v322
    %376 = vmatprep.subr.bf16.mxu0 %v327
    %377 = vmatpush1.bf16.msra.mxu0 %v326
    %378 = vmatprep.subr.bf16.mxu0 0
    %379 = vmatpush1.bf16.msra.mxu0 0
    %380 = vmatprep.subr.bf16.mxu0 0
    %381 = vmatpush1.bf16.msra.mxu0 0
    %382 = vmatprep.subr.bf16.mxu0 0
    %383 = vmatpush1.bf16.msra.mxu0 0
    %384 = vmatprep.subr.bf16.mxu0 0
    %385 = vmatpush1.bf16.msra.mxu0 0
    %386 = vmatprep.subr.bf16.mxu0 0
    %387 = vmatpush1.bf16.msra.mxu0 0
    %388 = vmatprep.subr.bf16.mxu0 0
    %389 = vmatpush1.bf16.msra.mxu0 0
    %390 = vmatprep.subr.bf16.mxu0 0
    %391 = vmatpush1.bf16.msra.mxu0 0
    %392 = vmatprep.subr.bf16.mxu0 0
    %393 = vmatpush1.bf16.msra.mxu0 0
    %394 = vmatprep.mubr.bf16.mxu0 0
    %395 = vmatmul.mubr.bf16.gmra.mrb[0].mxu0 %v194
    %v396 = vpop.f32.mrb[0].mxu0
    %v397 = vadd.f32 %v161, %v396
    %v398 = vpop.f32.mrb[0].mxu0
    %v399 = vadd.f32 %v165, %v398
    %v400 = vpop.f32.mrb[0].mxu0
    %v401 = vadd.f32 %v161, %v400
    %v402 = vpop.f32.mrb[0].mxu0
    %v403 = vadd.f32 %v165, %v402
    %404 = vmatprep.mubr.bf16.mxu0 0
    %405 = vmatmul.mubr.bf16.gmra.mrb[0].mxu0 %v195
    %v406 = vpop.f32.mrb[0].mxu0
    %v407 = vadd.f32 %v161, %v406
    %v408 = vpop.f32.mrb[0].mxu0
    %v409 = vadd.f32 %v165, %v408
    %v410 = vpop.f32.mrb[0].mxu0
    %v411 = vadd.f32 %v161, %v410
    %v412 = vpop.f32.mrb[0].mxu0
    %v413 = vadd.f32 %v165, %v412
    %414 = vmatprep.mubr.bf16.mxu0 0
    %415 = vmatmul.mubr.bf16.gmra.mrb[0].mxu0 %v196
    %v416 = vpop.f32.mrb[0].mxu0
    %v417 = vadd.f32 %v161, %v416
    %v418 = vpop.f32.mrb[0].mxu0
    %v419 = vadd.f32 %v165, %v418
    %v420 = vpop.f32.mrb[0].mxu0
    %v421 = vadd.f32 %v161, %v420
    %v422 = vpop.f32.mrb[0].mxu0
    %v423 = vadd.f32 %v165, %v422
    %424 = vmatprep.mubr.bf16.mxu0 0
    %425 = vmatmul.mubr.bf16.gmra.mrb[0].mxu0 %v197
    %v426 = vpop.f32.mrb[0].mxu0
    %v427 = vadd.f32 %v161, %v426
    %v428 = vpop.f32.mrb[0].mxu0
    %v429 = vadd.f32 %v165, %v428
    %v430 = vpop.f32.mrb[0].mxu0
    %v431 = vadd.f32 %v161, %v430
    %v432 = vpop.f32.mrb[0].mxu0
    %v433 = vadd.f32 %v165, %v432
    %434 = vdwg.mxu0
    %435 = vmatprep.subr.bf16.mxu0 %v301
    %436 = vmatpush1.bf16.msra.mxu0 %v300
    %437 = vmatprep.subr.bf16.mxu0 %v305
    %438 = vmatpush1.bf16.msra.mxu0 %v304
    %439 = vmatprep.subr.bf16.mxu0 %v309
    %440 = vmatpush1.bf16.msra.mxu0 %v308
    %441 = vmatprep.subr.bf16.mxu0 %v313
    %442 = vmatpush1.bf16.msra.mxu0 %v312
    %443 = vmatprep.subr.bf16.mxu0 %v317
    %444 = vmatpush1.bf16.msra.mxu0 %v316
    %445 = vmatprep.subr.bf16.mxu0 %v321
    %446 = vmatpush1.bf16.msra.mxu0 %v320
    %447 = vmatprep.subr.bf16.mxu0 %v325
    %448 = vmatpush1.bf16.msra.mxu0 %v324
    %449 = vmatprep.subr.bf16.mxu0 %v329
    %450 = vmatpush1.bf16.msra.mxu0 %v328
    %451 = vmatprep.subr.bf16.mxu0 0
    %452 = vmatpush1.bf16.msra.mxu0 0
    %453 = vmatprep.subr.bf16.mxu0 0
    %454 = vmatpush1.bf16.msra.mxu0 0
    %455 = vmatprep.subr.bf16.mxu0 0
    %456 = vmatpush1.bf16.msra.mxu0 0
    %457 = vmatprep.subr.bf16.mxu0 0
    %458 = vmatpush1.bf16.msra.mxu0 0
    %459 = vmatprep.subr.bf16.mxu0 0
    %460 = vmatpush1.bf16.msra.mxu0 0
    %461 = vmatprep.subr.bf16.mxu0 0
    %462 = vmatpush1.bf16.msra.mxu0 0
    %463 = vmatprep.subr.bf16.mxu0 0
    %464 = vmatpush1.bf16.msra.mxu0 0
    %465 = vmatprep.subr.bf16.mxu0 0
    %466 = vmatpush1.bf16.msra.mxu0 0
    %467 = vmatprep.mubr.bf16.mxu0 0
    %468 = vmatmul.mubr.bf16.gmra.mrb[0].mxu0 %v194
    %v469 = vpop.f32.mrb[0].mxu0
    %v470 = vadd.f32 %v169, %v469
    %v471 = vpop.f32.mrb[0].mxu0
    %v472 = vadd.f32 %v173, %v471
    %v473 = vpop.f32.mrb[0].mxu0
    %v474 = vadd.f32 %v169, %v473
    %v475 = vpop.f32.mrb[0].mxu0
    %v476 = vadd.f32 %v173, %v475
    %477 = vmatprep.mubr.bf16.mxu0 0
    %478 = vmatmul.mubr.bf16.gmra.mrb[0].mxu0 %v195
    %v479 = vpop.f32.mrb[0].mxu0
    %v480 = vadd.f32 %v169, %v479
    %v481 = vpop.f32.mrb[0].mxu0
    %v482 = vadd.f32 %v173, %v481
    %v483 = vpop.f32.mrb[0].mxu0
    %v484 = vadd.f32 %v169, %v483
    %v485 = vpop.f32.mrb[0].mxu0
    %v486 = vadd.f32 %v173, %v485
    %487 = vmatprep.mubr.bf16.mxu0 0
    %488 = vmatmul.mubr.bf16.gmra.mrb[0].mxu0 %v196
    %v489 = vpop.f32.mrb[0].mxu0
    %v490 = vadd.f32 %v169, %v489
    %v491 = vpop.f32.mrb[0].mxu0
    %v492 = vadd.f32 %v173, %v491
    %v493 = vpop.f32.mrb[0].mxu0
    %v494 = vadd.f32 %v169, %v493
    %v495 = vpop.f32.mrb[0].mxu0
    %v496 = vadd.f32 %v173, %v495
    %497 = vmatprep.mubr.bf16.mxu0 0
    %498 = vmatmul.mubr.bf16.gmra.mrb[0].mxu0 %v197
    %v499 = vpop.f32.mrb[0].mxu0
    %v500 = vadd.f32 %v169, %v499
    %v501 = vpop.f32.mrb[0].mxu0
    %v502 = vadd.f32 %v173, %v501
    %v503 = vpop.f32.mrb[0].mxu0
    %v504 = vadd.f32 %v169, %v503
    %v505 = vpop.f32.mrb[0].mxu0
    %v506 = vadd.f32 %v173, %v505
    %507 = vdwg.mxu0
    %508 = vst [vmem:[#allocation2] sm:$0xff] %v397
    %509 = vst [vmem:[#allocation2 + $0x8] sm:$0xff] %v399
    %510 = vst [vmem:[#allocation2 + $0x10] sm:$0xff] %v470
    %511 = vst [vmem:[#allocation2 + $0x18] sm:$0xff] %v472
    %512 = vst [vmem:[#allocation2 + $0x20] sm:$0xff] %v401
    %513 = vst [vmem:[#allocation2 + $0x28] sm:$0xff] %v403
    %514 = vst [vmem:[#allocation2 + $0x30] sm:$0xff] %v474
    %515 = vst [vmem:[#allocation2 + $0x38] sm:$0xff] %v476
    %516 = vst [vmem:[#allocation2 + $0x40] sm:$0xff] %v407
    %517 = vst [vmem:[#allocation2 + $0x48] sm:$0xff] %v409
    %518 = vst [vmem:[#allocation2 + $0x50] sm:$0xff] %v480
    %519 = vst [vmem:[#allocation2 + $0x58] sm:$0xff] %v482
    %520 = vst [vmem:[#allocation2 + $0x60] sm:$0xff] %v411
    %521 = vst [vmem:[#allocation2 + $0x68] sm:$0xff] %v413
    %522 = vst [vmem:[#allocation2 + $0x70] sm:$0xff] %v484
    %523 = vst [vmem:[#allocation2 + $0x78] sm:$0xff] %v486
    %524 = vst [vmem:[#allocation2 + $0x80] sm:$0xff] %v417
    %525 = vst [vmem:[#allocation2 + $0x88] sm:$0xff] %v419
    %526 = vst [vmem:[#allocation2 + $0x90] sm:$0xff] %v490
    %527 = vst [vmem:[#allocation2 + $0x98] sm:$0xff] %v492
    %528 = vst [vmem:[#allocation2 + $0xa0] sm:$0xff] %v421
    %529 = vst [vmem:[#allocation2 + $0xa8] sm:$0xff] %v423
    %530 = vst [vmem:[#allocation2 + $0xb0] sm:$0xff] %v494
    %531 = vst [vmem:[#allocation2 + $0xb8] sm:$0xff] %v496
    %532 = vst [vmem:[#allocation2 + $0xc0] sm:$0xff] %v427
    %533 = vst [vmem:[#allocation2 + $0xc8] sm:$0xff] %v429
    %534 = vst [vmem:[#allocation2 + $0xd0] sm:$0xff] %v500
    %535 = vst [vmem:[#allocation2 + $0xd8] sm:$0xff] %v502
    %536 = vst [vmem:[#allocation2 + $0xe0] sm:$0xff] %v431
    %537 = vst [vmem:[#allocation2 + $0xe8] sm:$0xff] %v433
    %538 = vst [vmem:[#allocation2 + $0xf0] sm:$0xff] %v504
    %539 = vst [vmem:[#allocation2 + $0xf8] sm:$0xff] %v506
    %v540 = vld [vmem:[#allocation2] sm:$0xff]
    %v541 = vld [vmem:[#allocation2 + $0x8] sm:$0xff]
    %v542 = vld [vmem:[#allocation2 + $0x10] sm:$0xff]
    %v543 = vld [vmem:[#allocation2 + $0x18] sm:$0xff]
    %v544 = vld [vmem:[#allocation9] sm:$0xff]
    %v545 = vld [vmem:[#allocation9 + $0x8] sm:$0xff]
    %v546 = vld [vmem:[#allocation9 + $0x10] sm:$0xff]
    %v547 = vld [vmem:[#allocation9 + $0x18] sm:$0xff]
    %v548 = vld [vmem:[#allocation9 + $0x20] sm:$0xff]
    %v549 = vld [vmem:[#allocation9 + $0x28] sm:$0xff]
    %v550 = vld [vmem:[#allocation9 + $0x30] sm:$0xff]
    %v551 = vld [vmem:[#allocation9 + $0x38] sm:$0xff]
    %v552 = vld [vmem:[#allocation9 + $0x40] sm:$0xff]
    %v553 = vld [vmem:[#allocation9 + $0x48] sm:$0xff]
    %v554 = vld [vmem:[#allocation9 + $0x50] sm:$0xff]
    %v555 = vld [vmem:[#allocation9 + $0x58] sm:$0xff]
    %v556 = vld [vmem:[#allocation9 + $0x60] sm:$0xff]
    %v557 = vld [vmem:[#allocation9 + $0x68] sm:$0xff]
    %v558 = vld [vmem:[#allocation9 + $0x70] sm:$0xff]
    %v559 = vld [vmem:[#allocation9 + $0x78] sm:$0xff]
    %v560 = vld [vmem:[#allocation9 + $0x80] sm:$0xff]
    %v561 = vld [vmem:[#allocation9 + $0x88] sm:$0xff]
    %v562 = vld [vmem:[#allocation9 + $0x90] sm:$0xff]
    %v563 = vld [vmem:[#allocation9 + $0x98] sm:$0xff]
    %v564 = vld [vmem:[#allocation9 + $0xa0] sm:$0xff]
    %v565 = vld [vmem:[#allocation9 + $0xa8] sm:$0xff]
    %v566 = vld [vmem:[#allocation9 + $0xb0] sm:$0xff]
    %v567 = vld [vmem:[#allocation9 + $0xb8] sm:$0xff]
    %v568 = vld [vmem:[#allocation9 + $0xc0] sm:$0xff]
    %v569 = vld [vmem:[#allocation9 + $0xc8] sm:$0xff]
    %v570 = vld [vmem:[#allocation9 + $0xd0] sm:$0xff]
    %v571 = vld [vmem:[#allocation9 + $0xd8] sm:$0xff]
    %v572 = vld [vmem:[#allocation9 + $0xe0] sm:$0xff]
    %v573 = vld [vmem:[#allocation9 + $0xe8] sm:$0xff]
    %v574 = vld [vmem:[#allocation9 + $0xf0] sm:$0xff]
    %v575 = vld [vmem:[#allocation9 + $0xf8] sm:$0xff]
    %v608 = vunpack.c.l.b16 %v544
    %v609 = vunpack.c.h.b16 %v544
    %v610 = vunpack.c.l.b16 %v545
    %v611 = vunpack.c.h.b16 %v545
    %v612 = vunpack.c.l.b16 %v546
    %v613 = vunpack.c.h.b16 %v546
    %v614 = vunpack.c.l.b16 %v547
    %v615 = vunpack.c.h.b16 %v547
    %v616 = vunpack.c.l.b16 %v548
    %v617 = vunpack.c.h.b16 %v548
    %v618 = vunpack.c.l.b16 %v549
    %v619 = vunpack.c.h.b16 %v549
    %v620 = vunpack.c.l.b16 %v550
    %v621 = vunpack.c.h.b16 %v550
    %v622 = vunpack.c.l.b16 %v551
    %v623 = vunpack.c.h.b16 %v551
    %v624 = vunpack.c.l.b16 %v552
    %v625 = vunpack.c.h.b16 %v552
    %v626 = vunpack.c.l.b16 %v553
    %v627 = vunpack.c.h.b16 %v553
    %v628 = vunpack.c.l.b16 %v554
    %v629 = vunpack.c.h.b16 %v554
    %v630 = vunpack.c.l.b16 %v555
    %v631 = vunpack.c.h.b16 %v555
    %v632 = vunpack.c.l.b16 %v556
    %v633 = vunpack.c.h.b16 %v556
    %v634 = vunpack.c.l.b16 %v557
    %v635 = vunpack.c.h.b16 %v557
    %v636 = vunpack.c.l.b16 %v558
    %v637 = vunpack.c.h.b16 %v558
    %v638 = vunpack.c.l.b16 %v559
    %v639 = vunpack.c.h.b16 %v559
    %v640 = vunpack.c.l.b16 %v560
    %v641 = vunpack.c.h.b16 %v560
    %v642 = vunpack.c.l.b16 %v561
    %v643 = vunpack.c.h.b16 %v561
    %v644 = vunpack.c.l.b16 %v562
    %v645 = vunpack.c.h.b16 %v562
    %v646 = vunpack.c.l.b16 %v563
    %v647 = vunpack.c.h.b16 %v563
    %v648 = vunpack.c.l.b16 %v564
    %v649 = vunpack.c.h.b16 %v564
    %v650 = vunpack.c.l.b16 %v565
    %v651 = vunpack.c.h.b16 %v565
    %v652 = vunpack.c.l.b16 %v566
    %v653 = vunpack.c.h.b16 %v566
    %v654 = vunpack.c.l.b16 %v567
    %v655 = vunpack.c.h.b16 %v567
    %v656 = vunpack.c.l.b16 %v568
    %v657 = vunpack.c.h.b16 %v568
    %v658 = vunpack.c.l.b16 %v569
    %v659 = vunpack.c.h.b16 %v569
    %v660 = vunpack.c.l.b16 %v570
    %v661 = vunpack.c.h.b16 %v570
    %v662 = vunpack.c.l.b16 %v571
    %v663 = vunpack.c.h.b16 %v571
    %v664 = vunpack.c.l.b16 %v572
    %v665 = vunpack.c.h.b16 %v572
    %v666 = vunpack.c.l.b16 %v573
    %v667 = vunpack.c.h.b16 %v573
    %v668 = vunpack.c.l.b16 %v574
    %v669 = vunpack.c.h.b16 %v574
    %v670 = vunpack.c.l.b16 %v575
    %v671 = vunpack.c.h.b16 %v575
    %v672 = vpack.c.b16 %v612, %v608
    %v673 = vpack.c.b16 %v613, %v609
    %v674 = vpack.c.b16 %v614, %v610
    %v675 = vpack.c.b16 %v615, %v611
    %v676 = vpack.c.b16 %v620, %v616
    %v677 = vpack.c.b16 %v621, %v617
    %v678 = vpack.c.b16 %v622, %v618
    %v679 = vpack.c.b16 %v623, %v619
    %v680 = vpack.c.b16 %v628, %v624
    %v681 = vpack.c.b16 %v629, %v625
    %v682 = vpack.c.b16 %v630, %v626
    %v683 = vpack.c.b16 %v631, %v627
    %v684 = vpack.c.b16 %v636, %v632
    %v685 = vpack.c.b16 %v637, %v633
    %v686 = vpack.c.b16 %v638, %v634
    %v687 = vpack.c.b16 %v639, %v635
    %v688 = vpack.c.b16 %v644, %v640
    %v689 = vpack.c.b16 %v645, %v641
    %v690 = vpack.c.b16 %v646, %v642
    %v691 = vpack.c.b16 %v647, %v643
    %v692 = vpack.c.b16 %v652, %v648
    %v693 = vpack.c.b16 %v653, %v649
    %v694 = vpack.c.b16 %v654, %v650
    %v695 = vpack.c.b16 %v655, %v651
    %v696 = vpack.c.b16 %v660, %v656
    %v697 = vpack.c.b16 %v661, %v657
    %v698 = vpack.c.b16 %v662, %v658
    %v699 = vpack.c.b16 %v663, %v659
    %v700 = vpack.c.b16 %v668, %v664
    %v701 = vpack.c.b16 %v669, %v665
    %v702 = vpack.c.b16 %v670, %v666
    %v703 = vpack.c.b16 %v671, %v667
    %736 = vmatprep.subr.bf16.mxu0 %v673
    %737 = vmatpush1.bf16.msra.mxu0 %v672
    %738 = vmatprep.subr.bf16.mxu0 %v677
    %739 = vmatpush1.bf16.msra.mxu0 %v676
    %740 = vmatprep.subr.bf16.mxu0 %v681
    %741 = vmatpush1.bf16.msra.mxu0 %v680
    %742 = vmatprep.subr.bf16.mxu0 %v685
    %743 = vmatpush1.bf16.msra.mxu0 %v684
    %744 = vmatprep.subr.bf16.mxu0 %v689
    %745 = vmatpush1.bf16.msra.mxu0 %v688
    %746 = vmatprep.subr.bf16.mxu0 %v693
    %747 = vmatpush1.bf16.msra.mxu0 %v692
    %748 = vmatprep.subr.bf16.mxu0 %v697
    %749 = vmatpush1.bf16.msra.mxu0 %v696
    %750 = vmatprep.subr.bf16.mxu0 %v701
    %751 = vmatpush1.bf16.msra.mxu0 %v700
    %752 = vmatprep.subr.bf16.mxu0 0
    %753 = vmatpush1.bf16.msra.mxu0 0
    %754 = vmatprep.subr.bf16.mxu0 0
    %755 = vmatpush1.bf16.msra.mxu0 0
    %756 = vmatprep.subr.bf16.mxu0 0
    %757 = vmatpush1.bf16.msra.mxu0 0
    %758 = vmatprep.subr.bf16.mxu0 0
    %759 = vmatpush1.bf16.msra.mxu0 0
    %760 = vmatprep.subr.bf16.mxu0 0
    %761 = vmatpush1.bf16.msra.mxu0 0
    %762 = vmatprep.subr.bf16.mxu0 0
    %763 = vmatpush1.bf16.msra.mxu0 0
    %764 = vmatprep.subr.bf16.mxu0 0
    %765 = vmatpush1.bf16.msra.mxu0 0
    %766 = vmatprep.subr.bf16.mxu0 0
    %767 = vmatpush1.bf16.msra.mxu0 0
    %768 = vmatprep.mubr.bf16.mxu0 0
    %769 = vmatmul.mubr.bf16.gmra.mrb[0].mxu0 0
    %v770 = vpop.f32.mrb[0].mxu0
    %v771 = vadd.f32 0.0, %v770
    %v772 = vpop.f32.mrb[0].mxu0
    %v773 = vadd.f32 0.0, %v772
    %v774 = vpop.f32.mrb[0].mxu0
    %v775 = vpop.f32.mrb[0].mxu0
    %776 = vdwg.mxu0
    %777 = vmatprep.subr.bf16.mxu0 %v675
    %778 = vmatpush1.bf16.msra.mxu0 %v674
    %779 = vmatprep.subr.bf16.mxu0 %v679
    %780 = vmatpush1.bf16.msra.mxu0 %v678
    %781 = vmatprep.subr.bf16.mxu0 %v683
    %782 = vmatpush1.bf16.msra.mxu0 %v682
    %783 = vmatprep.subr.bf16.mxu0 %v687
    %784 = vmatpush1.bf16.msra.mxu0 %v686
    %785 = vmatprep.subr.bf16.mxu0 %v691
    %786 = vmatpush1.bf16.msra.mxu0 %v690
    %787 = vmatprep.subr.bf16.mxu0 %v695
    %788 = vmatpush1.bf16.msra.mxu0 %v694
    %789 = vmatprep.subr.bf16.mxu0 %v699
    %790 = vmatpush1.bf16.msra.mxu0 %v698
    %791 = vmatprep.subr.bf16.mxu0 %v703
    %792 = vmatpush1.bf16.msra.mxu0 %v702
    %793 = vmatprep.subr.bf16.mxu0 0
    %794 = vmatpush1.bf16.msra.mxu0 0
    %795 = vmatprep.subr.bf16.mxu0 0
    %796 = vmatpush1.bf16.msra.mxu0 0
    %797 = vmatprep.subr.bf16.mxu0 0
    %798 = vmatpush1.bf16.msra.mxu0 0
    %799 = vmatprep.subr.bf16.mxu0 0
    %800 = vmatpush1.bf16.msra.mxu0 0
    %801 = vmatprep.subr.bf16.mxu0 0
    %802 = vmatpush1.bf16.msra.mxu0 0
    %803 = vmatprep.subr.bf16.mxu0 0
    %804 = vmatpush1.bf16.msra.mxu0 0
    %805 = vmatprep.subr.bf16.mxu0 0
    %806 = vmatpush1.bf16.msra.mxu0 0
    %807 = vmatprep.subr.bf16.mxu0 0
    %808 = vmatpush1.bf16.msra.mxu0 0
    %809 = vmatprep.mubr.bf16.mxu0 0
    %810 = vmatmul.mubr.bf16.gmra.mrb[0].mxu0 0
    %v811 = vpop.f32.mrb[0].mxu0
    %v812 = vadd.f32 0.0, %v811
    %v813 = vpop.f32.mrb[0].mxu0
    %v814 = vadd.f32 0.0, %v813
    %v815 = vpop.f32.mrb[0].mxu0
    %v816 = vpop.f32.mrb[0].mxu0
    %817 = vdwg.mxu0
    %v818 = vadd.f32 %v540, %v771
    %v819 = vadd.f32 %v541, %v773
    %v820 = vadd.f32 %v542, %v812
    %v821 = vadd.f32 %v543, %v814
    %v822 = vxor.u32 %v818, 2147483648
    %v823 = vxor.u32 %v819, 2147483648
    %v824 = vxor.u32 %v820, 2147483648
    %v825 = vmul.f32 %v822, 1.442695
    %v826 = vpow.pop %v825
    %v827 = vmul.f32 %v823, 1.442695
    %v828 = vpow.pop %v827
    %v829 = vmul.f32 %v824, 1.442695
    %v830 = vpow.pop %v829
    %v831 = vadd.f32 %v826, 1.0
    %v832 = vadd.f32 %v828, 1.0
    %v833 = vadd.f32 %v830, 1.0
    %v834 = vrcp.pop %v831
    %v835 = vmul.f32 1.0, %v834
    %v836 = vrcp.pop %v832
    %v837 = vmul.f32 1.0, %v836
    %v838 = vrcp.pop %v833
    %v839 = vmul.f32 1.0, %v838
    %v840 = vtanh.pop %v821
    %v841 = vmul.f32 %v837, 0.0
    %v842 = vmul.f32 %v835, %v840
    %v843 = vadd.f32 %v841, %v842
    %v844 = vtanh.pop %v843
    %v845 = vmul.f32 %v839, %v844
    %v846 = vpack.c.bf16 %v845, %v845
    %847 = vst [vmem:[#allocation3] sm:$0xf] %v846
    %s848 = scalar_lea.vmem [#allocation2], 32
    %v849 = vld [vmem:[%s848] sm:$0xff]
    %v850 = vld [vmem:[%s848 + $0x8] sm:$0xff]
    %v851 = vld [vmem:[%s848 + $0x10] sm:$0xff]
    %v852 = vld [vmem:[%s848 + $0x18] sm:$0xff]
    %v853 = vld [vmem:[#allocation9] sm:$0xff]
    %v854 = vld [vmem:[#allocation9 + $0x8] sm:$0xff]
    %v855 = vld [vmem:[#allocation9 + $0x10] sm:$0xff]
    %v856 = vld [vmem:[#allocation9 + $0x18] sm:$0xff]
    %v857 = vld [vmem:[#allocation9 + $0x20] sm:$0xff]
    %v858 = vld [vmem:[#allocation9 + $0x28] sm:$0xff]
    %v859 = vld [vmem:[#allocation9 + $0x30] sm:$0xff]
    %v860 = vld [vmem:[#allocation9 + $0x38] sm:$0xff]
    %v861 = vld [vmem:[#allocation9 + $0x40] sm:$0xff]
    %v862 = vld [vmem:[#allocation9 + $0x48] sm:$0xff]
    %v863 = vld [vmem:[#allocation9 + $0x50] sm:$0xff]
    %v864 = vld [vmem:[#allocation9 + $0x58] sm:$0xff]
    %v865 = vld [vmem:[#allocation9 + $0x60] sm:$0xff]
    %v866 = vld [vmem:[#allocation9 + $0x68] sm:$0xff]
    %v867 = vld [vmem:[#allocation9 + $0x70] sm:$0xff]
    %v868 = vld [vmem:[#allocation9 + $0x78] sm:$0xff]
    %v869 = vld [vmem:[#allocation9 + $0x80] sm:$0xff]
    %v870 = vld [vmem:[#allocation9 + $0x88] sm:$0xff]
    %v871 = vld [vmem:[#allocation9 + $0x90] sm:$0xff]
    %v872 = vld [vmem:[#allocation9 + $0x98] sm:$0xff]
    %v873 = vld [vmem:[#allocation9 + $0xa0] sm:$0xff]
    %v874 = vld [vmem:[#allocation9 + $0xa8] sm:$0xff]
    %v875 = vld [vmem:[#allocation9 + $0xb0] sm:$0xff]
    %v876 = vld [vmem:[#allocation9 + $0xb8] sm:$0xff]
    %v877 = vld [vmem:[#allocation9 + $0xc0] sm:$0xff]
    %v878 = vld [vmem:[#allocation9 + $0xc8] sm:$0xff]
    %v879 = vld [vmem:[#allocation9 + $0xd0] sm:$0xff]
    %v880 = vld [vmem:[#allocation9 + $0xd8] sm:$0xff]
    %v881 = vld [vmem:[#allocation9 + $0xe0] sm:$0xff]
    %v882 = vld [vmem:[#allocation9 + $0xe8] sm:$0xff]
    %v883 = vld [vmem:[#allocation9 + $0xf0] sm:$0xff]
    %v884 = vld [vmem:[#allocation9 + $0xf8] sm:$0xff]
    %v917 = vunpack.c.l.b16 %v853
    %v918 = vunpack.c.h.b16 %v853
    %v919 = vunpack.c.l.b16 %v854
    %v920 = vunpack.c.h.b16 %v854
    %v921 = vunpack.c.l.b16 %v855
    %v922 = vunpack.c.h.b16 %v855
    %v923 = vunpack.c.l.b16 %v856
    %v924 = vunpack.c.h.b16 %v856
    %v925 = vunpack.c.l.b16 %v857
    %v926 = vunpack.c.h.b16 %v857
    %v927 = vunpack.c.l.b16 %v858
    %v928 = vunpack.c.h.b16 %v858
    %v929 = vunpack.c.l.b16 %v859
    %v930 = vunpack.c.h.b16 %v859
    %v931 = vunpack.c.l.b16 %v860
    %v932 = vunpack.c.h.b16 %v860
    %v933 = vunpack.c.l.b16 %v861
    %v934 = vunpack.c.h.b16 %v861
    %v935 = vunpack.c.l.b16 %v862
    %v936 = vunpack.c.h.b16 %v862
    %v937 = vunpack.c.l.b16 %v863
    %v938 = vunpack.c.h.b16 %v863
    %v939 = vunpack.c.l.b16 %v864
    %v940 = vunpack.c.h.b16 %v864
    %v941 = vunpack.c.l.b16 %v865
    %v942 = vunpack.c.h.b16 %v865
    %v943 = vunpack.c.l.b16 %v866
    %v944 = vunpack.c.h.b16 %v866
    %v945 = vunpack.c.l.b16 %v867
    %v946 = vunpack.c.h.b16 %v867
    %v947 = vunpack.c.l.b16 %v868
    %v948 = vunpack.c.h.b16 %v868
    %v949 = vunpack.c.l.b16 %v869
    %v950 = vunpack.c.h.b16 %v869
    %v951 = vunpack.c.l.b16 %v870
    %v952 = vunpack.c.h.b16 %v870
    %v953 = vunpack.c.l.b16 %v871
    %v954 = vunpack.c.h.b16 %v871
    %v955 = vunpack.c.l.b16 %v872
    %v956 = vunpack.c.h.b16 %v872
    %v957 = vunpack.c.l.b16 %v873
    %v958 = vunpack.c.h.b16 %v873
    %v959 = vunpack.c.l.b16 %v874
    %v960 = vunpack.c.h.b16 %v874
    %v961 = vunpack.c.l.b16 %v875
    %v962 = vunpack.c.h.b16 %v875
    %v963 = vunpack.c.l.b16 %v876
    %v964 = vunpack.c.h.b16 %v876
    %v965 = vunpack.c.l.b16 %v877
    %v966 = vunpack.c.h.b16 %v877
    %v967 = vunpack.c.l.b16 %v878
    %v968 = vunpack.c.h.b16 %v878
    %v969 = vunpack.c.l.b16 %v879
    %v970 = vunpack.c.h.b16 %v879
    %v971 = vunpack.c.l.b16 %v880
    %v972 = vunpack.c.h.b16 %v880
    %v973 = vunpack.c.l.b16 %v881
    %v974 = vunpack.c.h.b16 %v881
    %v975 = vunpack.c.l.b16 %v882
    %v976 = vunpack.c.h.b16 %v882
    %v977 = vunpack.c.l.b16 %v883
    %v978 = vunpack.c.h.b16 %v883
    %v979 = vunpack.c.l.b16 %v884
    %v980 = vunpack.c.h.b16 %v884
    %v981 = vpack.c.b16 %v921, %v917
    %v982 = vpack.c.b16 %v922, %v918
    %v983 = vpack.c.b16 %v923, %v919
    %v984 = vpack.c.b16 %v924, %v920
    %v985 = vpack.c.b16 %v929, %v925
    %v986 = vpack.c.b16 %v930, %v926
    %v987 = vpack.c.b16 %v931, %v927
    %v988 = vpack.c.b16 %v932, %v928
    %v989 = vpack.c.b16 %v937, %v933
    %v990 = vpack.c.b16 %v938, %v934
    %v991 = vpack.c.b16 %v939, %v935
    %v992 = vpack.c.b16 %v940, %v936
    %v993 = vpack.c.b16 %v945, %v941
    %v994 = vpack.c.b16 %v946, %v942
    %v995 = vpack.c.b16 %v947, %v943
    %v996 = vpack.c.b16 %v948, %v944
    %v997 = vpack.c.b16 %v953, %v949
    %v998 = vpack.c.b16 %v954, %v950
    %v999 = vpack.c.b16 %v955, %v951
    %v1000 = vpack.c.b16 %v956, %v952
    %v1001 = vpack.c.b16 %v961, %v957
    %v1002 = vpack.c.b16 %v962, %v958
    %v1003 = vpack.c.b16 %v963, %v959
    %v1004 = vpack.c.b16 %v964, %v960
    %v1005 = vpack.c.b16 %v969, %v965
    %v1006 = vpack.c.b16 %v970, %v966
    %v1007 = vpack.c.b16 %v971, %v967
    %v1008 = vpack.c.b16 %v972, %v968
    %v1009 = vpack.c.b16 %v977, %v973
    %v1010 = vpack.c.b16 %v978, %v974
    %v1011 = vpack.c.b16 %v979, %v975
    %v1012 = vpack.c.b16 %v980, %v976
    %1045 = vmatprep.subr.bf16.mxu0 %v982
    %1046 = vmatpush1.bf16.msra.mxu0 %v981
    %1047 = vmatprep.subr.bf16.mxu0 %v986
    %1048 = vmatpush1.bf16.msra.mxu0 %v985
    %1049 = vmatprep.subr.bf16.mxu0 %v990
    %1050 = vmatpush1.bf16.msra.mxu0 %v989
    %1051 = vmatprep.subr.bf16.mxu0 %v994
    %1052 = vmatpush1.bf16.msra.mxu0 %v993
    %1053 = vmatprep.subr.bf16.mxu0 %v998
    %1054 = vmatpush1.bf16.msra.mxu0 %v997
    %1055 = vmatprep.subr.bf16.mxu0 %v1002
    %1056 = vmatpush1.bf16.msra.mxu0 %v1001
    %1057 = vmatprep.subr.bf16.mxu0 %v1006
    %1058 = vmatpush1.bf16.msra.mxu0 %v1005
    %1059 = vmatprep.subr.bf16.mxu0 %v1010
    %1060 = vmatpush1.bf16.msra.mxu0 %v1009
    %1061 = vmatprep.subr.bf16.mxu0 0
    %1062 = vmatpush1.bf16.msra.mxu0 0
    %1063 = vmatprep.subr.bf16.mxu0 0
    %1064 = vmatpush1.bf16.msra.mxu0 0
    %1065 = vmatprep.subr.bf16.mxu0 0
    %1066 = vmatpush1.bf16.msra.mxu0 0
    %1067 = vmatprep.subr.bf16.mxu0 0
    %1068 = vmatpush1.bf16.msra.mxu0 0
    %1069 = vmatprep.subr.bf16.mxu0 0
    %1070 = vmatpush1.bf16.msra.mxu0 0
    %1071 = vmatprep.subr.bf16.mxu0 0
    %1072 = vmatpush1.bf16.msra.mxu0 0
    %1073 = vmatprep.subr.bf16.mxu0 0
    %1074 = vmatpush1.bf16.msra.mxu0 0
    %1075 = vmatprep.subr.bf16.mxu0 0
    %1076 = vmatpush1.bf16.msra.mxu0 0
    %1077 = vmatprep.mubr.bf16.mxu0 0
    %1078 = vmatmul.mubr.bf16.gmra.mrb[0].mxu0 %v846
    %v1079 = vpop.f32.mrb[0].mxu0
    %v1080 = vadd.f32 0.0, %v1079
    %v1081 = vpop.f32.mrb[0].mxu0
    %v1082 = vadd.f32 0.0, %v1081
    %v1083 = vpop.f32.mrb[0].mxu0
    %v1084 = vpop.f32.mrb[0].mxu0
    %1085 = vdwg.mxu0
    %1086 = vmatprep.subr.bf16.mxu0 %v984
    %1087 = vmatpush1.bf16.msra.mxu0 %v983
    %1088 = vmatprep.subr.bf16.mxu0 %v988
    %1089 = vmatpush1.bf16.msra.mxu0 %v987
    %1090 = vmatprep.subr.bf16.mxu0 %v992
    %1091 = vmatpush1.bf16.msra.mxu0 %v991
    %1092 = vmatprep.subr.bf16.mxu0 %v996
    %1093 = vmatpush1.bf16.msra.mxu0 %v995
    %1094 = vmatprep.subr.bf16.mxu0 %v1000
    %1095 = vmatpush1.bf16.msra.mxu0 %v999
    %1096 = vmatprep.subr.bf16.mxu0 %v1004
    %1097 = vmatpush1.bf16.msra.mxu0 %v1003
    %1098 = vmatprep.subr.bf16.mxu0 %v1008
    %1099 = vmatpush1.bf16.msra.mxu0 %v1007
    %1100 = vmatprep.subr.bf16.mxu0 %v1012
    %1101 = vmatpush1.bf16.msra.mxu0 %v1011
    %1102 = vmatprep.subr.bf16.mxu0 0
    %1103 = vmatpush1.bf16.msra.mxu0 0
    %1104 = vmatprep.subr.bf16.mxu0 0
    %1105 = vmatpush1.bf16.msra.mxu0 0
    %1106 = vmatprep.subr.bf16.mxu0 0
    %1107 = vmatpush1.bf16.msra.mxu0 0
    %1108 = vmatprep.subr.bf16.mxu0 0
    %1109 = vmatpush1.bf16.msra.mxu0 0
    %1110 = vmatprep.subr.bf16.mxu0 0
    %1111 = vmatpush1.bf16.msra.mxu0 0
    %1112 = vmatprep.subr.bf16.mxu0 0
    %1113 = vmatpush1.bf16.msra.mxu0 0
    %1114 = vmatprep.subr.bf16.mxu0 0
    %1115 = vmatpush1.bf16.msra.mxu0 0
    %1116 = vmatprep.subr.bf16.mxu0 0
    %1117 = vmatpush1.bf16.msra.mxu0 0
    %1118 = vmatprep.mubr.bf16.mxu0 0
    %1119 = vmatmul.mubr.bf16.gmra.mrb[0].mxu0 %v846
    %v1120 = vpop.f32.mrb[0].mxu0
    %v1121 = vadd.f32 0.0, %v1120
    %v1122 = vpop.f32.mrb[0].mxu0
    %v1123 = vadd.f32 0.0, %v1122
    %v1124 = vpop.f32.mrb[0].mxu0
    %v1125 = vpop.f32.mrb[0].mxu0
    %1126 = vdwg.mxu0
    %v1127 = vadd.f32 %v849, %v1080
    %v1128 = vadd.f32 %v850, %v1082
    %v1129 = vadd.f32 %v851, %v1121
    %v1130 = vadd.f32 %v852, %v1123
    %v1131 = vxor.u32 %v1127, 2147483648
    %v1132 = vxor.u32 %v1128, 2147483648
    %v1133 = vxor.u32 %v1129, 2147483648
    %v1134 = vmul.f32 %v1131, 1.442695
    %v1135 = vpow.pop %v1134
    %v1136 = vmul.f32 %v1132, 1.442695
    %v1137 = vpow.pop %v1136
    %v1138 = vmul.f32 %v1133, 1.442695
    %v1139 = vpow.pop %v1138
    %v1140 = vadd.f32 %v1135, 1.0
    %v1141 = vadd.f32 %v1137, 1.0
    %v1142 = vadd.f32 %v1139, 1.0
    %v1143 = vrcp.pop %v1140
    %v1144 = vmul.f32 1.0, %v1143
    %v1145 = vrcp.pop %v1141
    %v1146 = vmul.f32 1.0, %v1145
    %v1147 = vrcp.pop %v1142
    %v1148 = vmul.f32 1.0, %v1147
    %v1149 = vtanh.pop %v1130
    %v1150 = vmul.f32 %v1146, %v843
    %v1151 = vmul.f32 %v1144, %v1149
    %v1152 = vadd.f32 %v1150, %v1151
    %v1153 = vtanh.pop %v1152
    %v1154 = vmul.f32 %v1148, %v1153
    %v1155 = vpack.c.bf16 %v1154, %v1154
    %s1156 = scalar_lea.vmem [#allocation3], 4
    %1157 = vst [vmem:[%s1156] sm:$0xf] %v1155
    %s1158 = scalar_lea.vmem [#allocation2], 64
    %v1159 = vld [vmem:[%s1158] sm:$0xff]
    %v1160 = vld [vmem:[%s1158 + $0x8] sm:$0xff]
    %v1161 = vld [vmem:[%s1158 + $0x10] sm:$0xff]
    %v1162 = vld [vmem:[%s1158 + $0x18] sm:$0xff]
    %v1163 = vld [vmem:[#allocation9] sm:$0xff]
    %v1164 = vld [vmem:[#allocation9 + $0x8] sm:$0xff]
    %v1165 = vld [vmem:[#allocation9 + $0x10] sm:$0xff]
    %v1166 = vld [vmem:[#allocation9 + $0x18] sm:$0xff]
    %v1167 = vld [vmem:[#allocation9 + $0x20] sm:$0xff]
    %v1168 = vld [vmem:[#allocation9 + $0x28] sm:$0xff]
    %v1169 = vld [vmem:[#allocation9 + $0x30] sm:$0xff]
    %v1170 = vld [vmem:[#allocation9 + $0x38] sm:$0xff]
    %v1171 = vld [vmem:[#allocation9 + $0x40] sm:$0xff]
    %v1172 = vld [vmem:[#allocation9 + $0x48] sm:$0xff]
    %v1173 = vld [vmem:[#allocation9 + $0x50] sm:$0xff]
    %v1174 = vld [vmem:[#allocation9 + $0x58] sm:$0xff]
    %v1175 = vld [vmem:[#allocation9 + $0x60] sm:$0xff]
    %v1176 = vld [vmem:[#allocation9 + $0x68] sm:$0xff]
    %v1177 = vld [vmem:[#allocation9 + $0x70] sm:$0xff]
    %v1178 = vld [vmem:[#allocation9 + $0x78] sm:$0xff]
    %v1179 = vld [vmem:[#allocation9 + $0x80] sm:$0xff]
    %v1180 = vld [vmem:[#allocation9 + $0x88] sm:$0xff]
    %v1181 = vld [vmem:[#allocation9 + $0x90] sm:$0xff]
    %v1182 = vld [vmem:[#allocation9 + $0x98] sm:$0xff]
    %v1183 = vld [vmem:[#allocation9 + $0xa0] sm:$0xff]
    %v1184 = vld [vmem:[#allocation9 + $0xa8] sm:$0xff]
    %v1185 = vld [vmem:[#allocation9 + $0xb0] sm:$0xff]
    %v1186 = vld [vmem:[#allocation9 + $0xb8] sm:$0xff]
    %v1187 = vld [vmem:[#allocation9 + $0xc0] sm:$0xff]
    %v1188 = vld [vmem:[#allocation9 + $0xc8] sm:$0xff]
    %v1189 = vld [vmem:[#allocation9 + $0xd0] sm:$0xff]
    %v1190 = vld [vmem:[#allocation9 + $0xd8] sm:$0xff]
    %v1191 = vld [vmem:[#allocation9 + $0xe0] sm:$0xff]
    %v1192 = vld [vmem:[#allocation9 + $0xe8] sm:$0xff]
    %v1193 = vld [vmem:[#allocation9 + $0xf0] sm:$0xff]
    %v1194 = vld [vmem:[#allocation9 + $0xf8] sm:$0xff]
    %v1227 = vunpack.c.l.b16 %v1163
    %v1228 = vunpack.c.h.b16 %v1163
    %v1229 = vunpack.c.l.b16 %v1164
    %v1230 = vunpack.c.h.b16 %v1164
    %v1231 = vunpack.c.l.b16 %v1165
    %v1232 = vunpack.c.h.b16 %v1165
    %v1233 = vunpack.c.l.b16 %v1166
    %v1234 = vunpack.c.h.b16 %v1166
    %v1235 = vunpack.c.l.b16 %v1167
    %v1236 = vunpack.c.h.b16 %v1167
    %v1237 = vunpack.c.l.b16 %v1168
    %v1238 = vunpack.c.h.b16 %v1168
    %v1239 = vunpack.c.l.b16 %v1169
    %v1240 = vunpack.c.h.b16 %v1169
    %v1241 = vunpack.c.l.b16 %v1170
    %v1242 = vunpack.c.h.b16 %v1170
    %v1243 = vunpack.c.l.b16 %v1171
    %v1244 = vunpack.c.h.b16 %v1171
    %v1245 = vunpack.c.l.b16 %v1172
    %v1246 = vunpack.c.h.b16 %v1172
    %v1247 = vunpack.c.l.b16 %v1173
    %v1248 = vunpack.c.h.b16 %v1173
    %v1249 = vunpack.c.l.b16 %v1174
    %v1250 = vunpack.c.h.b16 %v1174
    %v1251 = vunpack.c.l.b16 %v1175
    %v1252 = vunpack.c.h.b16 %v1175
    %v1253 = vunpack.c.l.b16 %v1176
    %v1254 = vunpack.c.h.b16 %v1176
    %v1255 = vunpack.c.l.b16 %v1177
    %v1256 = vunpack.c.h.b16 %v1177
    %v1257 = vunpack.c.l.b16 %v1178
    %v1258 = vunpack.c.h.b16 %v1178
    %v1259 = vunpack.c.l.b16 %v1179
    %v1260 = vunpack.c.h.b16 %v1179
    %v1261 = vunpack.c.l.b16 %v1180
    %v1262 = vunpack.c.h.b16 %v1180
    %v1263 = vunpack.c.l.b16 %v1181
    %v1264 = vunpack.c.h.b16 %v1181
    %v1265 = vunpack.c.l.b16 %v1182
    %v1266 = vunpack.c.h.b16 %v1182
    %v1267 = vunpack.c.l.b16 %v1183
    %v1268 = vunpack.c.h.b16 %v1183
    %v1269 = vunpack.c.l.b16 %v1184
    %v1270 = vunpack.c.h.b16 %v1184
    %v1271 = vunpack.c.l.b16 %v1185
    %v1272 = vunpack.c.h.b16 %v1185
    %v1273 = vunpack.c.l.b16 %v1186
    %v1274 = vunpack.c.h.b16 %v1186
    %v1275 = vunpack.c.l.b16 %v1187
    %v1276 = vunpack.c.h.b16 %v1187
    %v1277 = vunpack.c.l.b16 %v1188
    %v1278 = vunpack.c.h.b16 %v1188
    %v1279 = vunpack.c.l.b16 %v1189
    %v1280 = vunpack.c.h.b16 %v1189
    %v1281 = vunpack.c.l.b16 %v1190
    %v1282 = vunpack.c.h.b16 %v1190
    %v1283 = vunpack.c.l.b16 %v1191
    %v1284 = vunpack.c.h.b16 %v1191
    %v1285 = vunpack.c.l.b16 %v1192
    %v1286 = vunpack.c.h.b16 %v1192
    %v1287 = vunpack.c.l.b16 %v1193
    %v1288 = vunpack.c.h.b16 %v1193
    %v1289 = vunpack.c.l.b16 %v1194
    %v1290 = vunpack.c.h.b16 %v1194
    %v1291 = vpack.c.b16 %v1231, %v1227
    %v1292 = vpack.c.b16 %v1232, %v1228
    %v1293 = vpack.c.b16 %v1233, %v1229
    %v1294 = vpack.c.b16 %v1234, %v1230
    %v1295 = vpack.c.b16 %v1239, %v1235
    %v1296 = vpack.c.b16 %v1240, %v1236
    %v1297 = vpack.c.b16 %v1241, %v1237
    %v1298 = vpack.c.b16 %v1242, %v1238
    %v1299 = vpack.c.b16 %v1247, %v1243
    %v1300 = vpack.c.b16 %v1248, %v1244
    %v1301 = vpack.c.b16 %v1249, %v1245
    %v1302 = vpack.c.b16 %v1250, %v1246
    %v1303 = vpack.c.b16 %v1255, %v1251
    %v1304 = vpack.c.b16 %v1256, %v1252
    %v1305 = vpack.c.b16 %v1257, %v1253
    %v1306 = vpack.c.b16 %v1258, %v1254
    %v1307 = vpack.c.b16 %v1263, %v1259
    %v1308 = vpack.c.b16 %v1264, %v1260
    %v1309 = vpack.c.b16 %v1265, %v1261
    %v1310 = vpack.c.b16 %v1266, %v1262
    %v1311 = vpack.c.b16 %v1271, %v1267
    %v1312 = vpack.c.b16 %v1272, %v1268
    %v1313 = vpack.c.b16 %v1273, %v1269
    %v1314 = vpack.c.b16 %v1274, %v1270
    %v1315 = vpack.c.b16 %v1279, %v1275
    %v1316 = vpack.c.b16 %v1280, %v1276
    %v1317 = vpack.c.b16 %v1281, %v1277
    %v1318 = vpack.c.b16 %v1282, %v1278
    %v1319 = vpack.c.b16 %v1287, %v1283
    %v1320 = vpack.c.b16 %v1288, %v1284
    %v1321 = vpack.c.b16 %v1289, %v1285
    %v1322 = vpack.c.b16 %v1290, %v1286
    %1355 = vmatprep.subr.bf16.mxu0 %v1292
    %1356 = vmatpush1.bf16.msra.mxu0 %v1291
    %1357 = vmatprep.subr.bf16.mxu0 %v1296
    %1358 = vmatpush1.bf16.msra.mxu0 %v1295
    %1359 = vmatprep.subr.bf16.mxu0 %v1300
    %1360 = vmatpush1.bf16.msra.mxu0 %v1299
    %1361 = vmatprep.subr.bf16.mxu0 %v1304
    %1362 = vmatpush1.bf16.msra.mxu0 %v1303
    %1363 = vmatprep.subr.bf16.mxu0 %v1308
    %1364 = vmatpush1.bf16.msra.mxu0 %v1307
    %1365 = vmatprep.subr.bf16.mxu0 %v1312
    %1366 = vmatpush1.bf16.msra.mxu0 %v1311
    %1367 = vmatprep.subr.bf16.mxu0 %v1316
    %1368 = vmatpush1.bf16.msra.mxu0 %v1315
    %1369 = vmatprep.subr.bf16.mxu0 %v1320
    %1370 = vmatpush1.bf16.msra.mxu0 %v1319
    %1371 = vmatprep.subr.bf16.mxu0 0
    %1372 = vmatpush1.bf16.msra.mxu0 0
    %1373 = vmatprep.subr.bf16.mxu0 0
    %1374 = vmatpush1.bf16.msra.mxu0 0
    %1375 = vmatprep.subr.bf16.mxu0 0
    %1376 = vmatpush1.bf16.msra.mxu0 0
    %1377 = vmatprep.subr.bf16.mxu0 0
    %1378 = vmatpush1.bf16.msra.mxu0 0
    %1379 = vmatprep.subr.bf16.mxu0 0
    %1380 = vmatpush1.bf16.msra.mxu0 0
    %1381 = vmatprep.subr.bf16.mxu0 0
    %1382 = vmatpush1.bf16.msra.mxu0 0
    %1383 = vmatprep.subr.bf16.mxu0 0
    %1384 = vmatpush1.bf16.msra.mxu0 0
    %1385 = vmatprep.subr.bf16.mxu0 0
    %1386 = vmatpush1.bf16.msra.mxu0 0
    %1387 = vmatprep.mubr.bf16.mxu0 0
    %1388 = vmatmul.mubr.bf16.gmra.mrb[0].mxu0 %v1155
    %v1389 = vpop.f32.mrb[0].mxu0
    %v1390 = vadd.f32 0.0, %v1389
    %v1391 = vpop.f32.mrb[0].mxu0
    %v1392 = vadd.f32 0.0, %v1391
    %v1393 = vpop.f32.mrb[0].mxu0
    %v1394 = vpop.f32.mrb[0].mxu0
    %1395 = vdwg.mxu0
    %1396 = vmatprep.subr.bf16.mxu0 %v1294
    %1397 = vmatpush1.bf16.msra.mxu0 %v1293
    %1398 = vmatprep.subr.bf16.mxu0 %v1298
    %1399 = vmatpush1.bf16.msra.mxu0 %v1297
    %1400 = vmatprep.subr.bf16.mxu0 %v1302
    %1401 = vmatpush1.bf16.msra.mxu0 %v1301
    %1402 = vmatprep.subr.bf16.mxu0 %v1306
    %1403 = vmatpush1.bf16.msra.mxu0 %v1305
    %1404 = vmatprep.subr.bf16.mxu0 %v1310
    %1405 = vmatpush1.bf16.msra.mxu0 %v1309
    %1406 = vmatprep.subr.bf16.mxu0 %v1314
    %1407 = vmatpush1.bf16.msra.mxu0 %v1313
    %1408 = vmatprep.subr.bf16.mxu0 %v1318
    %1409 = vmatpush1.bf16.msra.mxu0 %v1317
    %1410 = vmatprep.subr.bf16.mxu0 %v1322
    %1411 = vmatpush1.bf16.msra.mxu0 %v1321
    %1412 = vmatprep.subr.bf16.mxu0 0
    %1413 = vmatpush1.bf16.msra.mxu0 0
    %1414 = vmatprep.subr.bf16.mxu0 0
    %1415 = vmatpush1.bf16.msra.mxu0 0
    %1416 = vmatprep.subr.bf16.mxu0 0
    %1417 = vmatpush1.bf16.msra.mxu0 0
    %1418 = vmatprep.subr.bf16.mxu0 0
    %1419 = vmatpush1.bf16.msra.mxu0 0
    %1420 = vmatprep.subr.bf16.mxu0 0
    %1421 = vmatpush1.bf16.msra.mxu0 0
    %1422 = vmatprep.subr.bf16.mxu0 0
    %1423 = vmatpush1.bf16.msra.mxu0 0
    %1424 = vmatprep.subr.bf16.mxu0 0
    %1425 = vmatpush1.bf16.msra.mxu0 0
    %1426 = vmatprep.subr.bf16.mxu0 0
    %1427 = vmatpush1.bf16.msra.mxu0 0
    %1428 = vmatprep.mubr.bf16.mxu0 0
    %1429 = vmatmul.mubr.bf16.gmra.mrb[0].mxu0 %v1155
    %v1430 = vpop.f32.mrb[0].mxu0
    %v1431 = vadd.f32 0.0, %v1430
    %v1432 = vpop.f32.mrb[0].mxu0
    %v1433 = vadd.f32 0.0, %v1432
    %v1434 = vpop.f32.mrb[0].mxu0
    %v1435 = vpop.f32.mrb[0].mxu0
    %1436 = vdwg.mxu0
    %v1437 = vadd.f32 %v1159, %v1390
    %v1438 = vadd.f32 %v1160, %v1392
    %v1439 = vadd.f32 %v1161, %v1431
    %v1440 = vadd.f32 %v1162, %v1433
    %v1441 = vxor.u32 %v1437, 2147483648
    %v1442 = vxor.u32 %v1438, 2147483648
    %v1443 = vxor.u32 %v1439, 2147483648
    %v1444 = vmul.f32 %v1441, 1.442695
    %v1445 = vpow.pop %v1444
    %v1446 = vmul.f32 %v1442, 1.442695
    %v1447 = vpow.pop %v1446
    %v1448 = vmul.f32 %v1443, 1.442695
    %v1449 = vpow.pop %v1448
    %v1450 = vadd.f32 %v1445, 1.0
    %v1451 = vadd.f32 %v1447, 1.0
    %v1452 = vadd.f32 %v1449, 1.0
    %v1453 = vrcp.pop %v1450
    %v1454 = vmul.f32 1.0, %v1453
    %v1455 = vrcp.pop %v1451
    %v1456 = vmul.f32 1.0, %v1455
    %v1457 = vrcp.pop %v1452
    %v1458 = vmul.f32 1.0, %v1457
    %v1459 = vtanh.pop %v1440
    %v1460 = vmul.f32 %v1456, %v1152
    %v1461 = vmul.f32 %v1454, %v1459
    %v1462 = vadd.f32 %v1460, %v1461
    %v1463 = vtanh.pop %v1462
    %v1464 = vmul.f32 %v1458, %v1463
    %v1465 = vpack.c.bf16 %v1464, %v1464
    %s1466 = scalar_lea.vmem [#allocation3], 8
    %1467 = vst [vmem:[%s1466] sm:$0xf] %v1465
    %s1468 = scalar_lea.vmem [#allocation2], 96
    %v1469 = vld [vmem:[%s1468] sm:$0xff]
    %v1470 = vld [vmem:[%s1468 + $0x8] sm:$0xff]
    %v1471 = vld [vmem:[%s1468 + $0x10] sm:$0xff]
    %v1472 = vld [vmem:[%s1468 + $0x18] sm:$0xff]
    %v1473 = vld [vmem:[#allocation9] sm:$0xff]
    %v1474 = vld [vmem:[#allocation9 + $0x8] sm:$0xff]
    %v1475 = vld [vmem:[#allocation9 + $0x10] sm:$0xff]
    %v1476 = vld [vmem:[#allocation9 + $0x18] sm:$0xff]
    %v1477 = vld [vmem:[#allocation9 + $0x20] sm:$0xff]
    %v1478 = vld [vmem:[#allocation9 + $0x28] sm:$0xff]
    %v1479 = vld [vmem:[#allocation9 + $0x30] sm:$0xff]
    %v1480 = vld [vmem:[#allocation9 + $0x38] sm:$0xff]
    %v1481 = vld [vmem:[#allocation9 + $0x40] sm:$0xff]
    %v1482 = vld [vmem:[#allocation9 + $0x48] sm:$0xff]
    %v1483 = vld [vmem:[#allocation9 + $0x50] sm:$0xff]
    %v1484 = vld [vmem:[#allocation9 + $0x58] sm:$0xff]
    %v1485 = vld [vmem:[#allocation9 + $0x60] sm:$0xff]
    %v1486 = vld [vmem:[#allocation9 + $0x68] sm:$0xff]
    %v1487 = vld [vmem:[#allocation9 + $0x70] sm:$0xff]
    %v1488 = vld [vmem:[#allocation9 + $0x78] sm:$0xff]
    %v1489 = vld [vmem:[#allocation9 + $0x80] sm:$0xff]
    %v1490 = vld [vmem:[#allocation9 + $0x88] sm:$0xff]
    %v1491 = vld [vmem:[#allocation9 + $0x90] sm:$0xff]
    %v1492 = vld [vmem:[#allocation9 + $0x98] sm:$0xff]
    %v1493 = vld [vmem:[#allocation9 + $0xa0] sm:$0xff]
    %v1494 = vld [vmem:[#allocation9 + $0xa8] sm:$0xff]
    %v1495 = vld [vmem:[#allocation9 + $0xb0] sm:$0xff]
    %v1496 = vld [vmem:[#allocation9 + $0xb8] sm:$0xff]
    %v1497 = vld [vmem:[#allocation9 + $0xc0] sm:$0xff]
    %v1498 = vld [vmem:[#allocation9 + $0xc8] sm:$0xff]
    %v1499 = vld [vmem:[#allocation9 + $0xd0] sm:$0xff]
    %v1500 = vld [vmem:[#allocation9 + $0xd8] sm:$0xff]
    %v1501 = vld [vmem:[#allocation9 + $0xe0] sm:$0xff]
    %v1502 = vld [vmem:[#allocation9 + $0xe8] sm:$0xff]
    %v1503 = vld [vmem:[#allocation9 + $0xf0] sm:$0xff]
    %v1504 = vld [vmem:[#allocation9 + $0xf8] sm:$0xff]
    %v1537 = vunpack.c.l.b16 %v1473
    %v1538 = vunpack.c.h.b16 %v1473
    %v1539 = vunpack.c.l.b16 %v1474
    %v1540 = vunpack.c.h.b16 %v1474
    %v1541 = vunpack.c.l.b16 %v1475
    %v1542 = vunpack.c.h.b16 %v1475
    %v1543 = vunpack.c.l.b16 %v1476
    %v1544 = vunpack.c.h.b16 %v1476
    %v1545 = vunpack.c.l.b16 %v1477
    %v1546 = vunpack.c.h.b16 %v1477
    %v1547 = vunpack.c.l.b16 %v1478
    %v1548 = vunpack.c.h.b16 %v1478
    %v1549 = vunpack.c.l.b16 %v1479
    %v1550 = vunpack.c.h.b16 %v1479
    %v1551 = vunpack.c.l.b16 %v1480
    %v1552 = vunpack.c.h.b16 %v1480
    %v1553 = vunpack.c.l.b16 %v1481
    %v1554 = vunpack.c.h.b16 %v1481
    %v1555 = vunpack.c.l.b16 %v1482
    %v1556 = vunpack.c.h.b16 %v1482
    %v1557 = vunpack.c.l.b16 %v1483
    %v1558 = vunpack.c.h.b16 %v1483
    %v1559 = vunpack.c.l.b16 %v1484
    %v1560 = vunpack.c.h.b16 %v1484
    %v1561 = vunpack.c.l.b16 %v1485
    %v1562 = vunpack.c.h.b16 %v1485
    %v1563 = vunpack.c.l.b16 %v1486
    %v1564 = vunpack.c.h.b16 %v1486
    %v1565 = vunpack.c.l.b16 %v1487
    %v1566 = vunpack.c.h.b16 %v1487
    %v1567 = vunpack.c.l.b16 %v1488
    %v1568 = vunpack.c.h.b16 %v1488
    %v1569 = vunpack.c.l.b16 %v1489
    %v1570 = vunpack.c.h.b16 %v1489
    %v1571 = vunpack.c.l.b16 %v1490
    %v1572 = vunpack.c.h.b16 %v1490
    %v1573 = vunpack.c.l.b16 %v1491
    %v1574 = vunpack.c.h.b16 %v1491
    %v1575 = vunpack.c.l.b16 %v1492
    %v1576 = vunpack.c.h.b16 %v1492
    %v1577 = vunpack.c.l.b16 %v1493
    %v1578 = vunpack.c.h.b16 %v1493
    %v1579 = vunpack.c.l.b16 %v1494
    %v1580 = vunpack.c.h.b16 %v1494
    %v1581 = vunpack.c.l.b16 %v1495
    %v1582 = vunpack.c.h.b16 %v1495
    %v1583 = vunpack.c.l.b16 %v1496
    %v1584 = vunpack.c.h.b16 %v1496
    %v1585 = vunpack.c.l.b16 %v1497
    %v1586 = vunpack.c.h.b16 %v1497
    %v1587 = vunpack.c.l.b16 %v1498
    %v1588 = vunpack.c.h.b16 %v1498
    %v1589 = vunpack.c.l.b16 %v1499
    %v1590 = vunpack.c.h.b16 %v1499
    %v1591 = vunpack.c.l.b16 %v1500
    %v1592 = vunpack.c.h.b16 %v1500
    %v1593 = vunpack.c.l.b16 %v1501
    %v1594 = vunpack.c.h.b16 %v1501
    %v1595 = vunpack.c.l.b16 %v1502
    %v1596 = vunpack.c.h.b16 %v1502
    %v1597 = vunpack.c.l.b16 %v1503
    %v1598 = vunpack.c.h.b16 %v1503
    %v1599 = vunpack.c.l.b16 %v1504
    %v1600 = vunpack.c.h.b16 %v1504
    %v1601 = vpack.c.b16 %v1541, %v1537
    %v1602 = vpack.c.b16 %v1542, %v1538
    %v1603 = vpack.c.b16 %v1543, %v1539
    %v1604 = vpack.c.b16 %v1544, %v1540
    %v1605 = vpack.c.b16 %v1549, %v1545
    %v1606 = vpack.c.b16 %v1550, %v1546
    %v1607 = vpack.c.b16 %v1551, %v1547
    %v1608 = vpack.c.b16 %v1552, %v1548
    %v1609 = vpack.c.b16 %v1557, %v1553
    %v1610 = vpack.c.b16 %v1558, %v1554
    %v1611 = vpack.c.b16 %v1559, %v1555
    %v1612 = vpack.c.b16 %v1560, %v1556
    %v1613 = vpack.c.b16 %v1565, %v1561
    %v1614 = vpack.c.b16 %v1566, %v1562
    %v1615 = vpack.c.b16 %v1567, %v1563
    %v1616 = vpack.c.b16 %v1568, %v1564
    %v1617 = vpack.c.b16 %v1573, %v1569
    %v1618 = vpack.c.b16 %v1574, %v1570
    %v1619 = vpack.c.b16 %v1575, %v1571
    %v1620 = vpack.c.b16 %v1576, %v1572
    %v1621 = vpack.c.b16 %v1581, %v1577
    %v1622 = vpack.c.b16 %v1582, %v1578
    %v1623 = vpack.c.b16 %v1583, %v1579
    %v1624 = vpack.c.b16 %v1584, %v1580
    %v1625 = vpack.c.b16 %v1589, %v1585
    %v1626 = vpack.c.b16 %v1590, %v1586
    %v1627 = vpack.c.b16 %v1591, %v1587
    %v1628 = vpack.c.b16 %v1592, %v1588
    %v1629 = vpack.c.b16 %v1597, %v1593
    %v1630 = vpack.c.b16 %v1598, %v1594
    %v1631 = vpack.c.b16 %v1599, %v1595
    %v1632 = vpack.c.b16 %v1600, %v1596
    %1665 = vmatprep.subr.bf16.mxu0 %v1602
    %1666 = vmatpush1.bf16.msra.mxu0 %v1601
    %1667 = vmatprep.subr.bf16.mxu0 %v1606
    %1668 = vmatpush1.bf16.msra.mxu0 %v1605
    %1669 = vmatprep.subr.bf16.mxu0 %v1610
    %1670 = vmatpush1.bf16.msra.mxu0 %v1609
    %1671 = vmatprep.subr.bf16.mxu0 %v1614
    %1672 = vmatpush1.bf16.msra.mxu0 %v1613
    %1673 = vmatprep.subr.bf16.mxu0 %v1618
    %1674 = vmatpush1.bf16.msra.mxu0 %v1617
    %1675 = vmatprep.subr.bf16.mxu0 %v1622
    %1676 = vmatpush1.bf16.msra.mxu0 %v1621
    %1677 = vmatprep.subr.bf16.mxu0 %v1626
    %1678 = vmatpush1.bf16.msra.mxu0 %v1625
    %1679 = vmatprep.subr.bf16.mxu0 %v1630
    %1680 = vmatpush1.bf16.msra.mxu0 %v1629
    %1681 = vmatprep.subr.bf16.mxu0 0
    %1682 = vmatpush1.bf16.msra.mxu0 0
    %1683 = vmatprep.subr.bf16.mxu0 0
    %1684 = vmatpush1.bf16.msra.mxu0 0
    %1685 = vmatprep.subr.bf16.mxu0 0
    %1686 = vmatpush1.bf16.msra.mxu0 0
    %1687 = vmatprep.subr.bf16.mxu0 0
    %1688 = vmatpush1.bf16.msra.mxu0 0
    %1689 = vmatprep.subr.bf16.mxu0 0
    %1690 = vmatpush1.bf16.msra.mxu0 0
    %1691 = vmatprep.subr.bf16.mxu0 0
    %1692 = vmatpush1.bf16.msra.mxu0 0
    %1693 = vmatprep.subr.bf16.mxu0 0
    %1694 = vmatpush1.bf16.msra.mxu0 0
    %1695 = vmatprep.subr.bf16.mxu0 0
    %1696 = vmatpush1.bf16.msra.mxu0 0
    %1697 = vmatprep.mubr.bf16.mxu0 0
    %1698 = vmatmul.mubr.bf16.gmra.mrb[0].mxu0 %v1465
    %v1699 = vpop.f32.mrb[0].mxu0
    %v1700 = vadd.f32 0.0, %v1699
    %v1701 = vpop.f32.mrb[0].mxu0
    %v1702 = vadd.f32 0.0, %v1701
    %v1703 = vpop.f32.mrb[0].mxu0
    %v1704 = vpop.f32.mrb[0].mxu0
    %1705 = vdwg.mxu0
    %1706 = vmatprep.subr.bf16.mxu0 %v1604
    %1707 = vmatpush1.bf16.msra.mxu0 %v1603
    %1708 = vmatprep.subr.bf16.mxu0 %v1608
    %1709 = vmatpush1.bf16.msra.mxu0 %v1607
    %1710 = vmatprep.subr.bf16.mxu0 %v1612
    %1711 = vmatpush1.bf16.msra.mxu0 %v1611
    %1712 = vmatprep.subr.bf16.mxu0 %v1616
    %1713 = vmatpush1.bf16.msra.mxu0 %v1615
    %1714 = vmatprep.subr.bf16.mxu0 %v1620
    %1715 = vmatpush1.bf16.msra.mxu0 %v1619
    %1716 = vmatprep.subr.bf16.mxu0 %v1624
    %1717 = vmatpush1.bf16.msra.mxu0 %v1623
    %1718 = vmatprep.subr.bf16.mxu0 %v1628
    %1719 = vmatpush1.bf16.msra.mxu0 %v1627
    %1720 = vmatprep.subr.bf16.mxu0 %v1632
    %1721 = vmatpush1.bf16.msra.mxu0 %v1631
    %1722 = vmatprep.subr.bf16.mxu0 0
    %1723 = vmatpush1.bf16.msra.mxu0 0
    %1724 = vmatprep.subr.bf16.mxu0 0
    %1725 = vmatpush1.bf16.msra.mxu0 0
    %1726 = vmatprep.subr.bf16.mxu0 0
    %1727 = vmatpush1.bf16.msra.mxu0 0
    %1728 = vmatprep.subr.bf16.mxu0 0
    %1729 = vmatpush1.bf16.msra.mxu0 0
    %1730 = vmatprep.subr.bf16.mxu0 0
    %1731 = vmatpush1.bf16.msra.mxu0 0
    %1732 = vmatprep.subr.bf16.mxu0 0
    %1733 = vmatpush1.bf16.msra.mxu0 0
    %1734 = vmatprep.subr.bf16.mxu0 0
    %1735 = vmatpush1.bf16.msra.mxu0 0
    %1736 = vmatprep.subr.bf16.mxu0 0
    %1737 = vmatpush1.bf16.msra.mxu0 0
    %1738 = vmatprep.mubr.bf16.mxu0 0
    %1739 = vmatmul.mubr.bf16.gmra.mrb[0].mxu0 %v1465
    %v1740 = vpop.f32.mrb[0].mxu0
    %v1741 = vadd.f32 0.0, %v1740
    %v1742 = vpop.f32.mrb[0].mxu0
    %v1743 = vadd.f32 0.0, %v1742
    %v1744 = vpop.f32.mrb[0].mxu0
    %v1745 = vpop.f32.mrb[0].mxu0
    %1746 = vdwg.mxu0
    %v1747 = vadd.f32 %v1469, %v1700
    %v1748 = vadd.f32 %v1470, %v1702
    %v1749 = vadd.f32 %v1471, %v1741
    %v1750 = vadd.f32 %v1472, %v1743
    %v1751 = vxor.u32 %v1747, 2147483648
    %v1752 = vxor.u32 %v1748, 2147483648
    %v1753 = vxor.u32 %v1749, 2147483648
    %v1754 = vmul.f32 %v1751, 1.442695
    %v1755 = vpow.pop %v1754
    %v1756 = vmul.f32 %v1752, 1.442695
    %v1757 = vpow.pop %v1756
    %v1758 = vmul.f32 %v1753, 1.442695
    %v1759 = vpow.pop %v1758
    %v1760 = vadd.f32 %v1755, 1.0
    %v1761 = vadd.f32 %v1757, 1.0
    %v1762 = vadd.f32 %v1759, 1.0
    %v1763 = vrcp.pop %v1760
    %v1764 = vmul.f32 1.0, %v1763
    %v1765 = vrcp.pop %v1761
    %v1766 = vmul.f32 1.0, %v1765
    %v1767 = vrcp.pop %v1762
    %v1768 = vmul.f32 1.0, %v1767
    %v1769 = vtanh.pop %v1750
    %v1770 = vmul.f32 %v1766, %v1462
    %v1771 = vmul.f32 %v1764, %v1769
    %v1772 = vadd.f32 %v1770, %v1771
    %v1773 = vtanh.pop %v1772
    %v1774 = vmul.f32 %v1768, %v1773
    %v1775 = vpack.c.bf16 %v1774, %v1774
    %s1776 = scalar_lea.vmem [#allocation3], 12
    %1777 = vst [vmem:[%s1776] sm:$0xf] %v1775
    %s1778 = scalar_lea.vmem [#allocation2], 128
    %v1779 = vld [vmem:[%s1778] sm:$0xff]
    %v1780 = vld [vmem:[%s1778 + $0x8] sm:$0xff]
    %v1781 = vld [vmem:[%s1778 + $0x10] sm:$0xff]
    %v1782 = vld [vmem:[%s1778 + $0x18] sm:$0xff]
    %v1783 = vld [vmem:[#allocation9] sm:$0xff]
    %v1784 = vld [vmem:[#allocation9 + $0x8] sm:$0xff]
    %v1785 = vld [vmem:[#allocation9 + $0x10] sm:$0xff]
    %v1786 = vld [vmem:[#allocation9 + $0x18] sm:$0xff]
    %v1787 = vld [vmem:[#allocation9 + $0x20] sm:$0xff]
    %v1788 = vld [vmem:[#allocation9 + $0x28] sm:$0xff]
    %v1789 = vld [vmem:[#allocation9 + $0x30] sm:$0xff]
    %v1790 = vld [vmem:[#allocation9 + $0x38] sm:$0xff]
    %v1791 = vld [vmem:[#allocation9 + $0x40] sm:$0xff]
    %v1792 = vld [vmem:[#allocation9 + $0x48] sm:$0xff]
    %v1793 = vld [vmem:[#allocation9 + $0x50] sm:$0xff]
    %v1794 = vld [vmem:[#allocation9 + $0x58] sm:$0xff]
    %v1795 = vld [vmem:[#allocation9 + $0x60] sm:$0xff]
    %v1796 = vld [vmem:[#allocation9 + $0x68] sm:$0xff]
    %v1797 = vld [vmem:[#allocation9 + $0x70] sm:$0xff]
    %v1798 = vld [vmem:[#allocation9 + $0x78] sm:$0xff]
    %v1799 = vld [vmem:[#allocation9 + $0x80] sm:$0xff]
    %v1800 = vld [vmem:[#allocation9 + $0x88] sm:$0xff]
    %v1801 = vld [vmem:[#allocation9 + $0x90] sm:$0xff]
    %v1802 = vld [vmem:[#allocation9 + $0x98] sm:$0xff]
    %v1803 = vld [vmem:[#allocation9 + $0xa0] sm:$0xff]
    %v1804 = vld [vmem:[#allocation9 + $0xa8] sm:$0xff]
    %v1805 = vld [vmem:[#allocation9 + $0xb0] sm:$0xff]
    %v1806 = vld [vmem:[#allocation9 + $0xb8] sm:$0xff]
    %v1807 = vld [vmem:[#allocation9 + $0xc0] sm:$0xff]
    %v1808 = vld [vmem:[#allocation9 + $0xc8] sm:$0xff]
    %v1809 = vld [vmem:[#allocation9 + $0xd0] sm:$0xff]
    %v1810 = vld [vmem:[#allocation9 + $0xd8] sm:$0xff]
    %v1811 = vld [vmem:[#allocation9 + $0xe0] sm:$0xff]
    %v1812 = vld [vmem:[#allocation9 + $0xe8] sm:$0xff]
    %v1813 = vld [vmem:[#allocation9 + $0xf0] sm:$0xff]
    %v1814 = vld [vmem:[#allocation9 + $0xf8] sm:$0xff]
    %v1847 = vunpack.c.l.b16 %v1783
    %v1848 = vunpack.c.h.b16 %v1783
    %v1849 = vunpack.c.l.b16 %v1784
    %v1850 = vunpack.c.h.b16 %v1784
    %v1851 = vunpack.c.l.b16 %v1785
    %v1852 = vunpack.c.h.b16 %v1785
    %v1853 = vunpack.c.l.b16 %v1786
    %v1854 = vunpack.c.h.b16 %v1786
    %v1855 = vunpack.c.l.b16 %v1787
    %v1856 = vunpack.c.h.b16 %v1787
    %v1857 = vunpack.c.l.b16 %v1788
    %v1858 = vunpack.c.h.b16 %v1788
    %v1859 = vunpack.c.l.b16 %v1789
    %v1860 = vunpack.c.h.b16 %v1789
    %v1861 = vunpack.c.l.b16 %v1790
    %v1862 = vunpack.c.h.b16 %v1790
    %v1863 = vunpack.c.l.b16 %v1791
    %v1864 = vunpack.c.h.b16 %v1791
    %v1865 = vunpack.c.l.b16 %v1792
    %v1866 = vunpack.c.h.b16 %v1792
    %v1867 = vunpack.c.l.b16 %v1793
    %v1868 = vunpack.c.h.b16 %v1793
    %v1869 = vunpack.c.l.b16 %v1794
    %v1870 = vunpack.c.h.b16 %v1794
    %v1871 = vunpack.c.l.b16 %v1795
    %v1872 = vunpack.c.h.b16 %v1795
    %v1873 = vunpack.c.l.b16 %v1796
    %v1874 = vunpack.c.h.b16 %v1796
    %v1875 = vunpack.c.l.b16 %v1797
    %v1876 = vunpack.c.h.b16 %v1797
    %v1877 = vunpack.c.l.b16 %v1798
    %v1878 = vunpack.c.h.b16 %v1798
    %v1879 = vunpack.c.l.b16 %v1799
    %v1880 = vunpack.c.h.b16 %v1799
    %v1881 = vunpack.c.l.b16 %v1800
    %v1882 = vunpack.c.h.b16 %v1800
    %v1883 = vunpack.c.l.b16 %v1801
    %v1884 = vunpack.c.h.b16 %v1801
    %v1885 = vunpack.c.l.b16 %v1802
    %v1886 = vunpack.c.h.b16 %v1802
    %v1887 = vunpack.c.l.b16 %v1803
    %v1888 = vunpack.c.h.b16 %v1803
    %v1889 = vunpack.c.l.b16 %v1804
    %v1890 = vunpack.c.h.b16 %v1804
    %v1891 = vunpack.c.l.b16 %v1805
    %v1892 = vunpack.c.h.b16 %v1805
    %v1893 = vunpack.c.l.b16 %v1806
    %v1894 = vunpack.c.h.b16 %v1806
    %v1895 = vunpack.c.l.b16 %v1807
    %v1896 = vunpack.c.h.b16 %v1807
    %v1897 = vunpack.c.l.b16 %v1808
    %v1898 = vunpack.c.h.b16 %v1808
    %v1899 = vunpack.c.l.b16 %v1809
    %v1900 = vunpack.c.h.b16 %v1809
    %v1901 = vunpack.c.l.b16 %v1810
    %v1902 = vunpack.c.h.b16 %v1810
    %v1903 = vunpack.c.l.b16 %v1811
    %v1904 = vunpack.c.h.b16 %v1811
    %v1905 = vunpack.c.l.b16 %v1812
    %v1906 = vunpack.c.h.b16 %v1812
    %v1907 = vunpack.c.l.b16 %v1813
    %v1908 = vunpack.c.h.b16 %v1813
    %v1909 = vunpack.c.l.b16 %v1814
    %v1910 = vunpack.c.h.b16 %v1814
    %v1911 = vpack.c.b16 %v1851, %v1847
    %v1912 = vpack.c.b16 %v1852, %v1848
    %v1913 = vpack.c.b16 %v1853, %v1849
    %v1914 = vpack.c.b16 %v1854, %v1850
    %v1915 = vpack.c.b16 %v1859, %v1855
    %v1916 = vpack.c.b16 %v1860, %v1856
    %v1917 = vpack.c.b16 %v1861, %v1857
    %v1918 = vpack.c.b16 %v1862, %v1858
    %v1919 = vpack.c.b16 %v1867, %v1863
    %v1920 = vpack.c.b16 %v1868, %v1864
    %v1921 = vpack.c.b16 %v1869, %v1865
    %v1922 = vpack.c.b16 %v1870, %v1866
    %v1923 = vpack.c.b16 %v1875, %v1871
    %v1924 = vpack.c.b16 %v1876, %v1872
    %v1925 = vpack.c.b16 %v1877, %v1873
    %v1926 = vpack.c.b16 %v1878, %v1874
    %v1927 = vpack.c.b16 %v1883, %v1879
    %v1928 = vpack.c.b16 %v1884, %v1880
    %v1929 = vpack.c.b16 %v1885, %v1881
    %v1930 = vpack.c.b16 %v1886, %v1882
    %v1931 = vpack.c.b16 %v1891, %v1887
    %v1932 = vpack.c.b16 %v1892, %v1888
    %v1933 = vpack.c.b16 %v1893, %v1889
    %v1934 = vpack.c.b16 %v1894, %v1890
    %v1935 = vpack.c.b16 %v1899, %v1895
    %v1936 = vpack.c.b16 %v1900, %v1896
    %v1937 = vpack.c.b16 %v1901, %v1897
    %v1938 = vpack.c.b16 %v1902, %v1898
    %v1939 = vpack.c.b16 %v1907, %v1903
    %v1940 = vpack.c.b16 %v1908, %v1904
    %v1941 = vpack.c.b16 %v1909, %v1905
    %v1942 = vpack.c.b16 %v1910, %v1906
    %1975 = vmatprep.subr.bf16.mxu0 %v1912
    %1976 = vmatpush1.bf16.msra.mxu0 %v1911
    %1977 = vmatprep.subr.bf16.mxu0 %v1916
    %1978 = vmatpush1.bf16.msra.mxu0 %v1915
    %1979 = vmatprep.subr.bf16.mxu0 %v1920
    %1980 = vmatpush1.bf16.msra.mxu0 %v1919
    %1981 = vmatprep.subr.bf16.mxu0 %v1924
    %1982 = vmatpush1.bf16.msra.mxu0 %v1923
    %1983 = vmatprep.subr.bf16.mxu0 %v1928
    %1984 = vmatpush1.bf16.msra.mxu0 %v1927
    %1985 = vmatprep.subr.bf16.mxu0 %v1932
    %1986 = vmatpush1.bf16.msra.mxu0 %v1931
    %1987 = vmatprep.subr.bf16.mxu0 %v1936
    %1988 = vmatpush1.bf16.msra.mxu0 %v1935
    %1989 = vmatprep.subr.bf16.mxu0 %v1940
    %1990 = vmatpush1.bf16.msra.mxu0 %v1939
    %1991 = vmatprep.subr.bf16.mxu0 0
    %1992 = vmatpush1.bf16.msra.mxu0 0
    %1993 = vmatprep.subr.bf16.mxu0 0
    %1994 = vmatpush1.bf16.msra.mxu0 0
    %1995 = vmatprep.subr.bf16.mxu0 0
    %1996 = vmatpush1.bf16.msra.mxu0 0
    %1997 = vmatprep.subr.bf16.mxu0 0
    %1998 = vmatpush1.bf16.msra.mxu0 0
    %1999 = vmatprep.subr.bf16.mxu0 0
    %2000 = vmatpush1.bf16.msra.mxu0 0
    %2001 = vmatprep.subr.bf16.mxu0 0
    %2002 = vmatpush1.bf16.msra.mxu0 0
    %2003 = vmatprep.subr.bf16.mxu0 0
    %2004 = vmatpush1.bf16.msra.mxu0 0
    %2005 = vmatprep.subr.bf16.mxu0 0
    %2006 = vmatpush1.bf16.msra.mxu0 0
    %2007 = vmatprep.mubr.bf16.mxu0 0
    %2008 = vmatmul.mubr.bf16.gmra.mrb[0].mxu0 %v1775
    %v2009 = vpop.f32.mrb[0].mxu0
    %v2010 = vadd.f32 0.0, %v2009
    %v2011 = vpop.f32.mrb[0].mxu0
    %v2012 = vadd.f32 0.0, %v2011
    %v2013 = vpop.f32.mrb[0].mxu0
    %v2014 = vpop.f32.mrb[0].mxu0
    %2015 = vdwg.mxu0
    %2016 = vmatprep.subr.bf16.mxu0 %v1914
    %2017 = vmatpush1.bf16.msra.mxu0 %v1913
    %2018 = vmatprep.subr.bf16.mxu0 %v1918
    %2019 = vmatpush1.bf16.msra.mxu0 %v1917
    %2020 = vmatprep.subr.bf16.mxu0 %v1922
    %2021 = vmatpush1.bf16.msra.mxu0 %v1921
    %2022 = vmatprep.subr.bf16.mxu0 %v1926
    %2023 = vmatpush1.bf16.msra.mxu0 %v1925
    %2024 = vmatprep.subr.bf16.mxu0 %v1930
    %2025 = vmatpush1.bf16.msra.mxu0 %v1929
    %2026 = vmatprep.subr.bf16.mxu0 %v1934
    %2027 = vmatpush1.bf16.msra.mxu0 %v1933
    %2028 = vmatprep.subr.bf16.mxu0 %v1938
    %2029 = vmatpush1.bf16.msra.mxu0 %v1937
    %2030 = vmatprep.subr.bf16.mxu0 %v1942
    %2031 = vmatpush1.bf16.msra.mxu0 %v1941
    %2032 = vmatprep.subr.bf16.mxu0 0
    %2033 = vmatpush1.bf16.msra.mxu0 0
    %2034 = vmatprep.subr.bf16.mxu0 0
    %2035 = vmatpush1.bf16.msra.mxu0 0
    %2036 = vmatprep.subr.bf16.mxu0 0
    %2037 = vmatpush1.bf16.msra.mxu0 0
    %2038 = vmatprep.subr.bf16.mxu0 0
    %2039 = vmatpush1.bf16.msra.mxu0 0
    %2040 = vmatprep.subr.bf16.mxu0 0
    %2041 = vmatpush1.bf16.msra.mxu0 0
    %2042 = vmatprep.subr.bf16.mxu0 0
    %2043 = vmatpush1.bf16.msra.mxu0 0
    %2044 = vmatprep.subr.bf16.mxu0 0
    %2045 = vmatpush1.bf16.msra.mxu0 0
    %2046 = vmatprep.subr.bf16.mxu0 0
    %2047 = vmatpush1.bf16.msra.mxu0 0
    %2048 = vmatprep.mubr.bf16.mxu0 0
    %2049 = vmatmul.mubr.bf16.gmra.mrb[0].mxu0 %v1775
    %v2050 = vpop.f32.mrb[0].mxu0
    %v2051 = vadd.f32 0.0, %v2050
    %v2052 = vpop.f32.mrb[0].mxu0
    %v2053 = vadd.f32 0.0, %v2052
    %v2054 = vpop.f32.mrb[0].mxu0
    %v2055 = vpop.f32.mrb[0].mxu0
    %2056 = vdwg.mxu0
    %v2057 = vadd.f32 %v1779, %v2010
    %v2058 = vadd.f32 %v1780, %v2012
    %v2059 = vadd.f32 %v1781, %v2051
    %v2060 = vadd.f32 %v1782, %v2053
    %v2061 = vxor.u32 %v2057, 2147483648
    %v2062 = vxor.u32 %v2058, 2147483648
    %v2063 = vxor.u32 %v2059, 2147483648
    %v2064 = vmul.f32 %v2061, 1.442695
    %v2065 = vpow.pop %v2064
    %v2066 = vmul.f32 %v2062, 1.442695
    %v2067 = vpow.pop %v2066
    %v2068 = vmul.f32 %v2063, 1.442695
    %v2069 = vpow.pop %v2068
    %v2070 = vadd.f32 %v2065, 1.0
    %v2071 = vadd.f32 %v2067, 1.0
    %v2072 = vadd.f32 %v2069, 1.0
    %v2073 = vrcp.pop %v2070
    %v2074 = vmul.f32 1.0, %v2073
    %v2075 = vrcp.pop %v2071
    %v2076 = vmul.f32 1.0, %v2075
    %v2077 = vrcp.pop %v2072
    %v2078 = vmul.f32 1.0, %v2077
    %v2079 = vtanh.pop %v2060
    %v2080 = vmul.f32 %v2076, %v1772
    %v2081 = vmul.f32 %v2074, %v2079
    %v2082 = vadd.f32 %v2080, %v2081
    %v2083 = vtanh.pop %v2082
    %v2084 = vmul.f32 %v2078, %v2083
    %v2085 = vpack.c.bf16 %v2084, %v2084
    %s2086 = scalar_lea.vmem [#allocation3], 16
    %2087 = vst [vmem:[%s2086] sm:$0xf] %v2085
    %s2088 = scalar_lea.vmem [#allocation2], 160
    %v2089 = vld [vmem:[%s2088] sm:$0xff]
    %v2090 = vld [vmem:[%s2088 + $0x8] sm:$0xff]
    %v2091 = vld [vmem:[%s2088 + $0x10] sm:$0xff]
    %v2092 = vld [vmem:[%s2088 + $0x18] sm:$0xff]
    %v2093 = vld [vmem:[#allocation9] sm:$0xff]
    %v2094 = vld [vmem:[#allocation9 + $0x8] sm:$0xff]
    %v2095 = vld [vmem:[#allocation9 + $0x10] sm:$0xff]
    %v2096 = vld [vmem:[#allocation9 + $0x18] sm:$0xff]
    %v2097 = vld [vmem:[#allocation9 + $0x20] sm:$0xff]
    %v2098 = vld [vmem:[#allocation9 + $0x28] sm:$0xff]
    %v2099 = vld [vmem:[#allocation9 + $0x30] sm:$0xff]
    %v2100 = vld [vmem:[#allocation9 + $0x38] sm:$0xff]
    %v2101 = vld [vmem:[#allocation9 + $0x40] sm:$0xff]
    %v2102 = vld [vmem:[#allocation9 + $0x48] sm:$0xff]
    %v2103 = vld [vmem:[#allocation9 + $0x50] sm:$0xff]
    %v2104 = vld [vmem:[#allocation9 + $0x58] sm:$0xff]
    %v2105 = vld [vmem:[#allocation9 + $0x60] sm:$0xff]
    %v2106 = vld [vmem:[#allocation9 + $0x68] sm:$0xff]
    %v2107 = vld [vmem:[#allocation9 + $0x70] sm:$0xff]
    %v2108 = vld [vmem:[#allocation9 + $0x78] sm:$0xff]
    %v2109 = vld [vmem:[#allocation9 + $0x80] sm:$0xff]
    %v2110 = vld [vmem:[#allocation9 + $0x88] sm:$0xff]
    %v2111 = vld [vmem:[#allocation9 + $0x90] sm:$0xff]
    %v2112 = vld [vmem:[#allocation9 + $0x98] sm:$0xff]
    %v2113 = vld [vmem:[#allocation9 + $0xa0] sm:$0xff]
    %v2114 = vld [vmem:[#allocation9 + $0xa8] sm:$0xff]
    %v2115 = vld [vmem:[#allocation9 + $0xb0] sm:$0xff]
    %v2116 = vld [vmem:[#allocation9 + $0xb8] sm:$0xff]
    %v2117 = vld [vmem:[#allocation9 + $0xc0] sm:$0xff]
    %v2118 = vld [vmem:[#allocation9 + $0xc8] sm:$0xff]
    %v2119 = vld [vmem:[#allocation9 + $0xd0] sm:$0xff]
    %v2120 = vld [vmem:[#allocation9 + $0xd8] sm:$0xff]
    %v2121 = vld [vmem:[#allocation9 + $0xe0] sm:$0xff]
    %v2122 = vld [vmem:[#allocation9 + $0xe8] sm:$0xff]
    %v2123 = vld [vmem:[#allocation9 + $0xf0] sm:$0xff]
    %v2124 = vld [vmem:[#allocation9 + $0xf8] sm:$0xff]
    %v2157 = vunpack.c.l.b16 %v2093
    %v2158 = vunpack.c.h.b16 %v2093
    %v2159 = vunpack.c.l.b16 %v2094
    %v2160 = vunpack.c.h.b16 %v2094
    %v2161 = vunpack.c.l.b16 %v2095
    %v2162 = vunpack.c.h.b16 %v2095
    %v2163 = vunpack.c.l.b16 %v2096
    %v2164 = vunpack.c.h.b16 %v2096
    %v2165 = vunpack.c.l.b16 %v2097
    %v2166 = vunpack.c.h.b16 %v2097
    %v2167 = vunpack.c.l.b16 %v2098
    %v2168 = vunpack.c.h.b16 %v2098
    %v2169 = vunpack.c.l.b16 %v2099
    %v2170 = vunpack.c.h.b16 %v2099
    %v2171 = vunpack.c.l.b16 %v2100
    %v2172 = vunpack.c.h.b16 %v2100
    %v2173 = vunpack.c.l.b16 %v2101
    %v2174 = vunpack.c.h.b16 %v2101
    %v2175 = vunpack.c.l.b16 %v2102
    %v2176 = vunpack.c.h.b16 %v2102
    %v2177 = vunpack.c.l.b16 %v2103
    %v2178 = vunpack.c.h.b16 %v2103
    %v2179 = vunpack.c.l.b16 %v2104
    %v2180 = vunpack.c.h.b16 %v2104
    %v2181 = vunpack.c.l.b16 %v2105
    %v2182 = vunpack.c.h.b16 %v2105
    %v2183 = vunpack.c.l.b16 %v2106
    %v2184 = vunpack.c.h.b16 %v2106
    %v2185 = vunpack.c.l.b16 %v2107
    %v2186 = vunpack.c.h.b16 %v2107
    %v2187 = vunpack.c.l.b16 %v2108
    %v2188 = vunpack.c.h.b16 %v2108
    %v2189 = vunpack.c.l.b16 %v2109
    %v2190 = vunpack.c.h.b16 %v2109
    %v2191 = vunpack.c.l.b16 %v2110
    %v2192 = vunpack.c.h.b16 %v2110
    %v2193 = vunpack.c.l.b16 %v2111
    %v2194 = vunpack.c.h.b16 %v2111
    %v2195 = vunpack.c.l.b16 %v2112
    %v2196 = vunpack.c.h.b16 %v2112
    %v2197 = vunpack.c.l.b16 %v2113
    %v2198 = vunpack.c.h.b16 %v2113
    %v2199 = vunpack.c.l.b16 %v2114
    %v2200 = vunpack.c.h.b16 %v2114
    %v2201 = vunpack.c.l.b16 %v2115
    %v2202 = vunpack.c.h.b16 %v2115
    %v2203 = vunpack.c.l.b16 %v2116
    %v2204 = vunpack.c.h.b16 %v2116
    %v2205 = vunpack.c.l.b16 %v2117
    %v2206 = vunpack.c.h.b16 %v2117
    %v2207 = vunpack.c.l.b16 %v2118
    %v2208 = vunpack.c.h.b16 %v2118
    %v2209 = vunpack.c.l.b16 %v2119
    %v2210 = vunpack.c.h.b16 %v2119
    %v2211 = vunpack.c.l.b16 %v2120
    %v2212 = vunpack.c.h.b16 %v2120
    %v2213 = vunpack.c.l.b16 %v2121
    %v2214 = vunpack.c.h.b16 %v2121
    %v2215 = vunpack.c.l.b16 %v2122
    %v2216 = vunpack.c.h.b16 %v2122
    %v2217 = vunpack.c.l.b16 %v2123
    %v2218 = vunpack.c.h.b16 %v2123
    %v2219 = vunpack.c.l.b16 %v2124
    %v2220 = vunpack.c.h.b16 %v2124
    %v2221 = vpack.c.b16 %v2161, %v2157
    %v2222 = vpack.c.b16 %v2162, %v2158
    %v2223 = vpack.c.b16 %v2163, %v2159
    %v2224 = vpack.c.b16 %v2164, %v2160
    %v2225 = vpack.c.b16 %v2169, %v2165
    %v2226 = vpack.c.b16 %v2170, %v2166
    %v2227 = vpack.c.b16 %v2171, %v2167
    %v2228 = vpack.c.b16 %v2172, %v2168
    %v2229 = vpack.c.b16 %v2177, %v2173
    %v2230 = vpack.c.b16 %v2178, %v2174
    %v2231 = vpack.c.b16 %v2179, %v2175
    %v2232 = vpack.c.b16 %v2180, %v2176
    %v2233 = vpack.c.b16 %v2185, %v2181
    %v2234 = vpack.c.b16 %v2186, %v2182
    %v2235 = vpack.c.b16 %v2187, %v2183
    %v2236 = vpack.c.b16 %v2188, %v2184
    %v2237 = vpack.c.b16 %v2193, %v2189
    %v2238 = vpack.c.b16 %v2194, %v2190
    %v2239 = vpack.c.b16 %v2195, %v2191
    %v2240 = vpack.c.b16 %v2196, %v2192
    %v2241 = vpack.c.b16 %v2201, %v2197
    %v2242 = vpack.c.b16 %v2202, %v2198
    %v2243 = vpack.c.b16 %v2203, %v2199
    %v2244 = vpack.c.b16 %v2204, %v2200
    %v2245 = vpack.c.b16 %v2209, %v2205
    %v2246 = vpack.c.b16 %v2210, %v2206
    %v2247 = vpack.c.b16 %v2211, %v2207
    %v2248 = vpack.c.b16 %v2212, %v2208
    %v2249 = vpack.c.b16 %v2217, %v2213
    %v2250 = vpack.c.b16 %v2218, %v2214
    %v2251 = vpack.c.b16 %v2219, %v2215
    %v2252 = vpack.c.b16 %v2220, %v2216
    %2285 = vmatprep.subr.bf16.mxu0 %v2222
    %2286 = vmatpush1.bf16.msra.mxu0 %v2221
    %2287 = vmatprep.subr.bf16.mxu0 %v2226
    %2288 = vmatpush1.bf16.msra.mxu0 %v2225
    %2289 = vmatprep.subr.bf16.mxu0 %v2230
    %2290 = vmatpush1.bf16.msra.mxu0 %v2229
    %2291 = vmatprep.subr.bf16.mxu0 %v2234
    %2292 = vmatpush1.bf16.msra.mxu0 %v2233
    %2293 = vmatprep.subr.bf16.mxu0 %v2238
    %2294 = vmatpush1.bf16.msra.mxu0 %v2237
    %2295 = vmatprep.subr.bf16.mxu0 %v2242
    %2296 = vmatpush1.bf16.msra.mxu0 %v2241
    %2297 = vmatprep.subr.bf16.mxu0 %v2246
    %2298 = vmatpush1.bf16.msra.mxu0 %v2245
    %2299 = vmatprep.subr.bf16.mxu0 %v2250
    %2300 = vmatpush1.bf16.msra.mxu0 %v2249
    %2301 = vmatprep.subr.bf16.mxu0 0
    %2302 = vmatpush1.bf16.msra.mxu0 0
    %2303 = vmatprep.subr.bf16.mxu0 0
    %2304 = vmatpush1.bf16.msra.mxu0 0
    %2305 = vmatprep.subr.bf16.mxu0 0
    %2306 = vmatpush1.bf16.msra.mxu0 0
    %2307 = vmatprep.subr.bf16.mxu0 0
    %2308 = vmatpush1.bf16.msra.mxu0 0
    %2309 = vmatprep.subr.bf16.mxu0 0
    %2310 = vmatpush1.bf16.msra.mxu0 0
    %2311 = vmatprep.subr.bf16.mxu0 0
    %2312 = vmatpush1.bf16.msra.mxu0 0
    %2313 = vmatprep.subr.bf16.mxu0 0
    %2314 = vmatpush1.bf16.msra.mxu0 0
    %2315 = vmatprep.subr.bf16.mxu0 0
    %2316 = vmatpush1.bf16.msra.mxu0 0
    %2317 = vmatprep.mubr.bf16.mxu0 0
    %2318 = vmatmul.mubr.bf16.gmra.mrb[0].mxu0 %v2085
    %v2319 = vpop.f32.mrb[0].mxu0
    %v2320 = vadd.f32 0.0, %v2319
    %v2321 = vpop.f32.mrb[0].mxu0
    %v2322 = vadd.f32 0.0, %v2321
    %v2323 = vpop.f32.mrb[0].mxu0
    %v2324 = vpop.f32.mrb[0].mxu0
    %2325 = vdwg.mxu0
    %2326 = vmatprep.subr.bf16.mxu0 %v2224
    %2327 = vmatpush1.bf16.msra.mxu0 %v2223
    %2328 = vmatprep.subr.bf16.mxu0 %v2228
    %2329 = vmatpush1.bf16.msra.mxu0 %v2227
    %2330 = vmatprep.subr.bf16.mxu0 %v2232
    %2331 = vmatpush1.bf16.msra.mxu0 %v2231
    %2332 = vmatprep.subr.bf16.mxu0 %v2236
    %2333 = vmatpush1.bf16.msra.mxu0 %v2235
    %2334 = vmatprep.subr.bf16.mxu0 %v2240
    %2335 = vmatpush1.bf16.msra.mxu0 %v2239
    %2336 = vmatprep.subr.bf16.mxu0 %v2244
    %2337 = vmatpush1.bf16.msra.mxu0 %v2243
    %2338 = vmatprep.subr.bf16.mxu0 %v2248
    %2339 = vmatpush1.bf16.msra.mxu0 %v2247
    %2340 = vmatprep.subr.bf16.mxu0 %v2252
    %2341 = vmatpush1.bf16.msra.mxu0 %v2251
    %2342 = vmatprep.subr.bf16.mxu0 0
    %2343 = vmatpush1.bf16.msra.mxu0 0
    %2344 = vmatprep.subr.bf16.mxu0 0
    %2345 = vmatpush1.bf16.msra.mxu0 0
    %2346 = vmatprep.subr.bf16.mxu0 0
    %2347 = vmatpush1.bf16.msra.mxu0 0
    %2348 = vmatprep.subr.bf16.mxu0 0
    %2349 = vmatpush1.bf16.msra.mxu0 0
    %2350 = vmatprep.subr.bf16.mxu0 0
    %2351 = vmatpush1.bf16.msra.mxu0 0
    %2352 = vmatprep.subr.bf16.mxu0 0
    %2353 = vmatpush1.bf16.msra.mxu0 0
    %2354 = vmatprep.subr.bf16.mxu0 0
    %2355 = vmatpush1.bf16.msra.mxu0 0
    %2356 = vmatprep.subr.bf16.mxu0 0
    %2357 = vmatpush1.bf16.msra.mxu0 0
    %2358 = vmatprep.mubr.bf16.mxu0 0
    %2359 = vmatmul.mubr.bf16.gmra.mrb[0].mxu0 %v2085
    %v2360 = vpop.f32.mrb[0].mxu0
    %v2361 = vadd.f32 0.0, %v2360
    %v2362 = vpop.f32.mrb[0].mxu0
    %v2363 = vadd.f32 0.0, %v2362
    %v2364 = vpop.f32.mrb[0].mxu0
    %v2365 = vpop.f32.mrb[0].mxu0
    %2366 = vdwg.mxu0
    %v2367 = vadd.f32 %v2089, %v2320
    %v2368 = vadd.f32 %v2090, %v2322
    %v2369 = vadd.f32 %v2091, %v2361
    %v2370 = vadd.f32 %v2092, %v2363
    %v2371 = vxor.u32 %v2367, 2147483648
    %v2372 = vxor.u32 %v2368, 2147483648
    %v2373 = vxor.u32 %v2369, 2147483648
    %v2374 = vmul.f32 %v2371, 1.442695
    %v2375 = vpow.pop %v2374
    %v2376 = vmul.f32 %v2372, 1.442695
    %v2377 = vpow.pop %v2376
    %v2378 = vmul.f32 %v2373, 1.442695
    %v2379 = vpow.pop %v2378
    %v2380 = vadd.f32 %v2375, 1.0
    %v2381 = vadd.f32 %v2377, 1.0
    %v2382 = vadd.f32 %v2379, 1.0
    %v2383 = vrcp.pop %v2380
    %v2384 = vmul.f32 1.0, %v2383
    %v2385 = vrcp.pop %v2381
    %v2386 = vmul.f32 1.0, %v2385
    %v2387 = vrcp.pop %v2382
    %v2388 = vmul.f32 1.0, %v2387
    %v2389 = vtanh.pop %v2370
    %v2390 = vmul.f32 %v2386, %v2082
    %v2391 = vmul.f32 %v2384, %v2389
    %v2392 = vadd.f32 %v2390, %v2391
    %v2393 = vtanh.pop %v2392
    %v2394 = vmul.f32 %v2388, %v2393
    %v2395 = vpack.c.bf16 %v2394, %v2394
    %s2396 = scalar_lea.vmem [#allocation3], 20
    %2397 = vst [vmem:[%s2396] sm:$0xf] %v2395
    %s2398 = scalar_lea.vmem [#allocation2], 192
    %v2399 = vld [vmem:[%s2398] sm:$0xff]
    %v2400 = vld [vmem:[%s2398 + $0x8] sm:$0xff]
    %v2401 = vld [vmem:[%s2398 + $0x10] sm:$0xff]
    %v2402 = vld [vmem:[%s2398 + $0x18] sm:$0xff]
    %v2403 = vld [vmem:[#allocation9] sm:$0xff]
    %v2404 = vld [vmem:[#allocation9 + $0x8] sm:$0xff]
    %v2405 = vld [vmem:[#allocation9 + $0x10] sm:$0xff]
    %v2406 = vld [vmem:[#allocation9 + $0x18] sm:$0xff]
    %v2407 = vld [vmem:[#allocation9 + $0x20] sm:$0xff]
    %v2408 = vld [vmem:[#allocation9 + $0x28] sm:$0xff]
    %v2409 = vld [vmem:[#allocation9 + $0x30] sm:$0xff]
    %v2410 = vld [vmem:[#allocation9 + $0x38] sm:$0xff]
    %v2411 = vld [vmem:[#allocation9 + $0x40] sm:$0xff]
    %v2412 = vld [vmem:[#allocation9 + $0x48] sm:$0xff]
    %v2413 = vld [vmem:[#allocation9 + $0x50] sm:$0xff]
    %v2414 = vld [vmem:[#allocation9 + $0x58] sm:$0xff]
    %v2415 = vld [vmem:[#allocation9 + $0x60] sm:$0xff]
    %v2416 = vld [vmem:[#allocation9 + $0x68] sm:$0xff]
    %v2417 = vld [vmem:[#allocation9 + $0x70] sm:$0xff]
    %v2418 = vld [vmem:[#allocation9 + $0x78] sm:$0xff]
    %v2419 = vld [vmem:[#allocation9 + $0x80] sm:$0xff]
    %v2420 = vld [vmem:[#allocation9 + $0x88] sm:$0xff]
    %v2421 = vld [vmem:[#allocation9 + $0x90] sm:$0xff]
    %v2422 = vld [vmem:[#allocation9 + $0x98] sm:$0xff]
    %v2423 = vld [vmem:[#allocation9 + $0xa0] sm:$0xff]
    %v2424 = vld [vmem:[#allocation9 + $0xa8] sm:$0xff]
    %v2425 = vld [vmem:[#allocation9 + $0xb0] sm:$0xff]
    %v2426 = vld [vmem:[#allocation9 + $0xb8] sm:$0xff]
    %v2427 = vld [vmem:[#allocation9 + $0xc0] sm:$0xff]
    %v2428 = vld [vmem:[#allocation9 + $0xc8] sm:$0xff]
    %v2429 = vld [vmem:[#allocation9 + $0xd0] sm:$0xff]
    %v2430 = vld [vmem:[#allocation9 + $0xd8] sm:$0xff]
    %v2431 = vld [vmem:[#allocation9 + $0xe0] sm:$0xff]
    %v2432 = vld [vmem:[#allocation9 + $0xe8] sm:$0xff]
    %v2433 = vld [vmem:[#allocation9 + $0xf0] sm:$0xff]
    %v2434 = vld [vmem:[#allocation9 + $0xf8] sm:$0xff]
    %v2467 = vunpack.c.l.b16 %v2403
    %v2468 = vunpack.c.h.b16 %v2403
    %v2469 = vunpack.c.l.b16 %v2404
    %v2470 = vunpack.c.h.b16 %v2404
    %v2471 = vunpack.c.l.b16 %v2405
    %v2472 = vunpack.c.h.b16 %v2405
    %v2473 = vunpack.c.l.b16 %v2406
    %v2474 = vunpack.c.h.b16 %v2406
    %v2475 = vunpack.c.l.b16 %v2407
    %v2476 = vunpack.c.h.b16 %v2407
    %v2477 = vunpack.c.l.b16 %v2408
    %v2478 = vunpack.c.h.b16 %v2408
    %v2479 = vunpack.c.l.b16 %v2409
    %v2480 = vunpack.c.h.b16 %v2409
    %v2481 = vunpack.c.l.b16 %v2410
    %v2482 = vunpack.c.h.b16 %v2410
    %v2483 = vunpack.c.l.b16 %v2411
    %v2484 = vunpack.c.h.b16 %v2411
    %v2485 = vunpack.c.l.b16 %v2412
    %v2486 = vunpack.c.h.b16 %v2412
    %v2487 = vunpack.c.l.b16 %v2413
    %v2488 = vunpack.c.h.b16 %v2413
    %v2489 = vunpack.c.l.b16 %v2414
    %v2490 = vunpack.c.h.b16 %v2414
    %v2491 = vunpack.c.l.b16 %v2415
    %v2492 = vunpack.c.h.b16 %v2415
    %v2493 = vunpack.c.l.b16 %v2416
    %v2494 = vunpack.c.h.b16 %v2416
    %v2495 = vunpack.c.l.b16 %v2417
    %v2496 = vunpack.c.h.b16 %v2417
    %v2497 = vunpack.c.l.b16 %v2418
    %v2498 = vunpack.c.h.b16 %v2418
    %v2499 = vunpack.c.l.b16 %v2419
    %v2500 = vunpack.c.h.b16 %v2419
    %v2501 = vunpack.c.l.b16 %v2420
    %v2502 = vunpack.c.h.b16 %v2420
    %v2503 = vunpack.c.l.b16 %v2421
    %v2504 = vunpack.c.h.b16 %v2421
    %v2505 = vunpack.c.l.b16 %v2422
    %v2506 = vunpack.c.h.b16 %v2422
    %v2507 = vunpack.c.l.b16 %v2423
    %v2508 = vunpack.c.h.b16 %v2423
    %v2509 = vunpack.c.l.b16 %v2424
    %v2510 = vunpack.c.h.b16 %v2424
    %v2511 = vunpack.c.l.b16 %v2425
    %v2512 = vunpack.c.h.b16 %v2425
    %v2513 = vunpack.c.l.b16 %v2426
    %v2514 = vunpack.c.h.b16 %v2426
    %v2515 = vunpack.c.l.b16 %v2427
    %v2516 = vunpack.c.h.b16 %v2427
    %v2517 = vunpack.c.l.b16 %v2428
    %v2518 = vunpack.c.h.b16 %v2428
    %v2519 = vunpack.c.l.b16 %v2429
    %v2520 = vunpack.c.h.b16 %v2429
    %v2521 = vunpack.c.l.b16 %v2430
    %v2522 = vunpack.c.h.b16 %v2430
    %v2523 = vunpack.c.l.b16 %v2431
    %v2524 = vunpack.c.h.b16 %v2431
    %v2525 = vunpack.c.l.b16 %v2432
    %v2526 = vunpack.c.h.b16 %v2432
    %v2527 = vunpack.c.l.b16 %v2433
    %v2528 = vunpack.c.h.b16 %v2433
    %v2529 = vunpack.c.l.b16 %v2434
    %v2530 = vunpack.c.h.b16 %v2434
    %v2531 = vpack.c.b16 %v2471, %v2467
    %v2532 = vpack.c.b16 %v2472, %v2468
    %v2533 = vpack.c.b16 %v2473, %v2469
    %v2534 = vpack.c.b16 %v2474, %v2470
    %v2535 = vpack.c.b16 %v2479, %v2475
    %v2536 = vpack.c.b16 %v2480, %v2476
    %v2537 = vpack.c.b16 %v2481, %v2477
    %v2538 = vpack.c.b16 %v2482, %v2478
    %v2539 = vpack.c.b16 %v2487, %v2483
    %v2540 = vpack.c.b16 %v2488, %v2484
    %v2541 = vpack.c.b16 %v2489, %v2485
    %v2542 = vpack.c.b16 %v2490, %v2486
    %v2543 = vpack.c.b16 %v2495, %v2491
    %v2544 = vpack.c.b16 %v2496, %v2492
    %v2545 = vpack.c.b16 %v2497, %v2493
    %v2546 = vpack.c.b16 %v2498, %v2494
    %v2547 = vpack.c.b16 %v2503, %v2499
    %v2548 = vpack.c.b16 %v2504, %v2500
    %v2549 = vpack.c.b16 %v2505, %v2501
    %v2550 = vpack.c.b16 %v2506, %v2502
    %v2551 = vpack.c.b16 %v2511, %v2507
    %v2552 = vpack.c.b16 %v2512, %v2508
    %v2553 = vpack.c.b16 %v2513, %v2509
    %v2554 = vpack.c.b16 %v2514, %v2510
    %v2555 = vpack.c.b16 %v2519, %v2515
    %v2556 = vpack.c.b16 %v2520, %v2516
    %v2557 = vpack.c.b16 %v2521, %v2517
    %v2558 = vpack.c.b16 %v2522, %v2518
    %v2559 = vpack.c.b16 %v2527, %v2523
    %v2560 = vpack.c.b16 %v2528, %v2524
    %v2561 = vpack.c.b16 %v2529, %v2525
    %v2562 = vpack.c.b16 %v2530, %v2526
    %2595 = vmatprep.subr.bf16.mxu0 %v2532
    %2596 = vmatpush1.bf16.msra.mxu0 %v2531
    %2597 = vmatprep.subr.bf16.mxu0 %v2536
    %2598 = vmatpush1.bf16.msra.mxu0 %v2535
    %2599 = vmatprep.subr.bf16.mxu0 %v2540
    %2600 = vmatpush1.bf16.msra.mxu0 %v2539
    %2601 = vmatprep.subr.bf16.mxu0 %v2544
    %2602 = vmatpush1.bf16.msra.mxu0 %v2543
    %2603 = vmatprep.subr.bf16.mxu0 %v2548
    %2604 = vmatpush1.bf16.msra.mxu0 %v2547
    %2605 = vmatprep.subr.bf16.mxu0 %v2552
    %2606 = vmatpush1.bf16.msra.mxu0 %v2551
    %2607 = vmatprep.subr.bf16.mxu0 %v2556
    %2608 = vmatpush1.bf16.msra.mxu0 %v2555
    %2609 = vmatprep.subr.bf16.mxu0 %v2560
    %2610 = vmatpush1.bf16.msra.mxu0 %v2559
    %2611 = vmatprep.subr.bf16.mxu0 0
    %2612 = vmatpush1.bf16.msra.mxu0 0
    %2613 = vmatprep.subr.bf16.mxu0 0
    %2614 = vmatpush1.bf16.msra.mxu0 0
    %2615 = vmatprep.subr.bf16.mxu0 0
    %2616 = vmatpush1.bf16.msra.mxu0 0
    %2617 = vmatprep.subr.bf16.mxu0 0
    %2618 = vmatpush1.bf16.msra.mxu0 0
    %2619 = vmatprep.subr.bf16.mxu0 0
    %2620 = vmatpush1.bf16.msra.mxu0 0
    %2621 = vmatprep.subr.bf16.mxu0 0
    %2622 = vmatpush1.bf16.msra.mxu0 0
    %2623 = vmatprep.subr.bf16.mxu0 0
    %2624 = vmatpush1.bf16.msra.mxu0 0
    %2625 = vmatprep.subr.bf16.mxu0 0
    %2626 = vmatpush1.bf16.msra.mxu0 0
    %2627 = vmatprep.mubr.bf16.mxu0 0
    %2628 = vmatmul.mubr.bf16.gmra.mrb[0].mxu0 %v2395
    %v2629 = vpop.f32.mrb[0].mxu0
    %v2630 = vadd.f32 0.0, %v2629
    %v2631 = vpop.f32.mrb[0].mxu0
    %v2632 = vadd.f32 0.0, %v2631
    %v2633 = vpop.f32.mrb[0].mxu0
    %v2634 = vpop.f32.mrb[0].mxu0
    %2635 = vdwg.mxu0
    %2636 = vmatprep.subr.bf16.mxu0 %v2534
    %2637 = vmatpush1.bf16.msra.mxu0 %v2533
    %2638 = vmatprep.subr.bf16.mxu0 %v2538
    %2639 = vmatpush1.bf16.msra.mxu0 %v2537
    %2640 = vmatprep.subr.bf16.mxu0 %v2542
    %2641 = vmatpush1.bf16.msra.mxu0 %v2541
    %2642 = vmatprep.subr.bf16.mxu0 %v2546
    %2643 = vmatpush1.bf16.msra.mxu0 %v2545
    %2644 = vmatprep.subr.bf16.mxu0 %v2550
    %2645 = vmatpush1.bf16.msra.mxu0 %v2549
    %2646 = vmatprep.subr.bf16.mxu0 %v2554
    %2647 = vmatpush1.bf16.msra.mxu0 %v2553
    %2648 = vmatprep.subr.bf16.mxu0 %v2558
    %2649 = vmatpush1.bf16.msra.mxu0 %v2557
    %2650 = vmatprep.subr.bf16.mxu0 %v2562
    %2651 = vmatpush1.bf16.msra.mxu0 %v2561
    %2652 = vmatprep.subr.bf16.mxu0 0
    %2653 = vmatpush1.bf16.msra.mxu0 0
    %2654 = vmatprep.subr.bf16.mxu0 0
    %2655 = vmatpush1.bf16.msra.mxu0 0
    %2656 = vmatprep.subr.bf16.mxu0 0
    %2657 = vmatpush1.bf16.msra.mxu0 0
    %2658 = vmatprep.subr.bf16.mxu0 0
    %2659 = vmatpush1.bf16.msra.mxu0 0
    %2660 = vmatprep.subr.bf16.mxu0 0
    %2661 = vmatpush1.bf16.msra.mxu0 0
    %2662 = vmatprep.subr.bf16.mxu0 0
    %2663 = vmatpush1.bf16.msra.mxu0 0
    %2664 = vmatprep.subr.bf16.mxu0 0
    %2665 = vmatpush1.bf16.msra.mxu0 0
    %2666 = vmatprep.subr.bf16.mxu0 0
    %2667 = vmatpush1.bf16.msra.mxu0 0
    %2668 = vmatprep.mubr.bf16.mxu0 0
    %2669 = vmatmul.mubr.bf16.gmra.mrb[0].mxu0 %v2395
    %v2670 = vpop.f32.mrb[0].mxu0
    %v2671 = vadd.f32 0.0, %v2670
    %v2672 = vpop.f32.mrb[0].mxu0
    %v2673 = vadd.f32 0.0, %v2672
    %v2674 = vpop.f32.mrb[0].mxu0
    %v2675 = vpop.f32.mrb[0].mxu0
    %2676 = vdwg.mxu0
    %v2677 = vadd.f32 %v2399, %v2630
    %v2678 = vadd.f32 %v2400, %v2632
    %v2679 = vadd.f32 %v2401, %v2671
    %v2680 = vadd.f32 %v2402, %v2673
    %v2681 = vxor.u32 %v2677, 2147483648
    %v2682 = vxor.u32 %v2678, 2147483648
    %v2683 = vxor.u32 %v2679, 2147483648
    %v2684 = vmul.f32 %v2681, 1.442695
    %v2685 = vpow.pop %v2684
    %v2686 = vmul.f32 %v2682, 1.442695
    %v2687 = vpow.pop %v2686
    %v2688 = vmul.f32 %v2683, 1.442695
    %v2689 = vpow.pop %v2688
    %v2690 = vadd.f32 %v2685, 1.0
    %v2691 = vadd.f32 %v2687, 1.0
    %v2692 = vadd.f32 %v2689, 1.0
    %v2693 = vrcp.pop %v2690
    %v2694 = vmul.f32 1.0, %v2693
    %v2695 = vrcp.pop %v2691
    %v2696 = vmul.f32 1.0, %v2695
    %v2697 = vrcp.pop %v2692
    %v2698 = vmul.f32 1.0, %v2697
    %v2699 = vtanh.pop %v2680
    %v2700 = vmul.f32 %v2696, %v2392
    %v2701 = vmul.f32 %v2694, %v2699
    %v2702 = vadd.f32 %v2700, %v2701
    %v2703 = vtanh.pop %v2702
    %v2704 = vmul.f32 %v2698, %v2703
    %v2705 = vpack.c.bf16 %v2704, %v2704
    %s2706 = scalar_lea.vmem [#allocation3], 24
    %2707 = vst [vmem:[%s2706] sm:$0xf] %v2705
    %s2708 = scalar_lea.vmem [#allocation2], 224
    %v2709 = vld [vmem:[%s2708] sm:$0xff]
    %v2710 = vld [vmem:[%s2708 + $0x8] sm:$0xff]
    %v2711 = vld [vmem:[%s2708 + $0x10] sm:$0xff]
    %v2712 = vld [vmem:[%s2708 + $0x18] sm:$0xff]
    %v2713 = vld [vmem:[#allocation9] sm:$0xff]
    %v2714 = vld [vmem:[#allocation9 + $0x8] sm:$0xff]
    %v2715 = vld [vmem:[#allocation9 + $0x10] sm:$0xff]
    %v2716 = vld [vmem:[#allocation9 + $0x18] sm:$0xff]
    %v2717 = vld [vmem:[#allocation9 + $0x20] sm:$0xff]
    %v2718 = vld [vmem:[#allocation9 + $0x28] sm:$0xff]
    %v2719 = vld [vmem:[#allocation9 + $0x30] sm:$0xff]
    %v2720 = vld [vmem:[#allocation9 + $0x38] sm:$0xff]
    %v2721 = vld [vmem:[#allocation9 + $0x40] sm:$0xff]
    %v2722 = vld [vmem:[#allocation9 + $0x48] sm:$0xff]
    %v2723 = vld [vmem:[#allocation9 + $0x50] sm:$0xff]
    %v2724 = vld [vmem:[#allocation9 + $0x58] sm:$0xff]
    %v2725 = vld [vmem:[#allocation9 + $0x60] sm:$0xff]
    %v2726 = vld [vmem:[#allocation9 + $0x68] sm:$0xff]
    %v2727 = vld [vmem:[#allocation9 + $0x70] sm:$0xff]
    %v2728 = vld [vmem:[#allocation9 + $0x78] sm:$0xff]
    %v2729 = vld [vmem:[#allocation9 + $0x80] sm:$0xff]
    %v2730 = vld [vmem:[#allocation9 + $0x88] sm:$0xff]
    %v2731 = vld [vmem:[#allocation9 + $0x90] sm:$0xff]
    %v2732 = vld [vmem:[#allocation9 + $0x98] sm:$0xff]
    %v2733 = vld [vmem:[#allocation9 + $0xa0] sm:$0xff]
    %v2734 = vld [vmem:[#allocation9 + $0xa8] sm:$0xff]
    %v2735 = vld [vmem:[#allocation9 + $0xb0] sm:$0xff]
    %v2736 = vld [vmem:[#allocation9 + $0xb8] sm:$0xff]
    %v2737 = vld [vmem:[#allocation9 + $0xc0] sm:$0xff]
    %v2738 = vld [vmem:[#allocation9 + $0xc8] sm:$0xff]
    %v2739 = vld [vmem:[#allocation9 + $0xd0] sm:$0xff]
    %v2740 = vld [vmem:[#allocation9 + $0xd8] sm:$0xff]
    %v2741 = vld [vmem:[#allocation9 + $0xe0] sm:$0xff]
    %v2742 = vld [vmem:[#allocation9 + $0xe8] sm:$0xff]
    %v2743 = vld [vmem:[#allocation9 + $0xf0] sm:$0xff]
    %v2744 = vld [vmem:[#allocation9 + $0xf8] sm:$0xff]
    %v2777 = vunpack.c.l.b16 %v2713
    %v2778 = vunpack.c.h.b16 %v2713
    %v2779 = vunpack.c.l.b16 %v2714
    %v2780 = vunpack.c.h.b16 %v2714
    %v2781 = vunpack.c.l.b16 %v2715
    %v2782 = vunpack.c.h.b16 %v2715
    %v2783 = vunpack.c.l.b16 %v2716
    %v2784 = vunpack.c.h.b16 %v2716
    %v2785 = vunpack.c.l.b16 %v2717
    %v2786 = vunpack.c.h.b16 %v2717
    %v2787 = vunpack.c.l.b16 %v2718
    %v2788 = vunpack.c.h.b16 %v2718
    %v2789 = vunpack.c.l.b16 %v2719
    %v2790 = vunpack.c.h.b16 %v2719
    %v2791 = vunpack.c.l.b16 %v2720
    %v2792 = vunpack.c.h.b16 %v2720
    %v2793 = vunpack.c.l.b16 %v2721
    %v2794 = vunpack.c.h.b16 %v2721
    %v2795 = vunpack.c.l.b16 %v2722
    %v2796 = vunpack.c.h.b16 %v2722
    %v2797 = vunpack.c.l.b16 %v2723
    %v2798 = vunpack.c.h.b16 %v2723
    %v2799 = vunpack.c.l.b16 %v2724
    %v2800 = vunpack.c.h.b16 %v2724
    %v2801 = vunpack.c.l.b16 %v2725
    %v2802 = vunpack.c.h.b16 %v2725
    %v2803 = vunpack.c.l.b16 %v2726
    %v2804 = vunpack.c.h.b16 %v2726
    %v2805 = vunpack.c.l.b16 %v2727
    %v2806 = vunpack.c.h.b16 %v2727
    %v2807 = vunpack.c.l.b16 %v2728
    %v2808 = vunpack.c.h.b16 %v2728
    %v2809 = vunpack.c.l.b16 %v2729
    %v2810 = vunpack.c.h.b16 %v2729
    %v2811 = vunpack.c.l.b16 %v2730
    %v2812 = vunpack.c.h.b16 %v2730
    %v2813 = vunpack.c.l.b16 %v2731
    %v2814 = vunpack.c.h.b16 %v2731
    %v2815 = vunpack.c.l.b16 %v2732
    %v2816 = vunpack.c.h.b16 %v2732
    %v2817 = vunpack.c.l.b16 %v2733
    %v2818 = vunpack.c.h.b16 %v2733
    %v2819 = vunpack.c.l.b16 %v2734
    %v2820 = vunpack.c.h.b16 %v2734
    %v2821 = vunpack.c.l.b16 %v2735
    %v2822 = vunpack.c.h.b16 %v2735
    %v2823 = vunpack.c.l.b16 %v2736
    %v2824 = vunpack.c.h.b16 %v2736
    %v2825 = vunpack.c.l.b16 %v2737
    %v2826 = vunpack.c.h.b16 %v2737
    %v2827 = vunpack.c.l.b16 %v2738
    %v2828 = vunpack.c.h.b16 %v2738
    %v2829 = vunpack.c.l.b16 %v2739
    %v2830 = vunpack.c.h.b16 %v2739
    %v2831 = vunpack.c.l.b16 %v2740
    %v2832 = vunpack.c.h.b16 %v2740
    %v2833 = vunpack.c.l.b16 %v2741
    %v2834 = vunpack.c.h.b16 %v2741
    %v2835 = vunpack.c.l.b16 %v2742
    %v2836 = vunpack.c.h.b16 %v2742
    %v2837 = vunpack.c.l.b16 %v2743
    %v2838 = vunpack.c.h.b16 %v2743
    %v2839 = vunpack.c.l.b16 %v2744
    %v2840 = vunpack.c.h.b16 %v2744
    %v2841 = vpack.c.b16 %v2781, %v2777
    %v2842 = vpack.c.b16 %v2782, %v2778
    %v2843 = vpack.c.b16 %v2783, %v2779
    %v2844 = vpack.c.b16 %v2784, %v2780
    %v2845 = vpack.c.b16 %v2789, %v2785
    %v2846 = vpack.c.b16 %v2790, %v2786
    %v2847 = vpack.c.b16 %v2791, %v2787
    %v2848 = vpack.c.b16 %v2792, %v2788
    %v2849 = vpack.c.b16 %v2797, %v2793
    %v2850 = vpack.c.b16 %v2798, %v2794
    %v2851 = vpack.c.b16 %v2799, %v2795
    %v2852 = vpack.c.b16 %v2800, %v2796
    %v2853 = vpack.c.b16 %v2805, %v2801
    %v2854 = vpack.c.b16 %v2806, %v2802
    %v2855 = vpack.c.b16 %v2807, %v2803
    %v2856 = vpack.c.b16 %v2808, %v2804
    %v2857 = vpack.c.b16 %v2813, %v2809
    %v2858 = vpack.c.b16 %v2814, %v2810
    %v2859 = vpack.c.b16 %v2815, %v2811
    %v2860 = vpack.c.b16 %v2816, %v2812
    %v2861 = vpack.c.b16 %v2821, %v2817
    %v2862 = vpack.c.b16 %v2822, %v2818
    %v2863 = vpack.c.b16 %v2823, %v2819
    %v2864 = vpack.c.b16 %v2824, %v2820
    %v2865 = vpack.c.b16 %v2829, %v2825
    %v2866 = vpack.c.b16 %v2830, %v2826
    %v2867 = vpack.c.b16 %v2831, %v2827
    %v2868 = vpack.c.b16 %v2832, %v2828
    %v2869 = vpack.c.b16 %v2837, %v2833
    %v2870 = vpack.c.b16 %v2838, %v2834
    %v2871 = vpack.c.b16 %v2839, %v2835
    %v2872 = vpack.c.b16 %v2840, %v2836
    %2905 = vmatprep.subr.bf16.mxu0 %v2842
    %2906 = vmatpush1.bf16.msra.mxu0 %v2841
    %2907 = vmatprep.subr.bf16.mxu0 %v2846
    %2908 = vmatpush1.bf16.msra.mxu0 %v2845
    %2909 = vmatprep.subr.bf16.mxu0 %v2850
    %2910 = vmatpush1.bf16.msra.mxu0 %v2849
    %2911 = vmatprep.subr.bf16.mxu0 %v2854
    %2912 = vmatpush1.bf16.msra.mxu0 %v2853
    %2913 = vmatprep.subr.bf16.mxu0 %v2858
    %2914 = vmatpush1.bf16.msra.mxu0 %v2857
    %2915 = vmatprep.subr.bf16.mxu0 %v2862
    %2916 = vmatpush1.bf16.msra.mxu0 %v2861
    %2917 = vmatprep.subr.bf16.mxu0 %v2866
    %2918 = vmatpush1.bf16.msra.mxu0 %v2865
    %2919 = vmatprep.subr.bf16.mxu0 %v2870
    %2920 = vmatpush1.bf16.msra.mxu0 %v2869
    %2921 = vmatprep.subr.bf16.mxu0 0
    %2922 = vmatpush1.bf16.msra.mxu0 0
    %2923 = vmatprep.subr.bf16.mxu0 0
    %2924 = vmatpush1.bf16.msra.mxu0 0
    %2925 = vmatprep.subr.bf16.mxu0 0
    %2926 = vmatpush1.bf16.msra.mxu0 0
    %2927 = vmatprep.subr.bf16.mxu0 0
    %2928 = vmatpush1.bf16.msra.mxu0 0
    %2929 = vmatprep.subr.bf16.mxu0 0
    %2930 = vmatpush1.bf16.msra.mxu0 0
    %2931 = vmatprep.subr.bf16.mxu0 0
    %2932 = vmatpush1.bf16.msra.mxu0 0
    %2933 = vmatprep.subr.bf16.mxu0 0
    %2934 = vmatpush1.bf16.msra.mxu0 0
    %2935 = vmatprep.subr.bf16.mxu0 0
    %2936 = vmatpush1.bf16.msra.mxu0 0
    %2937 = vmatprep.mubr.bf16.mxu0 0
    %2938 = vmatmul.mubr.bf16.gmra.mrb[0].mxu0 %v2705
    %v2939 = vpop.f32.mrb[0].mxu0
    %v2940 = vadd.f32 0.0, %v2939
    %v2941 = vpop.f32.mrb[0].mxu0
    %v2942 = vadd.f32 0.0, %v2941
    %v2943 = vpop.f32.mrb[0].mxu0
    %v2944 = vpop.f32.mrb[0].mxu0
    %2945 = vdwg.mxu0
    %2946 = vmatprep.subr.bf16.mxu0 %v2844
    %2947 = vmatpush1.bf16.msra.mxu0 %v2843
    %2948 = vmatprep.subr.bf16.mxu0 %v2848
    %2949 = vmatpush1.bf16.msra.mxu0 %v2847
    %2950 = vmatprep.subr.bf16.mxu0 %v2852
    %2951 = vmatpush1.bf16.msra.mxu0 %v2851
    %2952 = vmatprep.subr.bf16.mxu0 %v2856
    %2953 = vmatpush1.bf16.msra.mxu0 %v2855
    %2954 = vmatprep.subr.bf16.mxu0 %v2860
    %2955 = vmatpush1.bf16.msra.mxu0 %v2859
    %2956 = vmatprep.subr.bf16.mxu0 %v2864
    %2957 = vmatpush1.bf16.msra.mxu0 %v2863
    %2958 = vmatprep.subr.bf16.mxu0 %v2868
    %2959 = vmatpush1.bf16.msra.mxu0 %v2867
    %2960 = vmatprep.subr.bf16.mxu0 %v2872
    %2961 = vmatpush1.bf16.msra.mxu0 %v2871
    %2962 = vmatprep.subr.bf16.mxu0 0
    %2963 = vmatpush1.bf16.msra.mxu0 0
    %2964 = vmatprep.subr.bf16.mxu0 0
    %2965 = vmatpush1.bf16.msra.mxu0 0
    %2966 = vmatprep.subr.bf16.mxu0 0
    %2967 = vmatpush1.bf16.msra.mxu0 0
    %2968 = vmatprep.subr.bf16.mxu0 0
    %2969 = vmatpush1.bf16.msra.mxu0 0
    %2970 = vmatprep.subr.bf16.mxu0 0
    %2971 = vmatpush1.bf16.msra.mxu0 0
    %2972 = vmatprep.subr.bf16.mxu0 0
    %2973 = vmatpush1.bf16.msra.mxu0 0
    %2974 = vmatprep.subr.bf16.mxu0 0
    %2975 = vmatpush1.bf16.msra.mxu0 0
    %2976 = vmatprep.subr.bf16.mxu0 0
    %2977 = vmatpush1.bf16.msra.mxu0 0
    %2978 = vmatprep.mubr.bf16.mxu0 0
    %2979 = vmatmul.mubr.bf16.gmra.mrb[0].mxu0 %v2705
    %v2980 = vpop.f32.mrb[0].mxu0
    %v2981 = vadd.f32 0.0, %v2980
    %v2982 = vpop.f32.mrb[0].mxu0
    %v2983 = vadd.f32 0.0, %v2982
    %v2984 = vpop.f32.mrb[0].mxu0
    %v2985 = vpop.f32.mrb[0].mxu0
    %2986 = vdwg.mxu0
    %v2987 = vadd.f32 %v2709, %v2940
    %v2988 = vadd.f32 %v2710, %v2942
    %v2989 = vadd.f32 %v2711, %v2981
    %v2990 = vadd.f32 %v2712, %v2983
    %v2991 = vxor.u32 %v2987, 2147483648
    %v2992 = vxor.u32 %v2988, 2147483648
    %v2993 = vxor.u32 %v2989, 2147483648
    %v2994 = vmul.f32 %v2991, 1.442695
    %v2995 = vpow.pop %v2994
    %v2996 = vmul.f32 %v2992, 1.442695
    %v2997 = vpow.pop %v2996
    %v2998 = vmul.f32 %v2993, 1.442695
    %v2999 = vpow.pop %v2998
    %v3000 = vadd.f32 %v2995, 1.0
    %v3001 = vadd.f32 %v2997, 1.0
    %v3002 = vadd.f32 %v2999, 1.0
    %v3003 = vrcp.pop %v3000
    %v3004 = vmul.f32 1.0, %v3003
    %v3005 = vrcp.pop %v3001
    %v3006 = vmul.f32 1.0, %v3005
    %v3007 = vrcp.pop %v3002
    %v3008 = vmul.f32 1.0, %v3007
    %v3009 = vtanh.pop %v2990
    %v3010 = vmul.f32 %v3006, %v2702
    %v3011 = vmul.f32 %v3004, %v3009
    %v3012 = vadd.f32 %v3010, %v3011
    %v3013 = vtanh.pop %v3012
    %v3014 = vmul.f32 %v3008, %v3013
    %v3015 = vpack.c.bf16 %v3014, %v3014
    %s3016 = scalar_lea.vmem [#allocation3], 28
    %3017 = vst [vmem:[%s3016] sm:$0xf] %v3015
    %v3018 = vld [vmem:[%s6] sm:$0xf]
    %v3019 = vld [vmem:[#allocation3] sm:$0xf]
    %v3020 = vld [vmem:[#allocation3 + $0x4] sm:$0xf]
    %v3021 = vld [vmem:[#allocation3 + $0x8] sm:$0xf]
    %v3022 = vld [vmem:[#allocation3 + $0xc] sm:$0xf]
    %v3023 = vld [vmem:[#allocation3 + $0x10] sm:$0xf]
    %v3024 = vld [vmem:[#allocation3 + $0x14] sm:$0xf]
    %v3025 = vld [vmem:[#allocation3 + $0x18] sm:$0xf]
    %v3026 = vld [vmem:[#allocation3 + $0x1c] sm:$0xf]
    %v3027 = vld [vmem:[#allocation10] sm:$0xff]
    %v3028 = vld [vmem:[#allocation10 + $0x8] sm:$0xff]
    %v3029 = vld [vmem:[#allocation10 + $0x10] sm:$0xff]
    %v3030 = vld [vmem:[#allocation10 + $0x18] sm:$0xff]
    %v3031 = vld [vmem:[#allocation10 + $0x20] sm:$0xff]
    %v3032 = vld [vmem:[#allocation10 + $0x28] sm:$0xff]
    %v3033 = vld [vmem:[#allocation10 + $0x30] sm:$0xff]
    %v3034 = vld [vmem:[#allocation10 + $0x38] sm:$0xff]
    %v3035 = vld [vmem:[#allocation10 + $0x40] sm:$0xff]
    %v3036 = vld [vmem:[#allocation10 + $0x48] sm:$0xff]
    %v3037 = vld [vmem:[#allocation10 + $0x50] sm:$0xff]
    %v3038 = vld [vmem:[#allocation10 + $0x58] sm:$0xff]
    %v3039 = vld [vmem:[#allocation10 + $0x60] sm:$0xff]
    %v3040 = vld [vmem:[#allocation10 + $0x68] sm:$0xff]
    %v3041 = vld [vmem:[#allocation10 + $0x70] sm:$0xff]
    %v3042 = vld [vmem:[#allocation10 + $0x78] sm:$0xff]
    %v3043 = vld [vmem:[#allocation10 + $0x80] sm:$0xff]
    %v3044 = vld [vmem:[#allocation10 + $0x88] sm:$0xff]
    %v3045 = vld [vmem:[#allocation10 + $0x90] sm:$0xff]
    %v3046 = vld [vmem:[#allocation10 + $0x98] sm:$0xff]
    %v3047 = vld [vmem:[#allocation10 + $0xa0] sm:$0xff]
    %v3048 = vld [vmem:[#allocation10 + $0xa8] sm:$0xff]
    %v3049 = vld [vmem:[#allocation10 + $0xb0] sm:$0xff]
    %v3050 = vld [vmem:[#allocation10 + $0xb8] sm:$0xff]
    %v3051 = vld [vmem:[#allocation10 + $0xc0] sm:$0xff]
    %v3052 = vld [vmem:[#allocation10 + $0xc8] sm:$0xff]
    %v3053 = vld [vmem:[#allocation10 + $0xd0] sm:$0xff]
    %v3054 = vld [vmem:[#allocation10 + $0xd8] sm:$0xff]
    %v3055 = vld [vmem:[#allocation10 + $0xe0] sm:$0xff]
    %v3056 = vld [vmem:[#allocation10 + $0xe8] sm:$0xff]
    %v3057 = vld [vmem:[#allocation10 + $0xf0] sm:$0xff]
    %v3058 = vld [vmem:[#allocation10 + $0xf8] sm:$0xff]
    %v3060 = vlaneseq
    %v3061 = vshrl.u32 %v3060, 7
    %v3062 = vsub.s32 0, %v3061
    %v3063 = vrot.slane %v3018, %v3062
    %v3064 = vlaneseq
    %v3065 = vshrl.u32 %v3064, 7
    %v3066 = vsub.s32 1, %v3065
    %v3067 = vrot.slane %v3018, %v3066
    %v3068 = vlaneseq
    %v3069 = vshrl.u32 %v3068, 7
    %v3070 = vsub.s32 2, %v3069
    %v3071 = vrot.slane %v3018, %v3070
    %v3072 = vlaneseq
    %v3073 = vshrl.u32 %v3072, 7
    %v3074 = vsub.s32 3, %v3073
    %v3075 = vrot.slane %v3018, %v3074
    %v3088 = vunpack.c.l.b16 %v3019
    %v3089 = vunpack.c.l.b16 %v3020
    %v3090 = vunpack.c.l.b16 %v3021
    %v3091 = vunpack.c.l.b16 %v3022
    %v3092 = vunpack.c.l.b16 %v3023
    %v3093 = vunpack.c.l.b16 %v3024
    %v3094 = vunpack.c.l.b16 %v3025
    %v3095 = vunpack.c.l.b16 %v3026
    %v3096 = vpack.c.b16 %v3089, %v3088
    %v3097 = vpack.c.b16 %v3091, %v3090
    %v3098 = vpack.c.b16 %v3093, %v3092
    %v3099 = vpack.c.b16 %v3095, %v3094
    %v3136 = vunpack.c.l.b16 %v3027
    %v3137 = vunpack.c.h.b16 %v3027
    %v3138 = vunpack.c.l.b16 %v3028
    %v3139 = vunpack.c.h.b16 %v3028
    %v3140 = vunpack.c.l.b16 %v3029
    %v3141 = vunpack.c.h.b16 %v3029
    %v3142 = vunpack.c.l.b16 %v3030
    %v3143 = vunpack.c.h.b16 %v3030
    %v3144 = vunpack.c.l.b16 %v3031
    %v3145 = vunpack.c.h.b16 %v3031
    %v3146 = vunpack.c.l.b16 %v3032
    %v3147 = vunpack.c.h.b16 %v3032
    %v3148 = vunpack.c.l.b16 %v3033
    %v3149 = vunpack.c.h.b16 %v3033
    %v3150 = vunpack.c.l.b16 %v3034
    %v3151 = vunpack.c.h.b16 %v3034
    %v3152 = vunpack.c.l.b16 %v3035
    %v3153 = vunpack.c.h.b16 %v3035
    %v3154 = vunpack.c.l.b16 %v3036
    %v3155 = vunpack.c.h.b16 %v3036
    %v3156 = vunpack.c.l.b16 %v3037
    %v3157 = vunpack.c.h.b16 %v3037
    %v3158 = vunpack.c.l.b16 %v3038
    %v3159 = vunpack.c.h.b16 %v3038
    %v3160 = vunpack.c.l.b16 %v3039
    %v3161 = vunpack.c.h.b16 %v3039
    %v3162 = vunpack.c.l.b16 %v3040
    %v3163 = vunpack.c.h.b16 %v3040
    %v3164 = vunpack.c.l.b16 %v3041
    %v3165 = vunpack.c.h.b16 %v3041
    %v3166 = vunpack.c.l.b16 %v3042
    %v3167 = vunpack.c.h.b16 %v3042
    %v3168 = vunpack.c.l.b16 %v3043
    %v3169 = vunpack.c.h.b16 %v3043
    %v3170 = vunpack.c.l.b16 %v3044
    %v3171 = vunpack.c.h.b16 %v3044
    %v3172 = vunpack.c.l.b16 %v3045
    %v3173 = vunpack.c.h.b16 %v3045
    %v3174 = vunpack.c.l.b16 %v3046
    %v3175 = vunpack.c.h.b16 %v3046
    %v3176 = vunpack.c.l.b16 %v3047
    %v3177 = vunpack.c.h.b16 %v3047
    %v3178 = vunpack.c.l.b16 %v3048
    %v3179 = vunpack.c.h.b16 %v3048
    %v3180 = vunpack.c.l.b16 %v3049
    %v3181 = vunpack.c.h.b16 %v3049
    %v3182 = vunpack.c.l.b16 %v3050
    %v3183 = vunpack.c.h.b16 %v3050
    %v3184 = vunpack.c.l.b16 %v3051
    %v3185 = vunpack.c.h.b16 %v3051
    %v3186 = vunpack.c.l.b16 %v3052
    %v3187 = vunpack.c.h.b16 %v3052
    %v3188 = vunpack.c.l.b16 %v3053
    %v3189 = vunpack.c.h.b16 %v3053
    %v3190 = vunpack.c.l.b16 %v3054
    %v3191 = vunpack.c.h.b16 %v3054
    %v3192 = vunpack.c.l.b16 %v3055
    %v3193 = vunpack.c.h.b16 %v3055
    %v3194 = vunpack.c.l.b16 %v3056
    %v3195 = vunpack.c.h.b16 %v3056
    %v3196 = vunpack.c.l.b16 %v3057
    %v3197 = vunpack.c.h.b16 %v3057
    %v3198 = vunpack.c.l.b16 %v3058
    %v3199 = vunpack.c.h.b16 %v3058
    %v3200 = vpack.c.b16 %v3140, %v3136
    %v3201 = vpack.c.b16 %v3141, %v3137
    %v3202 = vpack.c.b16 %v3142, %v3138
    %v3203 = vpack.c.b16 %v3143, %v3139
    %v3204 = vpack.c.b16 %v3148, %v3144
    %v3205 = vpack.c.b16 %v3149, %v3145
    %v3206 = vpack.c.b16 %v3150, %v3146
    %v3207 = vpack.c.b16 %v3151, %v3147
    %v3208 = vpack.c.b16 %v3156, %v3152
    %v3209 = vpack.c.b16 %v3157, %v3153
    %v3210 = vpack.c.b16 %v3158, %v3154
    %v3211 = vpack.c.b16 %v3159, %v3155
    %v3212 = vpack.c.b16 %v3164, %v3160
    %v3213 = vpack.c.b16 %v3165, %v3161
    %v3214 = vpack.c.b16 %v3166, %v3162
    %v3215 = vpack.c.b16 %v3167, %v3163
    %v3216 = vpack.c.b16 %v3172, %v3168
    %v3217 = vpack.c.b16 %v3173, %v3169
    %v3218 = vpack.c.b16 %v3174, %v3170
    %v3219 = vpack.c.b16 %v3175, %v3171
    %v3220 = vpack.c.b16 %v3180, %v3176
    %v3221 = vpack.c.b16 %v3181, %v3177
    %v3222 = vpack.c.b16 %v3182, %v3178
    %v3223 = vpack.c.b16 %v3183, %v3179
    %v3224 = vpack.c.b16 %v3188, %v3184
    %v3225 = vpack.c.b16 %v3189, %v3185
    %v3226 = vpack.c.b16 %v3190, %v3186
    %v3227 = vpack.c.b16 %v3191, %v3187
    %v3228 = vpack.c.b16 %v3196, %v3192
    %v3229 = vpack.c.b16 %v3197, %v3193
    %v3230 = vpack.c.b16 %v3198, %v3194
    %v3231 = vpack.c.b16 %v3199, %v3195
    %3264 = vmatprep.subr.bf16.mxu0 %v3201
    %3265 = vmatpush1.bf16.msra.mxu0 %v3200
    %3266 = vmatprep.subr.bf16.mxu0 %v3205
    %3267 = vmatpush1.bf16.msra.mxu0 %v3204
    %3268 = vmatprep.subr.bf16.mxu0 %v3209
    %3269 = vmatpush1.bf16.msra.mxu0 %v3208
    %3270 = vmatprep.subr.bf16.mxu0 %v3213
    %3271 = vmatpush1.bf16.msra.mxu0 %v3212
    %3272 = vmatprep.subr.bf16.mxu0 %v3217
    %3273 = vmatpush1.bf16.msra.mxu0 %v3216
    %3274 = vmatprep.subr.bf16.mxu0 %v3221
    %3275 = vmatpush1.bf16.msra.mxu0 %v3220
    %3276 = vmatprep.subr.bf16.mxu0 %v3225
    %3277 = vmatpush1.bf16.msra.mxu0 %v3224
    %3278 = vmatprep.subr.bf16.mxu0 %v3229
    %3279 = vmatpush1.bf16.msra.mxu0 %v3228
    %3280 = vmatprep.subr.bf16.mxu0 0
    %3281 = vmatpush1.bf16.msra.mxu0 0
    %3282 = vmatprep.subr.bf16.mxu0 0
    %3283 = vmatpush1.bf16.msra.mxu0 0
    %3284 = vmatprep.subr.bf16.mxu0 0
    %3285 = vmatpush1.bf16.msra.mxu0 0
    %3286 = vmatprep.subr.bf16.mxu0 0
    %3287 = vmatpush1.bf16.msra.mxu0 0
    %3288 = vmatprep.subr.bf16.mxu0 0
    %3289 = vmatpush1.bf16.msra.mxu0 0
    %3290 = vmatprep.subr.bf16.mxu0 0
    %3291 = vmatpush1.bf16.msra.mxu0 0
    %3292 = vmatprep.subr.bf16.mxu0 0
    %3293 = vmatpush1.bf16.msra.mxu0 0
    %3294 = vmatprep.subr.bf16.mxu0 0
    %3295 = vmatpush1.bf16.msra.mxu0 0
    %3296 = vmatprep.mubr.bf16.mxu0 0
    %3297 = vmatmul.mubr.bf16.gmra.mrb[0].mxu0 %v3096
    %v3298 = vpop.f32.mrb[0].mxu0
    %v3299 = vadd.f32 %v3063, %v3298
    %v3300 = vpop.f32.mrb[0].mxu0
    %v3301 = vadd.f32 %v3067, %v3300
    %v3302 = vpop.f32.mrb[0].mxu0
    %v3303 = vadd.f32 %v3063, %v3302
    %v3304 = vpop.f32.mrb[0].mxu0
    %v3305 = vadd.f32 %v3067, %v3304
    %3306 = vmatprep.mubr.bf16.mxu0 0
    %3307 = vmatmul.mubr.bf16.gmra.mrb[0].mxu0 %v3097
    %v3308 = vpop.f32.mrb[0].mxu0
    %v3309 = vadd.f32 %v3063, %v3308
    %v3310 = vpop.f32.mrb[0].mxu0
    %v3311 = vadd.f32 %v3067, %v3310
    %v3312 = vpop.f32.mrb[0].mxu0
    %v3313 = vadd.f32 %v3063, %v3312
    %v3314 = vpop.f32.mrb[0].mxu0
    %v3315 = vadd.f32 %v3067, %v3314
    %3316 = vmatprep.mubr.bf16.mxu0 0
    %3317 = vmatmul.mubr.bf16.gmra.mrb[0].mxu0 %v3098
    %v3318 = vpop.f32.mrb[0].mxu0
    %v3319 = vadd.f32 %v3063, %v3318
    %v3320 = vpop.f32.mrb[0].mxu0
    %v3321 = vadd.f32 %v3067, %v3320
    %v3322 = vpop.f32.mrb[0].mxu0
    %v3323 = vadd.f32 %v3063, %v3322
    %v3324 = vpop.f32.mrb[0].mxu0
    %v3325 = vadd.f32 %v3067, %v3324
    %3326 = vmatprep.mubr.bf16.mxu0 0
    %3327 = vmatmul.mubr.bf16.gmra.mrb[0].mxu0 %v3099
    %v3328 = vpop.f32.mrb[0].mxu0
    %v3329 = vadd.f32 %v3063, %v3328
    %v3330 = vpop.f32.mrb[0].mxu0
    %v3331 = vadd.f32 %v3067, %v3330
    %v3332 = vpop.f32.mrb[0].mxu0
    %v3333 = vadd.f32 %v3063, %v3332
    %v3334 = vpop.f32.mrb[0].mxu0
    %v3335 = vadd.f32 %v3067, %v3334
    %3336 = vdwg.mxu0
    %3337 = vmatprep.subr.bf16.mxu0 %v3203
    %3338 = vmatpush1.bf16.msra.mxu0 %v3202
    %3339 = vmatprep.subr.bf16.mxu0 %v3207
    %3340 = vmatpush1.bf16.msra.mxu0 %v3206
    %3341 = vmatprep.subr.bf16.mxu0 %v3211
    %3342 = vmatpush1.bf16.msra.mxu0 %v3210
    %3343 = vmatprep.subr.bf16.mxu0 %v3215
    %3344 = vmatpush1.bf16.msra.mxu0 %v3214
    %3345 = vmatprep.subr.bf16.mxu0 %v3219
    %3346 = vmatpush1.bf16.msra.mxu0 %v3218
    %3347 = vmatprep.subr.bf16.mxu0 %v3223
    %3348 = vmatpush1.bf16.msra.mxu0 %v3222
    %3349 = vmatprep.subr.bf16.mxu0 %v3227
    %3350 = vmatpush1.bf16.msra.mxu0 %v3226
    %3351 = vmatprep.subr.bf16.mxu0 %v3231
    %3352 = vmatpush1.bf16.msra.mxu0 %v3230
    %3353 = vmatprep.subr.bf16.mxu0 0
    %3354 = vmatpush1.bf16.msra.mxu0 0
    %3355 = vmatprep.subr.bf16.mxu0 0
    %3356 = vmatpush1.bf16.msra.mxu0 0
    %3357 = vmatprep.subr.bf16.mxu0 0
    %3358 = vmatpush1.bf16.msra.mxu0 0
    %3359 = vmatprep.subr.bf16.mxu0 0
    %3360 = vmatpush1.bf16.msra.mxu0 0
    %3361 = vmatprep.subr.bf16.mxu0 0
    %3362 = vmatpush1.bf16.msra.mxu0 0
    %3363 = vmatprep.subr.bf16.mxu0 0
    %3364 = vmatpush1.bf16.msra.mxu0 0
    %3365 = vmatprep.subr.bf16.mxu0 0
    %3366 = vmatpush1.bf16.msra.mxu0 0
    %3367 = vmatprep.subr.bf16.mxu0 0
    %3368 = vmatpush1.bf16.msra.mxu0 0
    %3369 = vmatprep.mubr.bf16.mxu0 0
    %3370 = vmatmul.mubr.bf16.gmra.mrb[0].mxu0 %v3096
    %v3371 = vpop.f32.mrb[0].mxu0
    %v3372 = vadd.f32 %v3071, %v3371
    %v3373 = vpop.f32.mrb[0].mxu0
    %v3374 = vadd.f32 %v3075, %v3373
    %v3375 = vpop.f32.mrb[0].mxu0
    %v3376 = vadd.f32 %v3071, %v3375
    %v3377 = vpop.f32.mrb[0].mxu0
    %v3378 = vadd.f32 %v3075, %v3377
    %3379 = vmatprep.mubr.bf16.mxu0 0
    %3380 = vmatmul.mubr.bf16.gmra.mrb[0].mxu0 %v3097
    %v3381 = vpop.f32.mrb[0].mxu0
    %v3382 = vadd.f32 %v3071, %v3381
    %v3383 = vpop.f32.mrb[0].mxu0
    %v3384 = vadd.f32 %v3075, %v3383
    %v3385 = vpop.f32.mrb[0].mxu0
    %v3386 = vadd.f32 %v3071, %v3385
    %v3387 = vpop.f32.mrb[0].mxu0
    %v3388 = vadd.f32 %v3075, %v3387
    %3389 = vmatprep.mubr.bf16.mxu0 0
    %3390 = vmatmul.mubr.bf16.gmra.mrb[0].mxu0 %v3098
    %v3391 = vpop.f32.mrb[0].mxu0
    %v3392 = vadd.f32 %v3071, %v3391
    %v3393 = vpop.f32.mrb[0].mxu0
    %v3394 = vadd.f32 %v3075, %v3393
    %v3395 = vpop.f32.mrb[0].mxu0
    %v3396 = vadd.f32 %v3071, %v3395
    %v3397 = vpop.f32.mrb[0].mxu0
    %v3398 = vadd.f32 %v3075, %v3397
    %3399 = vmatprep.mubr.bf16.mxu0 0
    %3400 = vmatmul.mubr.bf16.gmra.mrb[0].mxu0 %v3099
    %v3401 = vpop.f32.mrb[0].mxu0
    %v3402 = vadd.f32 %v3071, %v3401
    %v3403 = vpop.f32.mrb[0].mxu0
    %v3404 = vadd.f32 %v3075, %v3403
    %v3405 = vpop.f32.mrb[0].mxu0
    %v3406 = vadd.f32 %v3071, %v3405
    %v3407 = vpop.f32.mrb[0].mxu0
    %v3408 = vadd.f32 %v3075, %v3407
    %3409 = vdwg.mxu0
    %3410 = vst [vmem:[#allocation2] sm:$0xff] %v3299
    %3411 = vst [vmem:[#allocation2 + $0x8] sm:$0xff] %v3301
    %3412 = vst [vmem:[#allocation2 + $0x10] sm:$0xff] %v3372
    %3413 = vst [vmem:[#allocation2 + $0x18] sm:$0xff] %v3374
    %3414 = vst [vmem:[#allocation2 + $0x20] sm:$0xff] %v3303
    %3415 = vst [vmem:[#allocation2 + $0x28] sm:$0xff] %v3305
    %3416 = vst [vmem:[#allocation2 + $0x30] sm:$0xff] %v3376
    %3417 = vst [vmem:[#allocation2 + $0x38] sm:$0xff] %v3378
    %3418 = vst [vmem:[#allocation2 + $0x40] sm:$0xff] %v3309
    %3419 = vst [vmem:[#allocation2 + $0x48] sm:$0xff] %v3311
    %3420 = vst [vmem:[#allocation2 + $0x50] sm:$0xff] %v3382
    %3421 = vst [vmem:[#allocation2 + $0x58] sm:$0xff] %v3384
    %3422 = vst [vmem:[#allocation2 + $0x60] sm:$0xff] %v3313
    %3423 = vst [vmem:[#allocation2 + $0x68] sm:$0xff] %v3315
    %3424 = vst [vmem:[#allocation2 + $0x70] sm:$0xff] %v3386
    %3425 = vst [vmem:[#allocation2 + $0x78] sm:$0xff] %v3388
    %3426 = vst [vmem:[#allocation2 + $0x80] sm:$0xff] %v3319
    %3427 = vst [vmem:[#allocation2 + $0x88] sm:$0xff] %v3321
    %3428 = vst [vmem:[#allocation2 + $0x90] sm:$0xff] %v3392
    %3429 = vst [vmem:[#allocation2 + $0x98] sm:$0xff] %v3394
    %3430 = vst [vmem:[#allocation2 + $0xa0] sm:$0xff] %v3323
    %3431 = vst [vmem:[#allocation2 + $0xa8] sm:$0xff] %v3325
    %3432 = vst [vmem:[#allocation2 + $0xb0] sm:$0xff] %v3396
    %3433 = vst [vmem:[#allocation2 + $0xb8] sm:$0xff] %v3398
    %3434 = vst [vmem:[#allocation2 + $0xc0] sm:$0xff] %v3329
    %3435 = vst [vmem:[#allocation2 + $0xc8] sm:$0xff] %v3331
    %3436 = vst [vmem:[#allocation2 + $0xd0] sm:$0xff] %v3402
    %3437 = vst [vmem:[#allocation2 + $0xd8] sm:$0xff] %v3404
    %3438 = vst [vmem:[#allocation2 + $0xe0] sm:$0xff] %v3333
    %3439 = vst [vmem:[#allocation2 + $0xe8] sm:$0xff] %v3335
    %3440 = vst [vmem:[#allocation2 + $0xf0] sm:$0xff] %v3406
    %3441 = vst [vmem:[#allocation2 + $0xf8] sm:$0xff] %v3408
    %v3442 = vld [vmem:[#allocation2] sm:$0xff]
    %v3443 = vld [vmem:[#allocation2 + $0x8] sm:$0xff]
    %v3444 = vld [vmem:[#allocation2 + $0x10] sm:$0xff]
    %v3445 = vld [vmem:[#allocation2 + $0x18] sm:$0xff]
    %v3446 = vld [vmem:[#allocation12] sm:$0xff]
    %v3447 = vld [vmem:[#allocation12 + $0x8] sm:$0xff]
    %v3448 = vld [vmem:[#allocation12 + $0x10] sm:$0xff]
    %v3449 = vld [vmem:[#allocation12 + $0x18] sm:$0xff]
    %v3450 = vld [vmem:[#allocation12 + $0x20] sm:$0xff]
    %v3451 = vld [vmem:[#allocation12 + $0x28] sm:$0xff]
    %v3452 = vld [vmem:[#allocation12 + $0x30] sm:$0xff]
    %v3453 = vld [vmem:[#allocation12 + $0x38] sm:$0xff]
    %v3454 = vld [vmem:[#allocation12 + $0x40] sm:$0xff]
    %v3455 = vld [vmem:[#allocation12 + $0x48] sm:$0xff]
    %v3456 = vld [vmem:[#allocation12 + $0x50] sm:$0xff]
    %v3457 = vld [vmem:[#allocation12 + $0x58] sm:$0xff]
    %v3458 = vld [vmem:[#allocation12 + $0x60] sm:$0xff]
    %v3459 = vld [vmem:[#allocation12 + $0x68] sm:$0xff]
    %v3460 = vld [vmem:[#allocation12 + $0x70] sm:$0xff]
    %v3461 = vld [vmem:[#allocation12 + $0x78] sm:$0xff]
    %v3462 = vld [vmem:[#allocation12 + $0x80] sm:$0xff]
    %v3463 = vld [vmem:[#allocation12 + $0x88] sm:$0xff]
    %v3464 = vld [vmem:[#allocation12 + $0x90] sm:$0xff]
    %v3465 = vld [vmem:[#allocation12 + $0x98] sm:$0xff]
    %v3466 = vld [vmem:[#allocation12 + $0xa0] sm:$0xff]
    %v3467 = vld [vmem:[#allocation12 + $0xa8] sm:$0xff]
    %v3468 = vld [vmem:[#allocation12 + $0xb0] sm:$0xff]
    %v3469 = vld [vmem:[#allocation12 + $0xb8] sm:$0xff]
    %v3470 = vld [vmem:[#allocation12 + $0xc0] sm:$0xff]
    %v3471 = vld [vmem:[#allocation12 + $0xc8] sm:$0xff]
    %v3472 = vld [vmem:[#allocation12 + $0xd0] sm:$0xff]
    %v3473 = vld [vmem:[#allocation12 + $0xd8] sm:$0xff]
    %v3474 = vld [vmem:[#allocation12 + $0xe0] sm:$0xff]
    %v3475 = vld [vmem:[#allocation12 + $0xe8] sm:$0xff]
    %v3476 = vld [vmem:[#allocation12 + $0xf0] sm:$0xff]
    %v3477 = vld [vmem:[#allocation12 + $0xf8] sm:$0xff]
    %v3510 = vunpack.c.l.b16 %v3446
    %v3511 = vunpack.c.h.b16 %v3446
    %v3512 = vunpack.c.l.b16 %v3447
    %v3513 = vunpack.c.h.b16 %v3447
    %v3514 = vunpack.c.l.b16 %v3448
    %v3515 = vunpack.c.h.b16 %v3448
    %v3516 = vunpack.c.l.b16 %v3449
    %v3517 = vunpack.c.h.b16 %v3449
    %v3518 = vunpack.c.l.b16 %v3450
    %v3519 = vunpack.c.h.b16 %v3450
    %v3520 = vunpack.c.l.b16 %v3451
    %v3521 = vunpack.c.h.b16 %v3451
    %v3522 = vunpack.c.l.b16 %v3452
    %v3523 = vunpack.c.h.b16 %v3452
    %v3524 = vunpack.c.l.b16 %v3453
    %v3525 = vunpack.c.h.b16 %v3453
    %v3526 = vunpack.c.l.b16 %v3454
    %v3527 = vunpack.c.h.b16 %v3454
    %v3528 = vunpack.c.l.b16 %v3455
    %v3529 = vunpack.c.h.b16 %v3455
    %v3530 = vunpack.c.l.b16 %v3456
    %v3531 = vunpack.c.h.b16 %v3456
    %v3532 = vunpack.c.l.b16 %v3457
    %v3533 = vunpack.c.h.b16 %v3457
    %v3534 = vunpack.c.l.b16 %v3458
    %v3535 = vunpack.c.h.b16 %v3458
    %v3536 = vunpack.c.l.b16 %v3459
    %v3537 = vunpack.c.h.b16 %v3459
    %v3538 = vunpack.c.l.b16 %v3460
    %v3539 = vunpack.c.h.b16 %v3460
    %v3540 = vunpack.c.l.b16 %v3461
    %v3541 = vunpack.c.h.b16 %v3461
    %v3542 = vunpack.c.l.b16 %v3462
    %v3543 = vunpack.c.h.b16 %v3462
    %v3544 = vunpack.c.l.b16 %v3463
    %v3545 = vunpack.c.h.b16 %v3463
    %v3546 = vunpack.c.l.b16 %v3464
    %v3547 = vunpack.c.h.b16 %v3464
    %v3548 = vunpack.c.l.b16 %v3465
    %v3549 = vunpack.c.h.b16 %v3465
    %v3550 = vunpack.c.l.b16 %v3466
    %v3551 = vunpack.c.h.b16 %v3466
    %v3552 = vunpack.c.l.b16 %v3467
    %v3553 = vunpack.c.h.b16 %v3467
    %v3554 = vunpack.c.l.b16 %v3468
    %v3555 = vunpack.c.h.b16 %v3468
    %v3556 = vunpack.c.l.b16 %v3469
    %v3557 = vunpack.c.h.b16 %v3469
    %v3558 = vunpack.c.l.b16 %v3470
    %v3559 = vunpack.c.h.b16 %v3470
    %v3560 = vunpack.c.l.b16 %v3471
    %v3561 = vunpack.c.h.b16 %v3471
    %v3562 = vunpack.c.l.b16 %v3472
    %v3563 = vunpack.c.h.b16 %v3472
    %v3564 = vunpack.c.l.b16 %v3473
    %v3565 = vunpack.c.h.b16 %v3473
    %v3566 = vunpack.c.l.b16 %v3474
    %v3567 = vunpack.c.h.b16 %v3474
    %v3568 = vunpack.c.l.b16 %v3475
    %v3569 = vunpack.c.h.b16 %v3475
    %v3570 = vunpack.c.l.b16 %v3476
    %v3571 = vunpack.c.h.b16 %v3476
    %v3572 = vunpack.c.l.b16 %v3477
    %v3573 = vunpack.c.h.b16 %v3477
    %v3574 = vpack.c.b16 %v3514, %v3510
    %v3575 = vpack.c.b16 %v3515, %v3511
    %v3576 = vpack.c.b16 %v3516, %v3512
    %v3577 = vpack.c.b16 %v3517, %v3513
    %v3578 = vpack.c.b16 %v3522, %v3518
    %v3579 = vpack.c.b16 %v3523, %v3519
    %v3580 = vpack.c.b16 %v3524, %v3520
    %v3581 = vpack.c.b16 %v3525, %v3521
    %v3582 = vpack.c.b16 %v3530, %v3526
    %v3583 = vpack.c.b16 %v3531, %v3527
    %v3584 = vpack.c.b16 %v3532, %v3528
    %v3585 = vpack.c.b16 %v3533, %v3529
    %v3586 = vpack.c.b16 %v3538, %v3534
    %v3587 = vpack.c.b16 %v3539, %v3535
    %v3588 = vpack.c.b16 %v3540, %v3536
    %v3589 = vpack.c.b16 %v3541, %v3537
    %v3590 = vpack.c.b16 %v3546, %v3542
    %v3591 = vpack.c.b16 %v3547, %v3543
    %v3592 = vpack.c.b16 %v3548, %v3544
    %v3593 = vpack.c.b16 %v3549, %v3545
    %v3594 = vpack.c.b16 %v3554, %v3550
    %v3595 = vpack.c.b16 %v3555, %v3551
    %v3596 = vpack.c.b16 %v3556, %v3552
    %v3597 = vpack.c.b16 %v3557, %v3553
    %v3598 = vpack.c.b16 %v3562, %v3558
    %v3599 = vpack.c.b16 %v3563, %v3559
    %v3600 = vpack.c.b16 %v3564, %v3560
    %v3601 = vpack.c.b16 %v3565, %v3561
    %v3602 = vpack.c.b16 %v3570, %v3566
    %v3603 = vpack.c.b16 %v3571, %v3567
    %v3604 = vpack.c.b16 %v3572, %v3568
    %v3605 = vpack.c.b16 %v3573, %v3569
    %3638 = vmatprep.subr.bf16.mxu0 %v3575
    %3639 = vmatpush1.bf16.msra.mxu0 %v3574
    %3640 = vmatprep.subr.bf16.mxu0 %v3579
    %3641 = vmatpush1.bf16.msra.mxu0 %v3578
    %3642 = vmatprep.subr.bf16.mxu0 %v3583
    %3643 = vmatpush1.bf16.msra.mxu0 %v3582
    %3644 = vmatprep.subr.bf16.mxu0 %v3587
    %3645 = vmatpush1.bf16.msra.mxu0 %v3586
    %3646 = vmatprep.subr.bf16.mxu0 %v3591
    %3647 = vmatpush1.bf16.msra.mxu0 %v3590
    %3648 = vmatprep.subr.bf16.mxu0 %v3595
    %3649 = vmatpush1.bf16.msra.mxu0 %v3594
    %3650 = vmatprep.subr.bf16.mxu0 %v3599
    %3651 = vmatpush1.bf16.msra.mxu0 %v3598
    %3652 = vmatprep.subr.bf16.mxu0 %v3603
    %3653 = vmatpush1.bf16.msra.mxu0 %v3602
    %3654 = vmatprep.subr.bf16.mxu0 0
    %3655 = vmatpush1.bf16.msra.mxu0 0
    %3656 = vmatprep.subr.bf16.mxu0 0
    %3657 = vmatpush1.bf16.msra.mxu0 0
    %3658 = vmatprep.subr.bf16.mxu0 0
    %3659 = vmatpush1.bf16.msra.mxu0 0
    %3660 = vmatprep.subr.bf16.mxu0 0
    %3661 = vmatpush1.bf16.msra.mxu0 0
    %3662 = vmatprep.subr.bf16.mxu0 0
    %3663 = vmatpush1.bf16.msra.mxu0 0
    %3664 = vmatprep.subr.bf16.mxu0 0
    %3665 = vmatpush1.bf16.msra.mxu0 0
    %3666 = vmatprep.subr.bf16.mxu0 0
    %3667 = vmatpush1.bf16.msra.mxu0 0
    %3668 = vmatprep.subr.bf16.mxu0 0
    %3669 = vmatpush1.bf16.msra.mxu0 0
    %3670 = vmatprep.mubr.bf16.mxu0 0
    %3671 = vmatmul.mubr.bf16.gmra.mrb[0].mxu0 0
    %v3672 = vpop.f32.mrb[0].mxu0
    %v3673 = vadd.f32 0.0, %v3672
    %v3674 = vpop.f32.mrb[0].mxu0
    %v3675 = vadd.f32 0.0, %v3674
    %v3676 = vpop.f32.mrb[0].mxu0
    %v3677 = vpop.f32.mrb[0].mxu0
    %3678 = vdwg.mxu0
    %3679 = vmatprep.subr.bf16.mxu0 %v3577
    %3680 = vmatpush1.bf16.msra.mxu0 %v3576
    %3681 = vmatprep.subr.bf16.mxu0 %v3581
    %3682 = vmatpush1.bf16.msra.mxu0 %v3580
    %3683 = vmatprep.subr.bf16.mxu0 %v3585
    %3684 = vmatpush1.bf16.msra.mxu0 %v3584
    %3685 = vmatprep.subr.bf16.mxu0 %v3589
    %3686 = vmatpush1.bf16.msra.mxu0 %v3588
    %3687 = vmatprep.subr.bf16.mxu0 %v3593
    %3688 = vmatpush1.bf16.msra.mxu0 %v3592
    %3689 = vmatprep.subr.bf16.mxu0 %v3597
    %3690 = vmatpush1.bf16.msra.mxu0 %v3596
    %3691 = vmatprep.subr.bf16.mxu0 %v3601
    %3692 = vmatpush1.bf16.msra.mxu0 %v3600
    %3693 = vmatprep.subr.bf16.mxu0 %v3605
    %3694 = vmatpush1.bf16.msra.mxu0 %v3604
    %3695 = vmatprep.subr.bf16.mxu0 0
    %3696 = vmatpush1.bf16.msra.mxu0 0
    %3697 = vmatprep.subr.bf16.mxu0 0
    %3698 = vmatpush1.bf16.msra.mxu0 0
    %3699 = vmatprep.subr.bf16.mxu0 0
    %3700 = vmatpush1.bf16.msra.mxu0 0
    %3701 = vmatprep.subr.bf16.mxu0 0
    %3702 = vmatpush1.bf16.msra.mxu0 0
    %3703 = vmatprep.subr.bf16.mxu0 0
    %3704 = vmatpush1.bf16.msra.mxu0 0
    %3705 = vmatprep.subr.bf16.mxu0 0
    %3706 = vmatpush1.bf16.msra.mxu0 0
    %3707 = vmatprep.subr.bf16.mxu0 0
    %3708 = vmatpush1.bf16.msra.mxu0 0
    %3709 = vmatprep.subr.bf16.mxu0 0
    %3710 = vmatpush1.bf16.msra.mxu0 0
    %3711 = vmatprep.mubr.bf16.mxu0 0
    %3712 = vmatmul.mubr.bf16.gmra.mrb[0].mxu0 0
    %v3713 = vpop.f32.mrb[0].mxu0
    %v3714 = vadd.f32 0.0, %v3713
    %v3715 = vpop.f32.mrb[0].mxu0
    %v3716 = vadd.f32 0.0, %v3715
    %v3717 = vpop.f32.mrb[0].mxu0
    %v3718 = vpop.f32.mrb[0].mxu0
    %3719 = vdwg.mxu0
    %v3720 = vadd.f32 %v3442, %v3673
    %v3721 = vadd.f32 %v3443, %v3675
    %v3722 = vadd.f32 %v3444, %v3714
    %v3723 = vadd.f32 %v3445, %v3716
    %v3724 = vxor.u32 %v3720, 2147483648
    %v3725 = vxor.u32 %v3721, 2147483648
    %v3726 = vxor.u32 %v3722, 2147483648
    %v3727 = vmul.f32 %v3724, 1.442695
    %v3728 = vpow.pop %v3727
    %v3729 = vmul.f32 %v3725, 1.442695
    %v3730 = vpow.pop %v3729
    %v3731 = vmul.f32 %v3726, 1.442695
    %v3732 = vpow.pop %v3731
    %v3733 = vadd.f32 %v3728, 1.0
    %v3734 = vadd.f32 %v3730, 1.0
    %v3735 = vadd.f32 %v3732, 1.0
    %v3736 = vrcp.pop %v3733
    %v3737 = vmul.f32 1.0, %v3736
    %v3738 = vrcp.pop %v3734
    %v3739 = vmul.f32 1.0, %v3738
    %v3740 = vrcp.pop %v3735
    %v3741 = vmul.f32 1.0, %v3740
    %v3742 = vtanh.pop %v3723
    %v3743 = vmul.f32 %v3739, 0.0
    %v3744 = vmul.f32 %v3737, %v3742
    %v3745 = vadd.f32 %v3743, %v3744
    %v3746 = vtanh.pop %v3745
    %v3747 = vmul.f32 %v3741, %v3746
    %v3748 = vld [vmem:[%s848] sm:$0xff]
    %v3749 = vld [vmem:[%s848 + $0x8] sm:$0xff]
    %v3750 = vld [vmem:[%s848 + $0x10] sm:$0xff]
    %v3751 = vld [vmem:[%s848 + $0x18] sm:$0xff]
    %v3752 = vpack.c.bf16 %v3747, %v3747
    %3753 = vmatprep.subr.bf16.mxu0 %v3575
    %3754 = vmatpush1.bf16.msra.mxu0 %v3574
    %3755 = vmatprep.subr.bf16.mxu0 %v3579
    %3756 = vmatpush1.bf16.msra.mxu0 %v3578
    %3757 = vmatprep.subr.bf16.mxu0 %v3583
    %3758 = vmatpush1.bf16.msra.mxu0 %v3582
    %3759 = vmatprep.subr.bf16.mxu0 %v3587
    %3760 = vmatpush1.bf16.msra.mxu0 %v3586
    %3761 = vmatprep.subr.bf16.mxu0 %v3591
    %3762 = vmatpush1.bf16.msra.mxu0 %v3590
    %3763 = vmatprep.subr.bf16.mxu0 %v3595
    %3764 = vmatpush1.bf16.msra.mxu0 %v3594
    %3765 = vmatprep.subr.bf16.mxu0 %v3599
    %3766 = vmatpush1.bf16.msra.mxu0 %v3598
    %3767 = vmatprep.subr.bf16.mxu0 %v3603
    %3768 = vmatpush1.bf16.msra.mxu0 %v3602
    %3769 = vmatprep.subr.bf16.mxu0 0
    %3770 = vmatpush1.bf16.msra.mxu0 0
    %3771 = vmatprep.subr.bf16.mxu0 0
    %3772 = vmatpush1.bf16.msra.mxu0 0
    %3773 = vmatprep.subr.bf16.mxu0 0
    %3774 = vmatpush1.bf16.msra.mxu0 0
    %3775 = vmatprep.subr.bf16.mxu0 0
    %3776 = vmatpush1.bf16.msra.mxu0 0
    %3777 = vmatprep.subr.bf16.mxu0 0
    %3778 = vmatpush1.bf16.msra.mxu0 0
    %3779 = vmatprep.subr.bf16.mxu0 0
    %3780 = vmatpush1.bf16.msra.mxu0 0
    %3781 = vmatprep.subr.bf16.mxu0 0
    %3782 = vmatpush1.bf16.msra.mxu0 0
    %3783 = vmatprep.subr.bf16.mxu0 0
    %3784 = vmatpush1.bf16.msra.mxu0 0
    %3785 = vmatprep.mubr.bf16.mxu0 0
    %3786 = vmatmul.mubr.bf16.gmra.mrb[0].mxu0 %v3752
    %v3787 = vpop.f32.mrb[0].mxu0
    %v3788 = vadd.f32 0.0, %v3787
    %v3789 = vpop.f32.mrb[0].mxu0
    %v3790 = vadd.f32 0.0, %v3789
    %v3791 = vpop.f32.mrb[0].mxu0
    %v3792 = vpop.f32.mrb[0].mxu0
    %3793 = vdwg.mxu0
    %3794 = vmatprep.subr.bf16.mxu0 %v3577
    %3795 = vmatpush1.bf16.msra.mxu0 %v3576
    %3796 = vmatprep.subr.bf16.mxu0 %v3581
    %3797 = vmatpush1.bf16.msra.mxu0 %v3580
    %3798 = vmatprep.subr.bf16.mxu0 %v3585
    %3799 = vmatpush1.bf16.msra.mxu0 %v3584
    %3800 = vmatprep.subr.bf16.mxu0 %v3589
    %3801 = vmatpush1.bf16.msra.mxu0 %v3588
    %3802 = vmatprep.subr.bf16.mxu0 %v3593
    %3803 = vmatpush1.bf16.msra.mxu0 %v3592
    %3804 = vmatprep.subr.bf16.mxu0 %v3597
    %3805 = vmatpush1.bf16.msra.mxu0 %v3596
    %3806 = vmatprep.subr.bf16.mxu0 %v3601
    %3807 = vmatpush1.bf16.msra.mxu0 %v3600
    %3808 = vmatprep.subr.bf16.mxu0 %v3605
    %3809 = vmatpush1.bf16.msra.mxu0 %v3604
    %3810 = vmatprep.subr.bf16.mxu0 0
    %3811 = vmatpush1.bf16.msra.mxu0 0
    %3812 = vmatprep.subr.bf16.mxu0 0
    %3813 = vmatpush1.bf16.msra.mxu0 0
    %3814 = vmatprep.subr.bf16.mxu0 0
    %3815 = vmatpush1.bf16.msra.mxu0 0
    %3816 = vmatprep.subr.bf16.mxu0 0
    %3817 = vmatpush1.bf16.msra.mxu0 0
    %3818 = vmatprep.subr.bf16.mxu0 0
    %3819 = vmatpush1.bf16.msra.mxu0 0
    %3820 = vmatprep.subr.bf16.mxu0 0
    %3821 = vmatpush1.bf16.msra.mxu0 0
    %3822 = vmatprep.subr.bf16.mxu0 0
    %3823 = vmatpush1.bf16.msra.mxu0 0
    %3824 = vmatprep.subr.bf16.mxu0 0
    %3825 = vmatpush1.bf16.msra.mxu0 0
    %3826 = vmatprep.mubr.bf16.mxu0 0
    %3827 = vmatmul.mubr.bf16.gmra.mrb[0].mxu0 %v3752
    %v3828 = vpop.f32.mrb[0].mxu0
    %v3829 = vadd.f32 0.0, %v3828
    %v3830 = vpop.f32.mrb[0].mxu0
    %v3831 = vadd.f32 0.0, %v3830
    %v3832 = vpop.f32.mrb[0].mxu0
    %v3833 = vpop.f32.mrb[0].mxu0
    %3834 = vdwg.mxu0
    %v3835 = vadd.f32 %v3748, %v3788
    %v3836 = vadd.f32 %v3749, %v3790
    %v3837 = vadd.f32 %v3750, %v3829
    %v3838 = vadd.f32 %v3751, %v3831
    %v3839 = vxor.u32 %v3835, 2147483648
    %v3840 = vxor.u32 %v3836, 2147483648
    %v3841 = vxor.u32 %v3837, 2147483648
    %v3842 = vmul.f32 %v3839, 1.442695
    %v3843 = vpow.pop %v3842
    %v3844 = vmul.f32 %v3840, 1.442695
    %v3845 = vpow.pop %v3844
    %v3846 = vmul.f32 %v3841, 1.442695
    %v3847 = vpow.pop %v3846
    %v3848 = vadd.f32 %v3843, 1.0
    %v3849 = vadd.f32 %v3845, 1.0
    %v3850 = vadd.f32 %v3847, 1.0
    %v3851 = vrcp.pop %v3848
    %v3852 = vmul.f32 1.0, %v3851
    %v3853 = vrcp.pop %v3849
    %v3854 = vmul.f32 1.0, %v3853
    %v3855 = vrcp.pop %v3850
    %v3856 = vmul.f32 1.0, %v3855
    %v3857 = vtanh.pop %v3838
    %v3858 = vmul.f32 %v3854, %v3745
    %v3859 = vmul.f32 %v3852, %v3857
    %v3860 = vadd.f32 %v3858, %v3859
    %v3861 = vtanh.pop %v3860
    %v3862 = vmul.f32 %v3856, %v3861
    %v3863 = vld [vmem:[%s1158] sm:$0xff]
    %v3864 = vld [vmem:[%s1158 + $0x8] sm:$0xff]
    %v3865 = vld [vmem:[%s1158 + $0x10] sm:$0xff]
    %v3866 = vld [vmem:[%s1158 + $0x18] sm:$0xff]
    %v3867 = vpack.c.bf16 %v3862, %v3862
    %3868 = vmatprep.subr.bf16.mxu0 %v3575
    %3869 = vmatpush1.bf16.msra.mxu0 %v3574
    %3870 = vmatprep.subr.bf16.mxu0 %v3579
    %3871 = vmatpush1.bf16.msra.mxu0 %v3578
    %3872 = vmatprep.subr.bf16.mxu0 %v3583
    %3873 = vmatpush1.bf16.msra.mxu0 %v3582
    %3874 = vmatprep.subr.bf16.mxu0 %v3587
    %3875 = vmatpush1.bf16.msra.mxu0 %v3586
    %3876 = vmatprep.subr.bf16.mxu0 %v3591
    %3877 = vmatpush1.bf16.msra.mxu0 %v3590
    %3878 = vmatprep.subr.bf16.mxu0 %v3595
    %3879 = vmatpush1.bf16.msra.mxu0 %v3594
    %3880 = vmatprep.subr.bf16.mxu0 %v3599
    %3881 = vmatpush1.bf16.msra.mxu0 %v3598
    %3882 = vmatprep.subr.bf16.mxu0 %v3603
    %3883 = vmatpush1.bf16.msra.mxu0 %v3602
    %3884 = vmatprep.subr.bf16.mxu0 0
    %3885 = vmatpush1.bf16.msra.mxu0 0
    %3886 = vmatprep.subr.bf16.mxu0 0
    %3887 = vmatpush1.bf16.msra.mxu0 0
    %3888 = vmatprep.subr.bf16.mxu0 0
    %3889 = vmatpush1.bf16.msra.mxu0 0
    %3890 = vmatprep.subr.bf16.mxu0 0
    %3891 = vmatpush1.bf16.msra.mxu0 0
    %3892 = vmatprep.subr.bf16.mxu0 0
    %3893 = vmatpush1.bf16.msra.mxu0 0
    %3894 = vmatprep.subr.bf16.mxu0 0
    %3895 = vmatpush1.bf16.msra.mxu0 0
    %3896 = vmatprep.subr.bf16.mxu0 0
    %3897 = vmatpush1.bf16.msra.mxu0 0
    %3898 = vmatprep.subr.bf16.mxu0 0
    %3899 = vmatpush1.bf16.msra.mxu0 0
    %3900 = vmatprep.mubr.bf16.mxu0 0
    %3901 = vmatmul.mubr.bf16.gmra.mrb[0].mxu0 %v3867
    %v3902 = vpop.f32.mrb[0].mxu0
    %v3903 = vadd.f32 0.0, %v3902
    %v3904 = vpop.f32.mrb[0].mxu0
    %v3905 = vadd.f32 0.0, %v3904
    %v3906 = vpop.f32.mrb[0].mxu0
    %v3907 = vpop.f32.mrb[0].mxu0
    %3908 = vdwg.mxu0
    %3909 = vmatprep.subr.bf16.mxu0 %v3577
    %3910 = vmatpush1.bf16.msra.mxu0 %v3576
    %3911 = vmatprep.subr.bf16.mxu0 %v3581
    %3912 = vmatpush1.bf16.msra.mxu0 %v3580
    %3913 = vmatprep.subr.bf16.mxu0 %v3585
    %3914 = vmatpush1.bf16.msra.mxu0 %v3584
    %3915 = vmatprep.subr.bf16.mxu0 %v3589
    %3916 = vmatpush1.bf16.msra.mxu0 %v3588
    %3917 = vmatprep.subr.bf16.mxu0 %v3593
    %3918 = vmatpush1.bf16.msra.mxu0 %v3592
    %3919 = vmatprep.subr.bf16.mxu0 %v3597
    %3920 = vmatpush1.bf16.msra.mxu0 %v3596
    %3921 = vmatprep.subr.bf16.mxu0 %v3601
    %3922 = vmatpush1.bf16.msra.mxu0 %v3600
    %3923 = vmatprep.subr.bf16.mxu0 %v3605
    %3924 = vmatpush1.bf16.msra.mxu0 %v3604
    %3925 = vmatprep.subr.bf16.mxu0 0
    %3926 = vmatpush1.bf16.msra.mxu0 0
    %3927 = vmatprep.subr.bf16.mxu0 0
    %3928 = vmatpush1.bf16.msra.mxu0 0
    %3929 = vmatprep.subr.bf16.mxu0 0
    %3930 = vmatpush1.bf16.msra.mxu0 0
    %3931 = vmatprep.subr.bf16.mxu0 0
    %3932 = vmatpush1.bf16.msra.mxu0 0
    %3933 = vmatprep.subr.bf16.mxu0 0
    %3934 = vmatpush1.bf16.msra.mxu0 0
    %3935 = vmatprep.subr.bf16.mxu0 0
    %3936 = vmatpush1.bf16.msra.mxu0 0
    %3937 = vmatprep.subr.bf16.mxu0 0
    %3938 = vmatpush1.bf16.msra.mxu0 0
    %3939 = vmatprep.subr.bf16.mxu0 0
    %3940 = vmatpush1.bf16.msra.mxu0 0
    %3941 = vmatprep.mubr.bf16.mxu0 0
    %3942 = vmatmul.mubr.bf16.gmra.mrb[0].mxu0 %v3867
    %v3943 = vpop.f32.mrb[0].mxu0
    %v3944 = vadd.f32 0.0, %v3943
    %v3945 = vpop.f32.mrb[0].mxu0
    %v3946 = vadd.f32 0.0, %v3945
    %v3947 = vpop.f32.mrb[0].mxu0
    %v3948 = vpop.f32.mrb[0].mxu0
    %3949 = vdwg.mxu0
    %v3950 = vadd.f32 %v3863, %v3903
    %v3951 = vadd.f32 %v3864, %v3905
    %v3952 = vadd.f32 %v3865, %v3944
    %v3953 = vadd.f32 %v3866, %v3946
    %v3954 = vxor.u32 %v3950, 2147483648
    %v3955 = vxor.u32 %v3951, 2147483648
    %v3956 = vxor.u32 %v3952, 2147483648
    %v3957 = vmul.f32 %v3954, 1.442695
    %v3958 = vpow.pop %v3957
    %v3959 = vmul.f32 %v3955, 1.442695
    %v3960 = vpow.pop %v3959
    %v3961 = vmul.f32 %v3956, 1.442695
    %v3962 = vpow.pop %v3961
    %v3963 = vadd.f32 %v3958, 1.0
    %v3964 = vadd.f32 %v3960, 1.0
    %v3965 = vadd.f32 %v3962, 1.0
    %v3966 = vrcp.pop %v3963
    %v3967 = vmul.f32 1.0, %v3966
    %v3968 = vrcp.pop %v3964
    %v3969 = vmul.f32 1.0, %v3968
    %v3970 = vrcp.pop %v3965
    %v3971 = vmul.f32 1.0, %v3970
    %v3972 = vtanh.pop %v3953
    %v3973 = vmul.f32 %v3969, %v3860
    %v3974 = vmul.f32 %v3967, %v3972
    %v3975 = vadd.f32 %v3973, %v3974
    %v3976 = vtanh.pop %v3975
    %v3977 = vmul.f32 %v3971, %v3976
    %v3978 = vld [vmem:[%s1468] sm:$0xff]
    %v3979 = vld [vmem:[%s1468 + $0x8] sm:$0xff]
    %v3980 = vld [vmem:[%s1468 + $0x10] sm:$0xff]
    %v3981 = vld [vmem:[%s1468 + $0x18] sm:$0xff]
    %v3982 = vpack.c.bf16 %v3977, %v3977
    %3983 = vmatprep.subr.bf16.mxu0 %v3575
    %3984 = vmatpush1.bf16.msra.mxu0 %v3574
    %3985 = vmatprep.subr.bf16.mxu0 %v3579
    %3986 = vmatpush1.bf16.msra.mxu0 %v3578
    %3987 = vmatprep.subr.bf16.mxu0 %v3583
    %3988 = vmatpush1.bf16.msra.mxu0 %v3582
    %3989 = vmatprep.subr.bf16.mxu0 %v3587
    %3990 = vmatpush1.bf16.msra.mxu0 %v3586
    %3991 = vmatprep.subr.bf16.mxu0 %v3591
    %3992 = vmatpush1.bf16.msra.mxu0 %v3590
    %3993 = vmatprep.subr.bf16.mxu0 %v3595
    %3994 = vmatpush1.bf16.msra.mxu0 %v3594
    %3995 = vmatprep.subr.bf16.mxu0 %v3599
    %3996 = vmatpush1.bf16.msra.mxu0 %v3598
    %3997 = vmatprep.subr.bf16.mxu0 %v3603
    %3998 = vmatpush1.bf16.msra.mxu0 %v3602
    %3999 = vmatprep.subr.bf16.mxu0 0
    %4000 = vmatpush1.bf16.msra.mxu0 0
    %4001 = vmatprep.subr.bf16.mxu0 0
    %4002 = vmatpush1.bf16.msra.mxu0 0
    %4003 = vmatprep.subr.bf16.mxu0 0
    %4004 = vmatpush1.bf16.msra.mxu0 0
    %4005 = vmatprep.subr.bf16.mxu0 0
    %4006 = vmatpush1.bf16.msra.mxu0 0
    %4007 = vmatprep.subr.bf16.mxu0 0
    %4008 = vmatpush1.bf16.msra.mxu0 0
    %4009 = vmatprep.subr.bf16.mxu0 0
    %4010 = vmatpush1.bf16.msra.mxu0 0
    %4011 = vmatprep.subr.bf16.mxu0 0
    %4012 = vmatpush1.bf16.msra.mxu0 0
    %4013 = vmatprep.subr.bf16.mxu0 0
    %4014 = vmatpush1.bf16.msra.mxu0 0
    %4015 = vmatprep.mubr.bf16.mxu0 0
    %4016 = vmatmul.mubr.bf16.gmra.mrb[0].mxu0 %v3982
    %v4017 = vpop.f32.mrb[0].mxu0
    %v4018 = vadd.f32 0.0, %v4017
    %v4019 = vpop.f32.mrb[0].mxu0
    %v4020 = vadd.f32 0.0, %v4019
    %v4021 = vpop.f32.mrb[0].mxu0
    %v4022 = vpop.f32.mrb[0].mxu0
    %4023 = vdwg.mxu0
    %4024 = vmatprep.subr.bf16.mxu0 %v3577
    %4025 = vmatpush1.bf16.msra.mxu0 %v3576
    %4026 = vmatprep.subr.bf16.mxu0 %v3581
    %4027 = vmatpush1.bf16.msra.mxu0 %v3580
    %4028 = vmatprep.subr.bf16.mxu0 %v3585
    %4029 = vmatpush1.bf16.msra.mxu0 %v3584
    %4030 = vmatprep.subr.bf16.mxu0 %v3589
    %4031 = vmatpush1.bf16.msra.mxu0 %v3588
    %4032 = vmatprep.subr.bf16.mxu0 %v3593
    %4033 = vmatpush1.bf16.msra.mxu0 %v3592
    %4034 = vmatprep.subr.bf16.mxu0 %v3597
    %4035 = vmatpush1.bf16.msra.mxu0 %v3596
    %4036 = vmatprep.subr.bf16.mxu0 %v3601
    %4037 = vmatpush1.bf16.msra.mxu0 %v3600
    %4038 = vmatprep.subr.bf16.mxu0 %v3605
    %4039 = vmatpush1.bf16.msra.mxu0 %v3604
    %4040 = vmatprep.subr.bf16.mxu0 0
    %4041 = vmatpush1.bf16.msra.mxu0 0
    %4042 = vmatprep.subr.bf16.mxu0 0
    %4043 = vmatpush1.bf16.msra.mxu0 0
    %4044 = vmatprep.subr.bf16.mxu0 0
    %4045 = vmatpush1.bf16.msra.mxu0 0
    %4046 = vmatprep.subr.bf16.mxu0 0
    %4047 = vmatpush1.bf16.msra.mxu0 0
    %4048 = vmatprep.subr.bf16.mxu0 0
    %4049 = vmatpush1.bf16.msra.mxu0 0
    %4050 = vmatprep.subr.bf16.mxu0 0
    %4051 = vmatpush1.bf16.msra.mxu0 0
    %4052 = vmatprep.subr.bf16.mxu0 0
    %4053 = vmatpush1.bf16.msra.mxu0 0
    %4054 = vmatprep.subr.bf16.mxu0 0
    %4055 = vmatpush1.bf16.msra.mxu0 0
    %4056 = vmatprep.mubr.bf16.mxu0 0
    %4057 = vmatmul.mubr.bf16.gmra.mrb[0].mxu0 %v3982
    %v4058 = vpop.f32.mrb[0].mxu0
    %v4059 = vadd.f32 0.0, %v4058
    %v4060 = vpop.f32.mrb[0].mxu0
    %v4061 = vadd.f32 0.0, %v4060
    %v4062 = vpop.f32.mrb[0].mxu0
    %v4063 = vpop.f32.mrb[0].mxu0
    %4064 = vdwg.mxu0
    %v4065 = vadd.f32 %v3978, %v4018
    %v4066 = vadd.f32 %v3979, %v4020
    %v4067 = vadd.f32 %v3980, %v4059
    %v4068 = vadd.f32 %v3981, %v4061
    %v4069 = vxor.u32 %v4065, 2147483648
    %v4070 = vxor.u32 %v4066, 2147483648
    %v4071 = vxor.u32 %v4067, 2147483648
    %v4072 = vmul.f32 %v4069, 1.442695
    %v4073 = vpow.pop %v4072
    %v4074 = vmul.f32 %v4070, 1.442695
    %v4075 = vpow.pop %v4074
    %v4076 = vmul.f32 %v4071, 1.442695
    %v4077 = vpow.pop %v4076
    %v4078 = vadd.f32 %v4073, 1.0
    %v4079 = vadd.f32 %v4075, 1.0
    %v4080 = vadd.f32 %v4077, 1.0
    %v4081 = vrcp.pop %v4078
    %v4082 = vmul.f32 1.0, %v4081
    %v4083 = vrcp.pop %v4079
    %v4084 = vmul.f32 1.0, %v4083
    %v4085 = vrcp.pop %v4080
    %v4086 = vmul.f32 1.0, %v4085
    %v4087 = vtanh.pop %v4068
    %v4088 = vmul.f32 %v4084, %v3975
    %v4089 = vmul.f32 %v4082, %v4087
    %v4090 = vadd.f32 %v4088, %v4089
    %v4091 = vtanh.pop %v4090
    %v4092 = vmul.f32 %v4086, %v4091
    %v4093 = vld [vmem:[%s1778] sm:$0xff]
    %v4094 = vld [vmem:[%s1778 + $0x8] sm:$0xff]
    %v4095 = vld [vmem:[%s1778 + $0x10] sm:$0xff]
    %v4096 = vld [vmem:[%s1778 + $0x18] sm:$0xff]
    %v4097 = vpack.c.bf16 %v4092, %v4092
    %4098 = vmatprep.subr.bf16.mxu0 %v3575
    %4099 = vmatpush1.bf16.msra.mxu0 %v3574
    %4100 = vmatprep.subr.bf16.mxu0 %v3579
    %4101 = vmatpush1.bf16.msra.mxu0 %v3578
    %4102 = vmatprep.subr.bf16.mxu0 %v3583
    %4103 = vmatpush1.bf16.msra.mxu0 %v3582
    %4104 = vmatprep.subr.bf16.mxu0 %v3587
    %4105 = vmatpush1.bf16.msra.mxu0 %v3586
    %4106 = vmatprep.subr.bf16.mxu0 %v3591
    %4107 = vmatpush1.bf16.msra.mxu0 %v3590
    %4108 = vmatprep.subr.bf16.mxu0 %v3595
    %4109 = vmatpush1.bf16.msra.mxu0 %v3594
    %4110 = vmatprep.subr.bf16.mxu0 %v3599
    %4111 = vmatpush1.bf16.msra.mxu0 %v3598
    %4112 = vmatprep.subr.bf16.mxu0 %v3603
    %4113 = vmatpush1.bf16.msra.mxu0 %v3602
    %4114 = vmatprep.subr.bf16.mxu0 0
    %4115 = vmatpush1.bf16.msra.mxu0 0
    %4116 = vmatprep.subr.bf16.mxu0 0
    %4117 = vmatpush1.bf16.msra.mxu0 0
    %4118 = vmatprep.subr.bf16.mxu0 0
    %4119 = vmatpush1.bf16.msra.mxu0 0
    %4120 = vmatprep.subr.bf16.mxu0 0
    %4121 = vmatpush1.bf16.msra.mxu0 0
    %4122 = vmatprep.subr.bf16.mxu0 0
    %4123 = vmatpush1.bf16.msra.mxu0 0
    %4124 = vmatprep.subr.bf16.mxu0 0
    %4125 = vmatpush1.bf16.msra.mxu0 0
    %4126 = vmatprep.subr.bf16.mxu0 0
    %4127 = vmatpush1.bf16.msra.mxu0 0
    %4128 = vmatprep.subr.bf16.mxu0 0
    %4129 = vmatpush1.bf16.msra.mxu0 0
    %4130 = vmatprep.mubr.bf16.mxu0 0
    %4131 = vmatmul.mubr.bf16.gmra.mrb[0].mxu0 %v4097
    %v4132 = vpop.f32.mrb[0].mxu0
    %v4133 = vadd.f32 0.0, %v4132
    %v4134 = vpop.f32.mrb[0].mxu0
    %v4135 = vadd.f32 0.0, %v4134
    %v4136 = vpop.f32.mrb[0].mxu0
    %v4137 = vpop.f32.mrb[0].mxu0
    %4138 = vdwg.mxu0
    %4139 = vmatprep.subr.bf16.mxu0 %v3577
    %4140 = vmatpush1.bf16.msra.mxu0 %v3576
    %4141 = vmatprep.subr.bf16.mxu0 %v3581
    %4142 = vmatpush1.bf16.msra.mxu0 %v3580
    %4143 = vmatprep.subr.bf16.mxu0 %v3585
    %4144 = vmatpush1.bf16.msra.mxu0 %v3584
    %4145 = vmatprep.subr.bf16.mxu0 %v3589
    %4146 = vmatpush1.bf16.msra.mxu0 %v3588
    %4147 = vmatprep.subr.bf16.mxu0 %v3593
    %4148 = vmatpush1.bf16.msra.mxu0 %v3592
    %4149 = vmatprep.subr.bf16.mxu0 %v3597
    %4150 = vmatpush1.bf16.msra.mxu0 %v3596
    %4151 = vmatprep.subr.bf16.mxu0 %v3601
    %4152 = vmatpush1.bf16.msra.mxu0 %v3600
    %4153 = vmatprep.subr.bf16.mxu0 %v3605
    %4154 = vmatpush1.bf16.msra.mxu0 %v3604
    %4155 = vmatprep.subr.bf16.mxu0 0
    %4156 = vmatpush1.bf16.msra.mxu0 0
    %4157 = vmatprep.subr.bf16.mxu0 0
    %4158 = vmatpush1.bf16.msra.mxu0 0
    %4159 = vmatprep.subr.bf16.mxu0 0
    %4160 = vmatpush1.bf16.msra.mxu0 0
    %4161 = vmatprep.subr.bf16.mxu0 0
    %4162 = vmatpush1.bf16.msra.mxu0 0
    %4163 = vmatprep.subr.bf16.mxu0 0
    %4164 = vmatpush1.bf16.msra.mxu0 0
    %4165 = vmatprep.subr.bf16.mxu0 0
    %4166 = vmatpush1.bf16.msra.mxu0 0
    %4167 = vmatprep.subr.bf16.mxu0 0
    %4168 = vmatpush1.bf16.msra.mxu0 0
    %4169 = vmatprep.subr.bf16.mxu0 0
    %4170 = vmatpush1.bf16.msra.mxu0 0
    %4171 = vmatprep.mubr.bf16.mxu0 0
    %4172 = vmatmul.mubr.bf16.gmra.mrb[0].mxu0 %v4097
    %v4173 = vpop.f32.mrb[0].mxu0
    %v4174 = vadd.f32 0.0, %v4173
    %v4175 = vpop.f32.mrb[0].mxu0
    %v4176 = vadd.f32 0.0, %v4175
    %v4177 = vpop.f32.mrb[0].mxu0
    %v4178 = vpop.f32.mrb[0].mxu0
    %4179 = vdwg.mxu0
    %v4180 = vadd.f32 %v4093, %v4133
    %v4181 = vadd.f32 %v4094, %v4135
    %v4182 = vadd.f32 %v4095, %v4174
    %v4183 = vadd.f32 %v4096, %v4176
    %v4184 = vxor.u32 %v4180, 2147483648
    %v4185 = vxor.u32 %v4181, 2147483648
    %v4186 = vxor.u32 %v4182, 2147483648
    %v4187 = vmul.f32 %v4184, 1.442695
    %v4188 = vpow.pop %v4187
    %v4189 = vmul.f32 %v4185, 1.442695
    %v4190 = vpow.pop %v4189
    %v4191 = vmul.f32 %v4186, 1.442695
    %v4192 = vpow.pop %v4191
    %v4193 = vadd.f32 %v4188, 1.0
    %v4194 = vadd.f32 %v4190, 1.0
    %v4195 = vadd.f32 %v4192, 1.0
    %v4196 = vrcp.pop %v4193
    %v4197 = vmul.f32 1.0, %v4196
    %v4198 = vrcp.pop %v4194
    %v4199 = vmul.f32 1.0, %v4198
    %v4200 = vrcp.pop %v4195
    %v4201 = vmul.f32 1.0, %v4200
    %v4202 = vtanh.pop %v4183
    %v4203 = vmul.f32 %v4199, %v4090
    %v4204 = vmul.f32 %v4197, %v4202
    %v4205 = vadd.f32 %v4203, %v4204
    %v4206 = vtanh.pop %v4205
    %v4207 = vmul.f32 %v4201, %v4206
    %v4208 = vld [vmem:[%s2088] sm:$0xff]
    %v4209 = vld [vmem:[%s2088 + $0x8] sm:$0xff]
    %v4210 = vld [vmem:[%s2088 + $0x10] sm:$0xff]
    %v4211 = vld [vmem:[%s2088 + $0x18] sm:$0xff]
    %v4212 = vpack.c.bf16 %v4207, %v4207
    %4213 = vmatprep.subr.bf16.mxu0 %v3575
    %4214 = vmatpush1.bf16.msra.mxu0 %v3574
    %4215 = vmatprep.subr.bf16.mxu0 %v3579
    %4216 = vmatpush1.bf16.msra.mxu0 %v3578
    %4217 = vmatprep.subr.bf16.mxu0 %v3583
    %4218 = vmatpush1.bf16.msra.mxu0 %v3582
    %4219 = vmatprep.subr.bf16.mxu0 %v3587
    %4220 = vmatpush1.bf16.msra.mxu0 %v3586
    %4221 = vmatprep.subr.bf16.mxu0 %v3591
    %4222 = vmatpush1.bf16.msra.mxu0 %v3590
    %4223 = vmatprep.subr.bf16.mxu0 %v3595
    %4224 = vmatpush1.bf16.msra.mxu0 %v3594
    %4225 = vmatprep.subr.bf16.mxu0 %v3599
    %4226 = vmatpush1.bf16.msra.mxu0 %v3598
    %4227 = vmatprep.subr.bf16.mxu0 %v3603
    %4228 = vmatpush1.bf16.msra.mxu0 %v3602
    %4229 = vmatprep.subr.bf16.mxu0 0
    %4230 = vmatpush1.bf16.msra.mxu0 0
    %4231 = vmatprep.subr.bf16.mxu0 0
    %4232 = vmatpush1.bf16.msra.mxu0 0
    %4233 = vmatprep.subr.bf16.mxu0 0
    %4234 = vmatpush1.bf16.msra.mxu0 0
    %4235 = vmatprep.subr.bf16.mxu0 0
    %4236 = vmatpush1.bf16.msra.mxu0 0
    %4237 = vmatprep.subr.bf16.mxu0 0
    %4238 = vmatpush1.bf16.msra.mxu0 0
    %4239 = vmatprep.subr.bf16.mxu0 0
    %4240 = vmatpush1.bf16.msra.mxu0 0
    %4241 = vmatprep.subr.bf16.mxu0 0
    %4242 = vmatpush1.bf16.msra.mxu0 0
    %4243 = vmatprep.subr.bf16.mxu0 0
    %4244 = vmatpush1.bf16.msra.mxu0 0
    %4245 = vmatprep.mubr.bf16.mxu0 0
    %4246 = vmatmul.mubr.bf16.gmra.mrb[0].mxu0 %v4212
    %v4247 = vpop.f32.mrb[0].mxu0
    %v4248 = vadd.f32 0.0, %v4247
    %v4249 = vpop.f32.mrb[0].mxu0
    %v4250 = vadd.f32 0.0, %v4249
    %v4251 = vpop.f32.mrb[0].mxu0
    %v4252 = vpop.f32.mrb[0].mxu0
    %4253 = vdwg.mxu0
    %4254 = vmatprep.subr.bf16.mxu0 %v3577
    %4255 = vmatpush1.bf16.msra.mxu0 %v3576
    %4256 = vmatprep.subr.bf16.mxu0 %v3581
    %4257 = vmatpush1.bf16.msra.mxu0 %v3580
    %4258 = vmatprep.subr.bf16.mxu0 %v3585
    %4259 = vmatpush1.bf16.msra.mxu0 %v3584
    %4260 = vmatprep.subr.bf16.mxu0 %v3589
    %4261 = vmatpush1.bf16.msra.mxu0 %v3588
    %4262 = vmatprep.subr.bf16.mxu0 %v3593
    %4263 = vmatpush1.bf16.msra.mxu0 %v3592
    %4264 = vmatprep.subr.bf16.mxu0 %v3597
    %4265 = vmatpush1.bf16.msra.mxu0 %v3596
    %4266 = vmatprep.subr.bf16.mxu0 %v3601
    %4267 = vmatpush1.bf16.msra.mxu0 %v3600
    %4268 = vmatprep.subr.bf16.mxu0 %v3605
    %4269 = vmatpush1.bf16.msra.mxu0 %v3604
    %4270 = vmatprep.subr.bf16.mxu0 0
    %4271 = vmatpush1.bf16.msra.mxu0 0
    %4272 = vmatprep.subr.bf16.mxu0 0
    %4273 = vmatpush1.bf16.msra.mxu0 0
    %4274 = vmatprep.subr.bf16.mxu0 0
    %4275 = vmatpush1.bf16.msra.mxu0 0
    %4276 = vmatprep.subr.bf16.mxu0 0
    %4277 = vmatpush1.bf16.msra.mxu0 0
    %4278 = vmatprep.subr.bf16.mxu0 0
    %4279 = vmatpush1.bf16.msra.mxu0 0
    %4280 = vmatprep.subr.bf16.mxu0 0
    %4281 = vmatpush1.bf16.msra.mxu0 0
    %4282 = vmatprep.subr.bf16.mxu0 0
    %4283 = vmatpush1.bf16.msra.mxu0 0
    %4284 = vmatprep.subr.bf16.mxu0 0
    %4285 = vmatpush1.bf16.msra.mxu0 0
    %4286 = vmatprep.mubr.bf16.mxu0 0
    %4287 = vmatmul.mubr.bf16.gmra.mrb[0].mxu0 %v4212
    %v4288 = vpop.f32.mrb[0].mxu0
    %v4289 = vadd.f32 0.0, %v4288
    %v4290 = vpop.f32.mrb[0].mxu0
    %v4291 = vadd.f32 0.0, %v4290
    %v4292 = vpop.f32.mrb[0].mxu0
    %v4293 = vpop.f32.mrb[0].mxu0
    %4294 = vdwg.mxu0
    %v4295 = vadd.f32 %v4208, %v4248
    %v4296 = vadd.f32 %v4209, %v4250
    %v4297 = vadd.f32 %v4210, %v4289
    %v4298 = vadd.f32 %v4211, %v4291
    %v4299 = vxor.u32 %v4295, 2147483648
    %v4300 = vxor.u32 %v4296, 2147483648
    %v4301 = vxor.u32 %v4297, 2147483648
    %v4302 = vmul.f32 %v4299, 1.442695
    %v4303 = vpow.pop %v4302
    %v4304 = vmul.f32 %v4300, 1.442695
    %v4305 = vpow.pop %v4304
    %v4306 = vmul.f32 %v4301, 1.442695
    %v4307 = vpow.pop %v4306
    %v4308 = vadd.f32 %v4303, 1.0
    %v4309 = vadd.f32 %v4305, 1.0
    %v4310 = vadd.f32 %v4307, 1.0
    %v4311 = vrcp.pop %v4308
    %v4312 = vmul.f32 1.0, %v4311
    %v4313 = vrcp.pop %v4309
    %v4314 = vmul.f32 1.0, %v4313
    %v4315 = vrcp.pop %v4310
    %v4316 = vmul.f32 1.0, %v4315
    %v4317 = vtanh.pop %v4298
    %v4318 = vmul.f32 %v4314, %v4205
    %v4319 = vmul.f32 %v4312, %v4317
    %v4320 = vadd.f32 %v4318, %v4319
    %v4321 = vtanh.pop %v4320
    %v4322 = vmul.f32 %v4316, %v4321
    %v4323 = vld [vmem:[%s2398] sm:$0xff]
    %v4324 = vld [vmem:[%s2398 + $0x8] sm:$0xff]
    %v4325 = vld [vmem:[%s2398 + $0x10] sm:$0xff]
    %v4326 = vld [vmem:[%s2398 + $0x18] sm:$0xff]
    %v4327 = vpack.c.bf16 %v4322, %v4322
    %4328 = vmatprep.subr.bf16.mxu0 %v3575
    %4329 = vmatpush1.bf16.msra.mxu0 %v3574
    %4330 = vmatprep.subr.bf16.mxu0 %v3579
    %4331 = vmatpush1.bf16.msra.mxu0 %v3578
    %4332 = vmatprep.subr.bf16.mxu0 %v3583
    %4333 = vmatpush1.bf16.msra.mxu0 %v3582
    %4334 = vmatprep.subr.bf16.mxu0 %v3587
    %4335 = vmatpush1.bf16.msra.mxu0 %v3586
    %4336 = vmatprep.subr.bf16.mxu0 %v3591
    %4337 = vmatpush1.bf16.msra.mxu0 %v3590
    %4338 = vmatprep.subr.bf16.mxu0 %v3595
    %4339 = vmatpush1.bf16.msra.mxu0 %v3594
    %4340 = vmatprep.subr.bf16.mxu0 %v3599
    %4341 = vmatpush1.bf16.msra.mxu0 %v3598
    %4342 = vmatprep.subr.bf16.mxu0 %v3603
    %4343 = vmatpush1.bf16.msra.mxu0 %v3602
    %4344 = vmatprep.subr.bf16.mxu0 0
    %4345 = vmatpush1.bf16.msra.mxu0 0
    %4346 = vmatprep.subr.bf16.mxu0 0
    %4347 = vmatpush1.bf16.msra.mxu0 0
    %4348 = vmatprep.subr.bf16.mxu0 0
    %4349 = vmatpush1.bf16.msra.mxu0 0
    %4350 = vmatprep.subr.bf16.mxu0 0
    %4351 = vmatpush1.bf16.msra.mxu0 0
    %4352 = vmatprep.subr.bf16.mxu0 0
    %4353 = vmatpush1.bf16.msra.mxu0 0
    %4354 = vmatprep.subr.bf16.mxu0 0
    %4355 = vmatpush1.bf16.msra.mxu0 0
    %4356 = vmatprep.subr.bf16.mxu0 0
    %4357 = vmatpush1.bf16.msra.mxu0 0
    %4358 = vmatprep.subr.bf16.mxu0 0
    %4359 = vmatpush1.bf16.msra.mxu0 0
    %4360 = vmatprep.mubr.bf16.mxu0 0
    %4361 = vmatmul.mubr.bf16.gmra.mrb[0].mxu0 %v4327
    %v4362 = vpop.f32.mrb[0].mxu0
    %v4363 = vadd.f32 0.0, %v4362
    %v4364 = vpop.f32.mrb[0].mxu0
    %v4365 = vadd.f32 0.0, %v4364
    %v4366 = vpop.f32.mrb[0].mxu0
    %v4367 = vpop.f32.mrb[0].mxu0
    %4368 = vdwg.mxu0
    %4369 = vmatprep.subr.bf16.mxu0 %v3577
    %4370 = vmatpush1.bf16.msra.mxu0 %v3576
    %4371 = vmatprep.subr.bf16.mxu0 %v3581
    %4372 = vmatpush1.bf16.msra.mxu0 %v3580
    %4373 = vmatprep.subr.bf16.mxu0 %v3585
    %4374 = vmatpush1.bf16.msra.mxu0 %v3584
    %4375 = vmatprep.subr.bf16.mxu0 %v3589
    %4376 = vmatpush1.bf16.msra.mxu0 %v3588
    %4377 = vmatprep.subr.bf16.mxu0 %v3593
    %4378 = vmatpush1.bf16.msra.mxu0 %v3592
    %4379 = vmatprep.subr.bf16.mxu0 %v3597
    %4380 = vmatpush1.bf16.msra.mxu0 %v3596
    %4381 = vmatprep.subr.bf16.mxu0 %v3601
    %4382 = vmatpush1.bf16.msra.mxu0 %v3600
    %4383 = vmatprep.subr.bf16.mxu0 %v3605
    %4384 = vmatpush1.bf16.msra.mxu0 %v3604
    %4385 = vmatprep.subr.bf16.mxu0 0
    %4386 = vmatpush1.bf16.msra.mxu0 0
    %4387 = vmatprep.subr.bf16.mxu0 0
    %4388 = vmatpush1.bf16.msra.mxu0 0
    %4389 = vmatprep.subr.bf16.mxu0 0
    %4390 = vmatpush1.bf16.msra.mxu0 0
    %4391 = vmatprep.subr.bf16.mxu0 0
    %4392 = vmatpush1.bf16.msra.mxu0 0
    %4393 = vmatprep.subr.bf16.mxu0 0
    %4394 = vmatpush1.bf16.msra.mxu0 0
    %4395 = vmatprep.subr.bf16.mxu0 0
    %4396 = vmatpush1.bf16.msra.mxu0 0
    %4397 = vmatprep.subr.bf16.mxu0 0
    %4398 = vmatpush1.bf16.msra.mxu0 0
    %4399 = vmatprep.subr.bf16.mxu0 0
    %4400 = vmatpush1.bf16.msra.mxu0 0
    %4401 = vmatprep.mubr.bf16.mxu0 0
    %4402 = vmatmul.mubr.bf16.gmra.mrb[0].mxu0 %v4327
    %v4403 = vpop.f32.mrb[0].mxu0
    %v4404 = vadd.f32 0.0, %v4403
    %v4405 = vpop.f32.mrb[0].mxu0
    %v4406 = vadd.f32 0.0, %v4405
    %v4407 = vpop.f32.mrb[0].mxu0
    %v4408 = vpop.f32.mrb[0].mxu0
    %4409 = vdwg.mxu0
    %v4410 = vadd.f32 %v4323, %v4363
    %v4411 = vadd.f32 %v4324, %v4365
    %v4412 = vadd.f32 %v4325, %v4404
    %v4413 = vadd.f32 %v4326, %v4406
    %v4414 = vxor.u32 %v4410, 2147483648
    %v4415 = vxor.u32 %v4411, 2147483648
    %v4416 = vxor.u32 %v4412, 2147483648
    %v4417 = vmul.f32 %v4414, 1.442695
    %v4418 = vpow.pop %v4417
    %v4419 = vmul.f32 %v4415, 1.442695
    %v4420 = vpow.pop %v4419
    %v4421 = vmul.f32 %v4416, 1.442695
    %v4422 = vpow.pop %v4421
    %v4423 = vadd.f32 %v4418, 1.0
    %v4424 = vadd.f32 %v4420, 1.0
    %v4425 = vadd.f32 %v4422, 1.0
    %v4426 = vrcp.pop %v4423
    %v4427 = vmul.f32 1.0, %v4426
    %v4428 = vrcp.pop %v4424
    %v4429 = vmul.f32 1.0, %v4428
    %v4430 = vrcp.pop %v4425
    %v4431 = vmul.f32 1.0, %v4430
    %v4432 = vtanh.pop %v4413
    %v4433 = vmul.f32 %v4429, %v4320
    %v4434 = vmul.f32 %v4427, %v4432
    %v4435 = vadd.f32 %v4433, %v4434
    %v4436 = vtanh.pop %v4435
    %v4437 = vmul.f32 %v4431, %v4436
    %v4438 = vld [vmem:[%s2708] sm:$0xff]
    %v4439 = vld [vmem:[%s2708 + $0x8] sm:$0xff]
    %v4440 = vld [vmem:[%s2708 + $0x10] sm:$0xff]
    %v4441 = vld [vmem:[%s2708 + $0x18] sm:$0xff]
    %v4442 = vpack.c.bf16 %v4437, %v4437
    %4443 = vmatprep.subr.bf16.mxu0 %v3575
    %4444 = vmatpush1.bf16.msra.mxu0 %v3574
    %4445 = vmatprep.subr.bf16.mxu0 %v3579
    %4446 = vmatpush1.bf16.msra.mxu0 %v3578
    %4447 = vmatprep.subr.bf16.mxu0 %v3583
    %4448 = vmatpush1.bf16.msra.mxu0 %v3582
    %4449 = vmatprep.subr.bf16.mxu0 %v3587
    %4450 = vmatpush1.bf16.msra.mxu0 %v3586
    %4451 = vmatprep.subr.bf16.mxu0 %v3591
    %4452 = vmatpush1.bf16.msra.mxu0 %v3590
    %4453 = vmatprep.subr.bf16.mxu0 %v3595
    %4454 = vmatpush1.bf16.msra.mxu0 %v3594
    %4455 = vmatprep.subr.bf16.mxu0 %v3599
    %4456 = vmatpush1.bf16.msra.mxu0 %v3598
    %4457 = vmatprep.subr.bf16.mxu0 %v3603
    %4458 = vmatpush1.bf16.msra.mxu0 %v3602
    %4459 = vmatprep.subr.bf16.mxu0 0
    %4460 = vmatpush1.bf16.msra.mxu0 0
    %4461 = vmatprep.subr.bf16.mxu0 0
    %4462 = vmatpush1.bf16.msra.mxu0 0
    %4463 = vmatprep.subr.bf16.mxu0 0
    %4464 = vmatpush1.bf16.msra.mxu0 0
    %4465 = vmatprep.subr.bf16.mxu0 0
    %4466 = vmatpush1.bf16.msra.mxu0 0
    %4467 = vmatprep.subr.bf16.mxu0 0
    %4468 = vmatpush1.bf16.msra.mxu0 0
    %4469 = vmatprep.subr.bf16.mxu0 0
    %4470 = vmatpush1.bf16.msra.mxu0 0
    %4471 = vmatprep.subr.bf16.mxu0 0
    %4472 = vmatpush1.bf16.msra.mxu0 0
    %4473 = vmatprep.subr.bf16.mxu0 0
    %4474 = vmatpush1.bf16.msra.mxu0 0
    %4475 = vmatprep.mubr.bf16.mxu0 0
    %4476 = vmatmul.mubr.bf16.gmra.mrb[0].mxu0 %v4442
    %v4477 = vpop.f32.mrb[0].mxu0
    %v4478 = vadd.f32 0.0, %v4477
    %v4479 = vpop.f32.mrb[0].mxu0
    %v4480 = vadd.f32 0.0, %v4479
    %v4481 = vpop.f32.mrb[0].mxu0
    %v4482 = vpop.f32.mrb[0].mxu0
    %4483 = vdwg.mxu0
    %4484 = vmatprep.subr.bf16.mxu0 %v3577
    %4485 = vmatpush1.bf16.msra.mxu0 %v3576
    %4486 = vmatprep.subr.bf16.mxu0 %v3581
    %4487 = vmatpush1.bf16.msra.mxu0 %v3580
    %4488 = vmatprep.subr.bf16.mxu0 %v3585
    %4489 = vmatpush1.bf16.msra.mxu0 %v3584
    %4490 = vmatprep.subr.bf16.mxu0 %v3589
    %4491 = vmatpush1.bf16.msra.mxu0 %v3588
    %4492 = vmatprep.subr.bf16.mxu0 %v3593
    %4493 = vmatpush1.bf16.msra.mxu0 %v3592
    %4494 = vmatprep.subr.bf16.mxu0 %v3597
    %4495 = vmatpush1.bf16.msra.mxu0 %v3596
    %4496 = vmatprep.subr.bf16.mxu0 %v3601
    %4497 = vmatpush1.bf16.msra.mxu0 %v3600
    %4498 = vmatprep.subr.bf16.mxu0 %v3605
    %4499 = vmatpush1.bf16.msra.mxu0 %v3604
    %4500 = vmatprep.subr.bf16.mxu0 0
    %4501 = vmatpush1.bf16.msra.mxu0 0
    %4502 = vmatprep.subr.bf16.mxu0 0
    %4503 = vmatpush1.bf16.msra.mxu0 0
    %4504 = vmatprep.subr.bf16.mxu0 0
    %4505 = vmatpush1.bf16.msra.mxu0 0
    %4506 = vmatprep.subr.bf16.mxu0 0
    %4507 = vmatpush1.bf16.msra.mxu0 0
    %4508 = vmatprep.subr.bf16.mxu0 0
    %4509 = vmatpush1.bf16.msra.mxu0 0
    %4510 = vmatprep.subr.bf16.mxu0 0
    %4511 = vmatpush1.bf16.msra.mxu0 0
    %4512 = vmatprep.subr.bf16.mxu0 0
    %4513 = vmatpush1.bf16.msra.mxu0 0
    %4514 = vmatprep.subr.bf16.mxu0 0
    %4515 = vmatpush1.bf16.msra.mxu0 0
    %4516 = vmatprep.mubr.bf16.mxu0 0
    %4517 = vmatmul.mubr.bf16.gmra.mrb[0].mxu0 %v4442
    %v4518 = vpop.f32.mrb[0].mxu0
    %v4519 = vadd.f32 0.0, %v4518
    %v4520 = vpop.f32.mrb[0].mxu0
    %v4521 = vadd.f32 0.0, %v4520
    %v4522 = vpop.f32.mrb[0].mxu0
    %v4523 = vpop.f32.mrb[0].mxu0
    %4524 = vdwg.mxu0
    %v4525 = vadd.f32 %v4438, %v4478
    %v4526 = vadd.f32 %v4439, %v4480
    %v4527 = vadd.f32 %v4440, %v4519
    %v4528 = vadd.f32 %v4441, %v4521
    %v4529 = vxor.u32 %v4525, 2147483648
    %v4530 = vxor.u32 %v4526, 2147483648
    %v4531 = vxor.u32 %v4527, 2147483648
    %v4532 = vmul.f32 %v4529, 1.442695
    %v4533 = vpow.pop %v4532
    %v4534 = vmul.f32 %v4530, 1.442695
    %v4535 = vpow.pop %v4534
    %v4536 = vmul.f32 %v4531, 1.442695
    %v4537 = vpow.pop %v4536
    %v4538 = vadd.f32 %v4533, 1.0
    %v4539 = vadd.f32 %v4535, 1.0
    %v4540 = vadd.f32 %v4537, 1.0
    %v4541 = vrcp.pop %v4538
    %v4542 = vmul.f32 1.0, %v4541
    %v4543 = vrcp.pop %v4539
    %v4544 = vmul.f32 1.0, %v4543
    %v4545 = vrcp.pop %v4540
    %v4546 = vmul.f32 1.0, %v4545
    %v4547 = vtanh.pop %v4528
    %v4548 = vmul.f32 %v4544, %v4435
    %v4549 = vmul.f32 %v4542, %v4547
    %v4550 = vadd.f32 %v4548, %v4549
    %v4551 = vtanh.pop %v4550
    %v4552 = vmul.f32 %v4546, %v4551
    %v4553 = vld [vmem:[#allocation13] sm:$0xf]
    %v4554 = vld [vmem:[#allocation13 + $0x4] sm:$0xf]
    %v4555 = vld [vmem:[#allocation13 + $0x8] sm:$0xf]
    %v4556 = vld [vmem:[#allocation13 + $0xc] sm:$0xf]
    %v4557 = vld [vmem:[#allocation13 + $0x10] sm:$0xf]
    %v4558 = vld [vmem:[#allocation13 + $0x14] sm:$0xf]
    %v4559 = vld [vmem:[#allocation13 + $0x18] sm:$0xf]
    %v4560 = vld [vmem:[#allocation13 + $0x1c] sm:$0xf]
    %v4561 = vld [vmem:[#allocation13 + $0x20] sm:$0xf]
    %v4562 = vld [vmem:[#allocation13 + $0x24] sm:$0xf]
    %v4563 = vld [vmem:[#allocation13 + $0x28] sm:$0xf]
    %v4564 = vld [vmem:[#allocation13 + $0x2c] sm:$0xf]
    %v4565 = vld [vmem:[#allocation13 + $0x30] sm:$0xf]
    %v4566 = vld [vmem:[#allocation13 + $0x34] sm:$0xf]
    %v4567 = vld [vmem:[#allocation13 + $0x38] sm:$0xf]
    %v4568 = vld [vmem:[#allocation13 + $0x3c] sm:$0xf]
    %v4569 = vld [vmem:[%s8] sm:$0x1]
    %v4570 = vpack.c.bf16 %v4552, %v4552
    %v4572 = vlaneseq
    %v4573 = vshrl.u32 %v4572, 7
    %v4574 = vsub.s32 0, %v4573
    %v4575 = vrot.slane %v4569, %v4574
    %v4593 = vunpack.c.l.b16 %v4553
    %v4594 = vunpack.c.l.b16 %v4554
    %v4595 = vunpack.c.l.b16 %v4555
    %v4596 = vunpack.c.l.b16 %v4556
    %v4597 = vunpack.c.l.b16 %v4557
    %v4598 = vunpack.c.l.b16 %v4558
    %v4599 = vunpack.c.l.b16 %v4559
    %v4600 = vunpack.c.l.b16 %v4560
    %v4601 = vunpack.c.l.b16 %v4561
    %v4602 = vunpack.c.l.b16 %v4562
    %v4603 = vunpack.c.l.b16 %v4563
    %v4604 = vunpack.c.l.b16 %v4564
    %v4605 = vunpack.c.l.b16 %v4565
    %v4606 = vunpack.c.l.b16 %v4566
    %v4607 = vunpack.c.l.b16 %v4567
    %v4608 = vunpack.c.l.b16 %v4568
    %v4609 = vpack.c.b16 %v4594, %v4593
    %v4610 = vpack.c.b16 %v4596, %v4595
    %v4611 = vpack.c.b16 %v4598, %v4597
    %v4612 = vpack.c.b16 %v4600, %v4599
    %v4613 = vpack.c.b16 %v4602, %v4601
    %v4614 = vpack.c.b16 %v4604, %v4603
    %v4615 = vpack.c.b16 %v4606, %v4605
    %v4616 = vpack.c.b16 %v4608, %v4607
    %4625 = vmatprep.subr.bf16.mxu0 0
    %4626 = vmatpush1.bf16.msra.mxu0 %v4609
    %4627 = vmatprep.subr.bf16.mxu0 0
    %4628 = vmatpush1.bf16.msra.mxu0 %v4610
    %4629 = vmatprep.subr.bf16.mxu0 0
    %4630 = vmatpush1.bf16.msra.mxu0 %v4611
    %4631 = vmatprep.subr.bf16.mxu0 0
    %4632 = vmatpush1.bf16.msra.mxu0 %v4612
    %4633 = vmatprep.subr.bf16.mxu0 0
    %4634 = vmatpush1.bf16.msra.mxu0 %v4613
    %4635 = vmatprep.subr.bf16.mxu0 0
    %4636 = vmatpush1.bf16.msra.mxu0 %v4614
    %4637 = vmatprep.subr.bf16.mxu0 0
    %4638 = vmatpush1.bf16.msra.mxu0 %v4615
    %4639 = vmatprep.subr.bf16.mxu0 0
    %4640 = vmatpush1.bf16.msra.mxu0 %v4616
    %4641 = vmatprep.subr.bf16.mxu0 0
    %4642 = vmatpush1.bf16.msra.mxu0 0
    %4643 = vmatprep.subr.bf16.mxu0 0
    %4644 = vmatpush1.bf16.msra.mxu0 0
    %4645 = vmatprep.subr.bf16.mxu0 0
    %4646 = vmatpush1.bf16.msra.mxu0 0
    %4647 = vmatprep.subr.bf16.mxu0 0
    %4648 = vmatpush1.bf16.msra.mxu0 0
    %4649 = vmatprep.subr.bf16.mxu0 0
    %4650 = vmatpush1.bf16.msra.mxu0 0
    %4651 = vmatprep.subr.bf16.mxu0 0
    %4652 = vmatpush1.bf16.msra.mxu0 0
    %4653 = vmatprep.subr.bf16.mxu0 0
    %4654 = vmatpush1.bf16.msra.mxu0 0
    %4655 = vmatprep.subr.bf16.mxu0 0
    %4656 = vmatpush1.bf16.msra.mxu0 0
    %4657 = vmatprep.mubr.bf16.mxu0 0
    %4658 = vmatmul.mubr.bf16.gmra.mrb[0].mxu0 %v4570
    %v4659 = vpop.f32.mrb[0].mxu0
    %v4660 = vadd.f32 %v4575, %v4659
    %v4661 = vpop.f32.mrb[0].mxu0
    %v4662 = vpop.f32.mrb[0].mxu0
    %v4663 = vpop.f32.mrb[0].mxu0
    %4664 = vdwg.mxu0
    %4665 = vst [vmem:[#allocation15] sm:$0xff] %v4660
    // Predicated region
    $region62: #{tpu_custom_call.1} parent=1 // pred_check
      _
    $region63: #{tpu_custom_call.1} parent=1 // pred_check_branch
      %4667 = sbr.rel (0) target = $region65
    $region64: #{tpu_custom_call.1} parent=1 // pred_region
      %s4669 = ssub.s32 128, 128
      %4670 = vsyncadd [#allocation6], %s4669
      %s4672 = sshll.u32 [#allocation15], 4
      %s4673 = int_to_ptr.vmem [resolvable:$true] %s4672
      %4675 = dma.vmem_to_hbm [thread:$0]  %s4673, 128, %s9, [#allocation6]
    $region65: #{tpu_custom_call.1} parent=1 // pred_fallthru
      _
    // Predicated region
    $region66: #{tpu_custom_call.1} parent=1 // pred_check
      _
    $region67: #{tpu_custom_call.1} parent=1 // pred_check_branch
      %4677 = sbr.rel (0) target = $region69
    $region68: #{tpu_custom_call.1} parent=1 // pred_region
      %4678 = dma.done [#allocation6], 128
    $region69: #{tpu_custom_call.1} parent=1 // pred_fallthru
      _
    %4679 = vsyncpa [#allocation5], 1
    %4680 = vsyncpa [#allocation8], 1
    %4681 = vsyncpa [#allocation11], 1
    %4682 = vsyncpa [#allocation14], 1
    %4683 = vsyncpa [#allocation6], 1

</llo_original>
